<compile_context>
chip_gen: v7x
topology: tpu7x:2x2x1
jax: 0.10.0
libtpu: 0.0.40
codegen_flags: <defaults>
</compile_context>

<pallas_src>
import math
import functools

import numpy as np
import jax
import jax.numpy as jnp
from jax import lax
from jax.experimental import pallas as pl
from jax.experimental.pallas import tpu as pltpu


def _layernorm(x, g, b, eps=1e-5):
    mu = jnp.mean(x, axis=-1, keepdims=True)
    var = jnp.mean((x - mu) ** 2, axis=-1, keepdims=True)
    return (x - mu) * lax.rsqrt(var + eps) * g + b


def _gelu(x):
    return 0.5 * x * (1.0 + jnp.tanh(math.sqrt(2.0 / math.pi)
                                     * (x + 0.044715 * x * x * x)))


# --------------------------- fused SBERT kernel ------------------------------
def _sbert_kernel(x_ref, pe_ref, mask_ref, w_in_ref, b_in_ref,
                  w_qkv_ref, w_o_ref, w_ff1_ref, w_ff2_ref,
                  b_qkv_ref, b_ff1_ref, vec_h_ref,
                  o_ref, *, n_layers, n_heads, d_k):
    S, H = o_ref.shape

    # ---- embedding: obs = x @ W_in + b_in ; h = concat(obs, pe) ----
    # (matches obs_embed.repeat(1,1,2) with the 2nd half overwritten by pe)
    obs = jnp.dot(x_ref[...], w_in_ref[...],
                  preferred_element_type=jnp.float32) + b_in_ref[...]
    h = jnp.concatenate([obs, pe_ref[...]], axis=-1)             # (S, H)

    # key mask: (1, S) float {0,1} -> (1, 1, S) boolean "key is masked"
    key_masked = (mask_ref[...] == 0.0)[None, :, :]
    scale = 1.0 / math.sqrt(d_k)

    for li in range(n_layers):
        vecs = vec_h_ref[li]                                     # (6, H)
        g1, be1 = vecs[0:1, :], vecs[1:2, :]
        g2, be2 = vecs[2:3, :], vecs[3:4, :]
        b_o, b_ff2 = vecs[4:5, :], vecs[5:6, :]

        # --- attention sublayer: h + Attn(LayerNorm(h)) ---
        xn = _layernorm(h, g1, be1)
        qkv = jnp.dot(xn, w_qkv_ref[li],
                      preferred_element_type=jnp.float32) + b_qkv_ref[li]

        qh = jnp.stack([qkv[:, hd * d_k:(hd + 1) * d_k]
                        for hd in range(n_heads)], axis=0)        # (h, S, dk)
        kh = jnp.stack([qkv[:, H + hd * d_k:H + (hd + 1) * d_k]
                        for hd in range(n_heads)], axis=0)
        vh = jnp.stack([qkv[:, 2 * H + hd * d_k:2 * H + (hd + 1) * d_k]
                        for hd in range(n_heads)], axis=0)

        s = jnp.einsum('hqd,hkd->hqk', qh, kh,
                       preferred_element_type=jnp.float32) * scale   # (h,S,S)
        s = jnp.where(key_masked, -1e9, s)                       # masked_fill

        # Reference quirk: softmax over the HEAD axis (F.softmax(scores, dim=1))
        m = jnp.max(s, axis=0, keepdims=True)
        e = jnp.exp(s - m)
        denom = jnp.sum(e, axis=0, keepdims=True)
        p = e * pl.reciprocal(denom, approx=True)                # (h, S, S)

        ctx = jnp.einsum('hqk,hkd->hqd', p, vh,
                         preferred_element_type=jnp.float32)     # (h, S, dk)
        ctx = jnp.concatenate([ctx[hd] for hd in range(n_heads)], axis=-1)

        attn = jnp.dot(ctx, w_o_ref[li],
                       preferred_element_type=jnp.float32) + b_o
        h = h + attn

        # --- feed-forward sublayer: h + FF(LayerNorm(h)) ---
        xn2 = _layernorm(h, g2, be2)
        u = _gelu(jnp.dot(xn2, w_ff1_ref[li],
                          preferred_element_type=jnp.float32) + b_ff1_ref[li])
        ff = jnp.dot(u, w_ff2_ref[li],
                     preferred_element_type=jnp.float32) + b_ff2
        h = h + ff

    o_ref[...] = h


# ----------------------------- parameter packing -----------------------------
def pack_params(params):
    layers = params["layers"]
    st = [jnp.stack([l[i] for l in layers]) for i in range(16)]
    (g1, be1, wq, bq, wk, bk, wv, bv, wo, bo, g2, be2, w1, b1, w2, b2) = st
    return {
        "w_qkv": jnp.concatenate([wq, wk, wv], axis=-1),          # (L, H, 3H)
        "b_qkv": jnp.concatenate([bq, bk, bv], axis=-1),          # (L, 1, 3H)
        "w_o":   wo,                                              # (L, H, H)
        "w_ff1": w1,                                              # (L, H, 4H)
        "b_ff1": b1,                                              # (L, 1, 4H)
        "w_ff2": w2,                                              # (L, 4H, H)
        "vec_h": jnp.concatenate([g1, be1, g2, be2, bo, b2], axis=1),  # (L,6,H)
    }


# ----------------------------- fused forward call -----------------------------
def sbert_forward(x, doy, mask, params, hidden, n_heads):
    B, S, F = x.shape
    half = hidden // 2
    d_ff = hidden * 4
    packed = pack_params(params)
    L = packed["w_qkv"].shape[0]

    pe_g = params["pe"][doy]                                  # (B, S, half) gather (JAX glue)
    kmask = (mask > 0).astype(jnp.float32)[:, None, :]        # (B, 1, S) key mask

    kernel = functools.partial(_sbert_kernel, n_layers=L,
                               n_heads=n_heads, d_k=hidden // n_heads)

    def full(shape):
        nd = len(shape)
        return pl.BlockSpec(shape, lambda b: (0,) * nd)

    return pl.pallas_call(
        kernel,
        out_shape=jax.ShapeDtypeStruct((B, S, hidden), jnp.float32),
        grid=(B,),
        in_specs=[
            pl.BlockSpec((None, S, F), lambda b: (b, 0, 0)),       # x
            pl.BlockSpec((None, S, half), lambda b: (b, 0, 0)),    # gathered pe
            pl.BlockSpec((None, 1, S), lambda b: (b, 0, 0)),       # key mask
            full((F, half)),                                       # W_in
            full((1, half)),                                       # b_in
            full((L, hidden, 3 * hidden)),                         # W_qkv
            full((L, hidden, hidden)),                             # W_o
            full((L, hidden, d_ff)),                               # W_ff1
            full((L, d_ff, hidden)),                               # W_ff2
            full((L, 1, 3 * hidden)),                              # b_qkv
            full((L, 1, d_ff)),                                    # b_ff1
            full((L, 6, hidden)),                                  # g1,be1,g2,be2,b_o,b_ff2
        ],
        out_specs=pl.BlockSpec((None, S, hidden), lambda b: (b, 0, 0)),
        compiler_params=pltpu.CompilerParams(
            dimension_semantics=("parallel",)),
    )(x, pe_g, kmask, params["w_in"], params["b_in"],
      packed["w_qkv"], packed["w_o"], packed["w_ff1"], packed["w_ff2"],
      packed["b_qkv"], packed["b_ff1"], packed["vec_h"])


# ----------------------------- model assembly --------------------------------
def make_pe_table(d_model, max_len):
    position = jnp.arange(0, max_len, dtype=jnp.float32)[:, None]
    div_term = jnp.exp(jnp.arange(0, d_model, 2, dtype=jnp.float32)
                       * -(math.log(10000.0) / d_model))
    pe = jnp.zeros((max_len + 1, d_model), jnp.float32)
    pe = pe.at[1:, 0::2].set(jnp.sin(position * div_term))
    pe = pe.at[1:, 1::2].set(jnp.cos(position * div_term))
    return pe


def init_params(key, num_features, hidden, n_layers, max_len):
    half = hidden // 2
    d_ff = hidden * 4
    keys = jax.random.split(key, 1 + n_layers)
    params = {"pe": make_pe_table(half, max_len)}
    k_w, k_b = jax.random.split(keys[0])
    params["w_in"] = jax.random.normal(k_w, (num_features, half),
                                       jnp.float32) / math.sqrt(num_features)
    params["b_in"] = 0.01 * jax.random.normal(k_b, (1, half), jnp.float32)

    def w(k, shp, fan_in):
        return jax.random.normal(k, shp, jnp.float32) / math.sqrt(fan_in)

    layers = []
    for li in range(n_layers):
        ks = jax.random.split(keys[1 + li], 12)
        g1 = jnp.ones((1, hidden), jnp.float32)
        be1 = jnp.zeros((1, hidden), jnp.float32)
        wq = w(ks[0], (hidden, hidden), hidden)
        bq = 0.01 * jax.random.normal(ks[1], (1, hidden))
        wk = w(ks[2], (hidden, hidden), hidden)
        bk = 0.01 * jax.random.normal(ks[3], (1, hidden))
        wv = w(ks[4], (hidden, hidden), hidden)
        bv = 0.01 * jax.random.normal(ks[5], (1, hidden))
        wo = w(ks[6], (hidden, hidden), hidden)
        bo = 0.01 * jax.random.normal(ks[7], (1, hidden))
        g2 = jnp.ones((1, hidden), jnp.float32)
        be2 = jnp.zeros((1, hidden), jnp.float32)
        w1 = w(ks[8], (hidden, d_ff), hidden)
        b1 = 0.01 * jax.random.normal(ks[9], (1, d_ff))
        w2 = w(ks[10], (d_ff, hidden), d_ff)
        b2 = 0.01 * jax.random.normal(ks[11], (1, hidden))
        layers.append((g1, be1, wq, bq, wk, bk, wv, bv, wo, bo,
                       g2, be2, w1, b1, w2, b2))
    params["layers"] = layers
    return params


# --------------------------- pure-JAX reference ------------------------------
def ref_forward(x, doy, mask, params, hidden, n_heads):
    B, S, _ = x.shape
    d_k = hidden // n_heads
    obs = jnp.einsum("bsf,fh->bsh", x, params["w_in"]) + params["b_in"][0]
    h = jnp.concatenate([obs, params["pe"][doy]], axis=-1)
    mask4 = jnp.broadcast_to((mask > 0)[:, None, :], (B, S, S))[:, None, :, :]
    for (g1, be1, wq, bq, wk, bk, wv, bv, wo, bo,
         g2, be2, w1, b1, w2, b2) in params["layers"]:
        xn = _layernorm(h, g1[0], be1[0])

        def split_heads(t):
            return t.reshape(B, S, n_heads, d_k).transpose(0, 2, 1, 3)

        q = split_heads(xn @ wq + bq[0])
        k = split_heads(xn @ wk + bk[0])
        v = split_heads(xn @ wv + bv[0])
        scores = jnp.einsum("bhqd,bhkd->bhqk", q, k) / math.sqrt(d_k)
        scores = jnp.where(mask4, scores, -1e9)
        p = jax.nn.softmax(scores, axis=1)   # softmax over head axis (as torch)
        ctx = jnp.einsum("bhqk,bhkd->bhqd", p, v)
        ctx = ctx.transpose(0, 2, 1, 3).reshape(B, S, hidden)
        h = h + (ctx @ wo + bo[0])
        xn2 = _layernorm(h, g2[0], be2[0])
        h = h + (_gelu(xn2 @ w1 + b1[0]) @ w2 + b2[0])
    return h


if __name__ == "__main__":
    num_features = 10
    hidden = 32
    n_layers = 2
    attn_heads = 4
    max_len = 64
    B, S = 2, 8

    key = jax.random.PRNGKey(0)
    k_p, k_x, k_d, k_m = jax.random.split(key, 4)
    params = init_params(k_p, num_features, hidden, n_layers, max_len)

    x = jax.random.normal(k_x, (B, S, num_features), jnp.float32)
    doy = jax.random.randint(k_d, (B, S), 1, max_len + 1, dtype=jnp.int32)
    mask = (jax.random.uniform(k_m, (B, S)) > 0.2).astype(jnp.int32)
    mask = mask.at[:, 0].set(1)

    out = sbert_forward(x, doy, mask, params, hidden, attn_heads)
    out = jax.block_until_ready(out)

    ref = ref_forward(x, doy, mask, params, hidden, attn_heads)
    assert out.shape == (B, S, hidden)
    np.testing.assert_allclose(np.asarray(out), np.asarray(ref),
                               rtol=2e-2, atol=2e-2)
    print("KERNEL_OK")
</pallas_src>

<mosaic_0001>
module attributes {stable_mosaic.version = 11 : i64} {
  func.func @_sbert_kernel(%arg0: i32, %arg1: memref<1x8x10xf32, #tpu.memory_space<vmem>>, %arg2: memref<1x8x16xf32, #tpu.memory_space<vmem>>, %arg3: memref<1x1x8xf32, #tpu.memory_space<vmem>>, %arg4: memref<10x16xf32, #tpu.memory_space<vmem>>, %arg5: memref<1x16xf32, #tpu.memory_space<vmem>>, %arg6: memref<2x32x96xf32, #tpu.memory_space<vmem>>, %arg7: memref<2x32x32xf32, #tpu.memory_space<vmem>>, %arg8: memref<2x32x128xf32, #tpu.memory_space<vmem>>, %arg9: memref<2x128x32xf32, #tpu.memory_space<vmem>>, %arg10: memref<2x1x96xf32, #tpu.memory_space<vmem>>, %arg11: memref<2x1x128xf32, #tpu.memory_space<vmem>>, %arg12: memref<2x6x32xf32, #tpu.memory_space<vmem>>, %arg13: memref<1x8x32xf32, #tpu.memory_space<vmem>>) attributes {dimension_semantics = [#tpu.dimension_semantics<parallel>], iteration_bounds = array<i64: 2>, scalar_prefetch = 0 : i64, scratch_operands = 0 : i64, tpu.core_type = #tpu.core_type<tc>, window_params = [{transform_indices = @transform_0, window_bounds = array<i64: 1, 8, 10>}, {transform_indices = @transform_1, window_bounds = array<i64: 1, 8, 16>}, {transform_indices = @transform_2, window_bounds = array<i64: 1, 1, 8>}, {pipeline_mode = #tpu.pipeline_mode<synchronous>, transform_indices = @transform_3, window_bounds = array<i64: 10, 16>}, {pipeline_mode = #tpu.pipeline_mode<synchronous>, transform_indices = @transform_4, window_bounds = array<i64: 1, 16>}, {pipeline_mode = #tpu.pipeline_mode<synchronous>, transform_indices = @transform_5, window_bounds = array<i64: 2, 32, 96>}, {pipeline_mode = #tpu.pipeline_mode<synchronous>, transform_indices = @transform_6, window_bounds = array<i64: 2, 32, 32>}, {pipeline_mode = #tpu.pipeline_mode<synchronous>, transform_indices = @transform_7, window_bounds = array<i64: 2, 32, 128>}, {pipeline_mode = #tpu.pipeline_mode<synchronous>, transform_indices = @transform_8, window_bounds = array<i64: 2, 128, 32>}, {pipeline_mode = #tpu.pipeline_mode<synchronous>, transform_indices = @transform_9, window_bounds = array<i64: 2, 1, 96>}, {pipeline_mode = #tpu.pipeline_mode<synchronous>, transform_indices = @transform_10, window_bounds = array<i64: 2, 1, 128>}, {pipeline_mode = #tpu.pipeline_mode<synchronous>, transform_indices = @transform_11, window_bounds = array<i64: 2, 6, 32>}, {transform_indices = @transform_12, window_bounds = array<i64: 1, 8, 32>}]} {
    %c0 = arith.constant 0 : index
    %c0_0 = arith.constant 0 : index
    %c0_1 = arith.constant 0 : index
    %0 = vector.load %arg1[%c0, %c0_0, %c0_1] : memref<1x8x10xf32, #tpu.memory_space<vmem>>, vector<1x8x10xf32>
    %1 = vector.shape_cast %0 : vector<1x8x10xf32> to vector<8x10xf32>
    %c0_2 = arith.constant 0 : index
    %c0_3 = arith.constant 0 : index
    %2 = vector.load %arg4[%c0_2, %c0_3] : memref<10x16xf32, #tpu.memory_space<vmem>>, vector<10x16xf32>
    %cst = arith.constant dense<0.000000e+00> : vector<8x16xf32>
    %3 = tpu.matmul %1, %2, %cst {dimension_numbers = #tpu.dot_dimension_numbers<[1], [0], [0], [1], [0, 0, 1, 1], [], []>} : vector<8x10xf32>, vector<10x16xf32>, vector<8x16xf32> -> vector<8x16xf32>
    %c0_4 = arith.constant 0 : index
    %c0_5 = arith.constant 0 : index
    %4 = vector.load %arg5[%c0_4, %c0_5] : memref<1x16xf32, #tpu.memory_space<vmem>>, vector<1x16xf32>
    %5 = vector.broadcast %4 : vector<1x16xf32> to vector<8x16xf32>
    %6 = arith.addf %3, %5 : vector<8x16xf32>
    %c0_6 = arith.constant 0 : index
    %c0_7 = arith.constant 0 : index
    %c0_8 = arith.constant 0 : index
    %7 = vector.load %arg2[%c0_6, %c0_7, %c0_8] : memref<1x8x16xf32, #tpu.memory_space<vmem>>, vector<1x8x16xf32>
    %8 = vector.shape_cast %7 : vector<1x8x16xf32> to vector<8x16xf32>
    %9 = tpu.concatenate %6, %8 in 1 : vector<8x16xf32>, vector<8x16xf32> -> vector<8x32xf32>
    %c0_9 = arith.constant 0 : index
    %c0_10 = arith.constant 0 : index
    %c0_11 = arith.constant 0 : index
    %10 = vector.load %arg3[%c0_9, %c0_10, %c0_11] : memref<1x1x8xf32, #tpu.memory_space<vmem>>, vector<1x1x8xf32>
    %11 = vector.shape_cast %10 : vector<1x1x8xf32> to vector<1x8xf32>
    %cst_12 = arith.constant 0.000000e+00 : f32
    %12 = vector.broadcast %cst_12 : f32 to vector<1x8xf32>
    %13 = arith.cmpf oeq, %11, %12 : vector<1x8xf32>
    %14 = vector.shape_cast %13 : vector<1x8xi1> to vector<1x1x8xi1>
    %c0_13 = arith.constant 0 : index
    %c0_14 = arith.constant 0 : index
    %c0_15 = arith.constant 0 : index
    %15 = vector.load %arg12[%c0_13, %c0_14, %c0_15] : memref<2x6x32xf32, #tpu.memory_space<vmem>>, vector<1x6x32xf32>
    %16 = vector.shape_cast %15 : vector<1x6x32xf32> to vector<6x32xf32>
    %17 = vector.extract_strided_slice %16 {offsets = [0, 0], sizes = [1, 32], strides = [1, 1]} : vector<6x32xf32> to vector<1x32xf32>
    %18 = vector.extract_strided_slice %16 {offsets = [1, 0], sizes = [1, 32], strides = [1, 1]} : vector<6x32xf32> to vector<1x32xf32>
    %19 = vector.extract_strided_slice %16 {offsets = [2, 0], sizes = [1, 32], strides = [1, 1]} : vector<6x32xf32> to vector<1x32xf32>
    %20 = vector.extract_strided_slice %16 {offsets = [3, 0], sizes = [1, 32], strides = [1, 1]} : vector<6x32xf32> to vector<1x32xf32>
    %21 = vector.extract_strided_slice %16 {offsets = [4, 0], sizes = [1, 32], strides = [1, 1]} : vector<6x32xf32> to vector<1x32xf32>
    %22 = vector.extract_strided_slice %16 {offsets = [5, 0], sizes = [1, 32], strides = [1, 1]} : vector<6x32xf32> to vector<1x32xf32>
    %cst_16 = arith.constant dense<0.000000e+00> : vector<8xf32>
    %23 = vector.multi_reduction <add>, %9, %cst_16 [1] : vector<8x32xf32> to vector<8xf32>
    %24 = vector.shape_cast %23 : vector<8xf32> to vector<8x1xf32>
    %cst_17 = arith.constant 3.200000e+01 : f32
    %25 = vector.broadcast %cst_17 : f32 to vector<8x1xf32>
    %26 = arith.divf %24, %25 : vector<8x1xf32>
    %27 = vector.broadcast %26 : vector<8x1xf32> to vector<8x32xf32>
    %28 = arith.subf %9, %27 : vector<8x32xf32>
    %29 = arith.mulf %28, %28 : vector<8x32xf32>
    %cst_18 = arith.constant dense<0.000000e+00> : vector<8xf32>
    %30 = vector.multi_reduction <add>, %29, %cst_18 [1] : vector<8x32xf32> to vector<8xf32>
    %31 = vector.shape_cast %30 : vector<8xf32> to vector<8x1xf32>
    %cst_19 = arith.constant 3.200000e+01 : f32
    %32 = vector.broadcast %cst_19 : f32 to vector<8x1xf32>
    %33 = arith.divf %31, %32 : vector<8x1xf32>
    %34 = vector.broadcast %26 : vector<8x1xf32> to vector<8x32xf32>
    %35 = arith.subf %9, %34 : vector<8x32xf32>
    %cst_20 = arith.constant 9.99999974E-6 : f32
    %36 = vector.broadcast %cst_20 : f32 to vector<8x1xf32>
    %37 = arith.addf %33, %36 : vector<8x1xf32>
    %38 = math.rsqrt %37 : vector<8x1xf32>
    %39 = vector.broadcast %38 : vector<8x1xf32> to vector<8x32xf32>
    %40 = arith.mulf %35, %39 : vector<8x32xf32>
    %41 = vector.broadcast %17 : vector<1x32xf32> to vector<8x32xf32>
    %42 = arith.mulf %40, %41 : vector<8x32xf32>
    %43 = vector.broadcast %18 : vector<1x32xf32> to vector<8x32xf32>
    %44 = arith.addf %42, %43 : vector<8x32xf32>
    %c0_21 = arith.constant 0 : index
    %c0_22 = arith.constant 0 : index
    %c0_23 = arith.constant 0 : index
    %45 = vector.load %arg6[%c0_21, %c0_22, %c0_23] : memref<2x32x96xf32, #tpu.memory_space<vmem>>, vector<1x32x96xf32>
    %46 = vector.shape_cast %45 : vector<1x32x96xf32> to vector<32x96xf32>
    %cst_24 = arith.constant dense<0.000000e+00> : vector<8x96xf32>
    %47 = tpu.matmul %44, %46, %cst_24 {dimension_numbers = #tpu.dot_dimension_numbers<[1], [0], [0], [1], [0, 0, 1, 1], [], []>} : vector<8x32xf32>, vector<32x96xf32>, vector<8x96xf32> -> vector<8x96xf32>
    %c0_25 = arith.constant 0 : index
    %c0_26 = arith.constant 0 : index
    %c0_27 = arith.constant 0 : index
    %48 = vector.load %arg10[%c0_25, %c0_26, %c0_27] : memref<2x1x96xf32, #tpu.memory_space<vmem>>, vector<1x1x96xf32>
    %49 = vector.shape_cast %48 : vector<1x1x96xf32> to vector<1x96xf32>
    %50 = vector.broadcast %49 : vector<1x96xf32> to vector<8x96xf32>
    %51 = arith.addf %47, %50 : vector<8x96xf32>
    %52 = vector.extract_strided_slice %51 {offsets = [0, 0], sizes = [8, 8], strides = [1, 1]} : vector<8x96xf32> to vector<8x8xf32>
    %53 = vector.extract_strided_slice %51 {offsets = [0, 8], sizes = [8, 8], strides = [1, 1]} : vector<8x96xf32> to vector<8x8xf32>
    %54 = vector.extract_strided_slice %51 {offsets = [0, 16], sizes = [8, 8], strides = [1, 1]} : vector<8x96xf32> to vector<8x8xf32>
    %55 = vector.extract_strided_slice %51 {offsets = [0, 24], sizes = [8, 8], strides = [1, 1]} : vector<8x96xf32> to vector<8x8xf32>
    %56 = vector.shape_cast %52 : vector<8x8xf32> to vector<1x8x8xf32>
    %57 = vector.shape_cast %53 : vector<8x8xf32> to vector<1x8x8xf32>
    %58 = vector.shape_cast %54 : vector<8x8xf32> to vector<1x8x8xf32>
    %59 = vector.shape_cast %55 : vector<8x8xf32> to vector<1x8x8xf32>
    %60 = tpu.concatenate %56, %57, %58, %59 in 0 : vector<1x8x8xf32>, vector<1x8x8xf32>, vector<1x8x8xf32>, vector<1x8x8xf32> -> vector<4x8x8xf32>
    %61 = vector.extract_strided_slice %51 {offsets = [0, 32], sizes = [8, 8], strides = [1, 1]} : vector<8x96xf32> to vector<8x8xf32>
    %62 = vector.extract_strided_slice %51 {offsets = [0, 40], sizes = [8, 8], strides = [1, 1]} : vector<8x96xf32> to vector<8x8xf32>
    %63 = vector.extract_strided_slice %51 {offsets = [0, 48], sizes = [8, 8], strides = [1, 1]} : vector<8x96xf32> to vector<8x8xf32>
    %64 = vector.extract_strided_slice %51 {offsets = [0, 56], sizes = [8, 8], strides = [1, 1]} : vector<8x96xf32> to vector<8x8xf32>
    %65 = vector.shape_cast %61 : vector<8x8xf32> to vector<1x8x8xf32>
    %66 = vector.shape_cast %62 : vector<8x8xf32> to vector<1x8x8xf32>
    %67 = vector.shape_cast %63 : vector<8x8xf32> to vector<1x8x8xf32>
    %68 = vector.shape_cast %64 : vector<8x8xf32> to vector<1x8x8xf32>
    %69 = tpu.concatenate %65, %66, %67, %68 in 0 : vector<1x8x8xf32>, vector<1x8x8xf32>, vector<1x8x8xf32>, vector<1x8x8xf32> -> vector<4x8x8xf32>
    %70 = vector.extract_strided_slice %51 {offsets = [0, 64], sizes = [8, 8], strides = [1, 1]} : vector<8x96xf32> to vector<8x8xf32>
    %71 = vector.extract_strided_slice %51 {offsets = [0, 72], sizes = [8, 8], strides = [1, 1]} : vector<8x96xf32> to vector<8x8xf32>
    %72 = vector.extract_strided_slice %51 {offsets = [0, 80], sizes = [8, 8], strides = [1, 1]} : vector<8x96xf32> to vector<8x8xf32>
    %73 = vector.extract_strided_slice %51 {offsets = [0, 88], sizes = [8, 8], strides = [1, 1]} : vector<8x96xf32> to vector<8x8xf32>
    %74 = vector.shape_cast %70 : vector<8x8xf32> to vector<1x8x8xf32>
    %75 = vector.shape_cast %71 : vector<8x8xf32> to vector<1x8x8xf32>
    %76 = vector.shape_cast %72 : vector<8x8xf32> to vector<1x8x8xf32>
    %77 = vector.shape_cast %73 : vector<8x8xf32> to vector<1x8x8xf32>
    %78 = tpu.concatenate %74, %75, %76, %77 in 0 : vector<1x8x8xf32>, vector<1x8x8xf32>, vector<1x8x8xf32>, vector<1x8x8xf32> -> vector<4x8x8xf32>
    "tpu.trace_start"() <{level = 10 : i32, message = "hqd,hkd->hqk"}> : () -> ()
    %cst_28 = arith.constant dense<0.000000e+00> : vector<4x8x8xf32>
    %79 = tpu.matmul %60, %69, %cst_28 {dimension_numbers = #tpu.dot_dimension_numbers<[2], [2], [1], [1], [0, 0, 0, 1, 1, 1], [0], [0]>} : vector<4x8x8xf32>, vector<4x8x8xf32>, vector<4x8x8xf32> -> vector<4x8x8xf32>
    "tpu.trace_stop"() : () -> ()
    %cst_29 = arith.constant 0.353553385 : f32
    %80 = vector.broadcast %cst_29 : f32 to vector<4x8x8xf32>
    %81 = arith.mulf %79, %80 : vector<4x8x8xf32>
    %cst_30 = arith.constant -1.000000e+09 : f32
    %82 = vector.shape_cast %14 : vector<1x1x8xi1> to vector<1x1x8xi1>
    %83 = vector.broadcast %82 : vector<1x1x8xi1> to vector<4x8x8xi1>
    %84 = vector.broadcast %cst_30 : f32 to vector<4x8x8xf32>
    %85 = arith.select %83, %84, %81 : vector<4x8x8xi1>, vector<4x8x8xf32>
    %cst_31 = arith.constant dense<0xFF800000> : vector<8x8xf32>
    %86 = vector.multi_reduction <maximumf>, %85, %cst_31 [0] : vector<4x8x8xf32> to vector<8x8xf32>
    %87 = vector.shape_cast %86 : vector<8x8xf32> to vector<1x8x8xf32>
    %88 = vector.broadcast %87 : vector<1x8x8xf32> to vector<4x8x8xf32>
    %89 = arith.subf %85, %88 : vector<4x8x8xf32>
    %90 = math.exp %89 : vector<4x8x8xf32>
    %cst_32 = arith.constant dense<0.000000e+00> : vector<8x8xf32>
    %91 = vector.multi_reduction <add>, %90, %cst_32 [0] : vector<4x8x8xf32> to vector<8x8xf32>
    %92 = vector.shape_cast %91 : vector<8x8xf32> to vector<1x8x8xf32>
    %93 = tpu.reciprocal %92 {approx = true} : vector<1x8x8xf32> -> vector<1x8x8xf32>
    %94 = vector.broadcast %93 : vector<1x8x8xf32> to vector<4x8x8xf32>
    %95 = arith.mulf %90, %94 : vector<4x8x8xf32>
    "tpu.trace_start"() <{level = 10 : i32, message = "hqk,hkd->hqd"}> : () -> ()
    %cst_33 = arith.constant dense<0.000000e+00> : vector<4x8x8xf32>
    %96 = tpu.matmul %95, %78, %cst_33 {dimension_numbers = #tpu.dot_dimension_numbers<[2], [1], [1], [2], [0, 0, 0, 1, 1, 2], [0], [0]>} : vector<4x8x8xf32>, vector<4x8x8xf32>, vector<4x8x8xf32> -> vector<4x8x8xf32>
    "tpu.trace_stop"() : () -> ()
    %97 = vector.extract_strided_slice %96 {offsets = [0, 0, 0], sizes = [1, 8, 8], strides = [1, 1, 1]} : vector<4x8x8xf32> to vector<1x8x8xf32>
    %98 = vector.shape_cast %97 : vector<1x8x8xf32> to vector<8x8xf32>
    %99 = vector.extract_strided_slice %96 {offsets = [1, 0, 0], sizes = [1, 8, 8], strides = [1, 1, 1]} : vector<4x8x8xf32> to vector<1x8x8xf32>
    %100 = vector.shape_cast %99 : vector<1x8x8xf32> to vector<8x8xf32>
    %101 = vector.extract_strided_slice %96 {offsets = [2, 0, 0], sizes = [1, 8, 8], strides = [1, 1, 1]} : vector<4x8x8xf32> to vector<1x8x8xf32>
    %102 = vector.shape_cast %101 : vector<1x8x8xf32> to vector<8x8xf32>
    %103 = vector.extract_strided_slice %96 {offsets = [3, 0, 0], sizes = [1, 8, 8], strides = [1, 1, 1]} : vector<4x8x8xf32> to vector<1x8x8xf32>
    %104 = vector.shape_cast %103 : vector<1x8x8xf32> to vector<8x8xf32>
    %105 = tpu.concatenate %98, %100, %102, %104 in 1 : vector<8x8xf32>, vector<8x8xf32>, vector<8x8xf32>, vector<8x8xf32> -> vector<8x32xf32>
    %c0_34 = arith.constant 0 : index
    %c0_35 = arith.constant 0 : index
    %c0_36 = arith.constant 0 : index
    %106 = vector.load %arg7[%c0_34, %c0_35, %c0_36] : memref<2x32x32xf32, #tpu.memory_space<vmem>>, vector<1x32x32xf32>
    %107 = vector.shape_cast %106 : vector<1x32x32xf32> to vector<32x32xf32>
    %cst_37 = arith.constant dense<0.000000e+00> : vector<8x32xf32>
    %108 = tpu.matmul %105, %107, %cst_37 {dimension_numbers = #tpu.dot_dimension_numbers<[1], [0], [0], [1], [0, 0, 1, 1], [], []>} : vector<8x32xf32>, vector<32x32xf32>, vector<8x32xf32> -> vector<8x32xf32>
    %109 = vector.broadcast %21 : vector<1x32xf32> to vector<8x32xf32>
    %110 = arith.addf %108, %109 : vector<8x32xf32>
    %111 = arith.addf %9, %110 : vector<8x32xf32>
    %cst_38 = arith.constant dense<0.000000e+00> : vector<8xf32>
    %112 = vector.multi_reduction <add>, %111, %cst_38 [1] : vector<8x32xf32> to vector<8xf32>
    %113 = vector.shape_cast %112 : vector<8xf32> to vector<8x1xf32>
    %cst_39 = arith.constant 3.200000e+01 : f32
    %114 = vector.broadcast %cst_39 : f32 to vector<8x1xf32>
    %115 = arith.divf %113, %114 : vector<8x1xf32>
    %116 = vector.broadcast %115 : vector<8x1xf32> to vector<8x32xf32>
    %117 = arith.subf %111, %116 : vector<8x32xf32>
    %118 = arith.mulf %117, %117 : vector<8x32xf32>
    %cst_40 = arith.constant dense<0.000000e+00> : vector<8xf32>
    %119 = vector.multi_reduction <add>, %118, %cst_40 [1] : vector<8x32xf32> to vector<8xf32>
    %120 = vector.shape_cast %119 : vector<8xf32> to vector<8x1xf32>
    %cst_41 = arith.constant 3.200000e+01 : f32
    %121 = vector.broadcast %cst_41 : f32 to vector<8x1xf32>
    %122 = arith.divf %120, %121 : vector<8x1xf32>
    %123 = vector.broadcast %115 : vector<8x1xf32> to vector<8x32xf32>
    %124 = arith.subf %111, %123 : vector<8x32xf32>
    %cst_42 = arith.constant 9.99999974E-6 : f32
    %125 = vector.broadcast %cst_42 : f32 to vector<8x1xf32>
    %126 = arith.addf %122, %125 : vector<8x1xf32>
    %127 = math.rsqrt %126 : vector<8x1xf32>
    %128 = vector.broadcast %127 : vector<8x1xf32> to vector<8x32xf32>
    %129 = arith.mulf %124, %128 : vector<8x32xf32>
    %130 = vector.broadcast %19 : vector<1x32xf32> to vector<8x32xf32>
    %131 = arith.mulf %129, %130 : vector<8x32xf32>
    %132 = vector.broadcast %20 : vector<1x32xf32> to vector<8x32xf32>
    %133 = arith.addf %131, %132 : vector<8x32xf32>
    %c0_43 = arith.constant 0 : index
    %c0_44 = arith.constant 0 : index
    %c0_45 = arith.constant 0 : index
    %134 = vector.load %arg8[%c0_43, %c0_44, %c0_45] : memref<2x32x128xf32, #tpu.memory_space<vmem>>, vector<1x32x128xf32>
    %135 = vector.shape_cast %134 : vector<1x32x128xf32> to vector<32x128xf32>
    %cst_46 = arith.constant dense<0.000000e+00> : vector<8x128xf32>
    %136 = tpu.matmul %133, %135, %cst_46 {dimension_numbers = #tpu.dot_dimension_numbers<[1], [0], [0], [1], [0, 0, 1, 1], [], []>} : vector<8x32xf32>, vector<32x128xf32>, vector<8x128xf32> -> vector<8x128xf32>
    %c0_47 = arith.constant 0 : index
    %c0_48 = arith.constant 0 : index
    %c0_49 = arith.constant 0 : index
    %137 = vector.load %arg11[%c0_47, %c0_48, %c0_49] : memref<2x1x128xf32, #tpu.memory_space<vmem>>, vector<1x1x128xf32>
    %138 = vector.shape_cast %137 : vector<1x1x128xf32> to vector<1x128xf32>
    %139 = vector.broadcast %138 : vector<1x128xf32> to vector<8x128xf32>
    %140 = arith.addf %136, %139 : vector<8x128xf32>
    %cst_50 = arith.constant 5.000000e-01 : f32
    %141 = vector.broadcast %cst_50 : f32 to vector<8x128xf32>
    %142 = arith.mulf %141, %140 : vector<8x128xf32>
    %cst_51 = arith.constant 4.471500e-02 : f32
    %143 = vector.broadcast %cst_51 : f32 to vector<8x128xf32>
    %144 = arith.mulf %143, %140 : vector<8x128xf32>
    %145 = arith.mulf %144, %140 : vector<8x128xf32>
    %146 = arith.mulf %145, %140 : vector<8x128xf32>
    %147 = arith.addf %140, %146 : vector<8x128xf32>
    %cst_52 = arith.constant 0.797884583 : f32
    %148 = vector.broadcast %cst_52 : f32 to vector<8x128xf32>
    %149 = arith.mulf %148, %147 : vector<8x128xf32>
    %150 = math.tanh %149 : vector<8x128xf32>
    %cst_53 = arith.constant 1.000000e+00 : f32
    %151 = vector.broadcast %cst_53 : f32 to vector<8x128xf32>
    %152 = arith.addf %151, %150 : vector<8x128xf32>
    %153 = arith.mulf %142, %152 : vector<8x128xf32>
    %c0_54 = arith.constant 0 : index
    %c0_55 = arith.constant 0 : index
    %c0_56 = arith.constant 0 : index
    %154 = vector.load %arg9[%c0_54, %c0_55, %c0_56] : memref<2x128x32xf32, #tpu.memory_space<vmem>>, vector<1x128x32xf32>
    %155 = vector.shape_cast %154 : vector<1x128x32xf32> to vector<128x32xf32>
    %cst_57 = arith.constant dense<0.000000e+00> : vector<8x32xf32>
    %156 = tpu.matmul %153, %155, %cst_57 {dimension_numbers = #tpu.dot_dimension_numbers<[1], [0], [0], [1], [0, 0, 1, 1], [], []>} : vector<8x128xf32>, vector<128x32xf32>, vector<8x32xf32> -> vector<8x32xf32>
    %157 = vector.broadcast %22 : vector<1x32xf32> to vector<8x32xf32>
    %158 = arith.addf %156, %157 : vector<8x32xf32>
    %159 = arith.addf %111, %158 : vector<8x32xf32>
    %c1 = arith.constant 1 : index
    %c0_58 = arith.constant 0 : index
    %c0_59 = arith.constant 0 : index
    %160 = vector.load %arg12[%c1, %c0_58, %c0_59] : memref<2x6x32xf32, #tpu.memory_space<vmem>>, vector<1x6x32xf32>
    %161 = vector.shape_cast %160 : vector<1x6x32xf32> to vector<6x32xf32>
    %162 = vector.extract_strided_slice %161 {offsets = [0, 0], sizes = [1, 32], strides = [1, 1]} : vector<6x32xf32> to vector<1x32xf32>
    %163 = vector.extract_strided_slice %161 {offsets = [1, 0], sizes = [1, 32], strides = [1, 1]} : vector<6x32xf32> to vector<1x32xf32>
    %164 = vector.extract_strided_slice %161 {offsets = [2, 0], sizes = [1, 32], strides = [1, 1]} : vector<6x32xf32> to vector<1x32xf32>
    %165 = vector.extract_strided_slice %161 {offsets = [3, 0], sizes = [1, 32], strides = [1, 1]} : vector<6x32xf32> to vector<1x32xf32>
    %166 = vector.extract_strided_slice %161 {offsets = [4, 0], sizes = [1, 32], strides = [1, 1]} : vector<6x32xf32> to vector<1x32xf32>
    %167 = vector.extract_strided_slice %161 {offsets = [5, 0], sizes = [1, 32], strides = [1, 1]} : vector<6x32xf32> to vector<1x32xf32>
    %cst_60 = arith.constant dense<0.000000e+00> : vector<8xf32>
    %168 = vector.multi_reduction <add>, %159, %cst_60 [1] : vector<8x32xf32> to vector<8xf32>
    %169 = vector.shape_cast %168 : vector<8xf32> to vector<8x1xf32>
    %cst_61 = arith.constant 3.200000e+01 : f32
    %170 = vector.broadcast %cst_61 : f32 to vector<8x1xf32>
    %171 = arith.divf %169, %170 : vector<8x1xf32>
    %172 = vector.broadcast %171 : vector<8x1xf32> to vector<8x32xf32>
    %173 = arith.subf %159, %172 : vector<8x32xf32>
    %174 = arith.mulf %173, %173 : vector<8x32xf32>
    %cst_62 = arith.constant dense<0.000000e+00> : vector<8xf32>
    %175 = vector.multi_reduction <add>, %174, %cst_62 [1] : vector<8x32xf32> to vector<8xf32>
    %176 = vector.shape_cast %175 : vector<8xf32> to vector<8x1xf32>
    %cst_63 = arith.constant 3.200000e+01 : f32
    %177 = vector.broadcast %cst_63 : f32 to vector<8x1xf32>
    %178 = arith.divf %176, %177 : vector<8x1xf32>
    %179 = vector.broadcast %171 : vector<8x1xf32> to vector<8x32xf32>
    %180 = arith.subf %159, %179 : vector<8x32xf32>
    %cst_64 = arith.constant 9.99999974E-6 : f32
    %181 = vector.broadcast %cst_64 : f32 to vector<8x1xf32>
    %182 = arith.addf %178, %181 : vector<8x1xf32>
    %183 = math.rsqrt %182 : vector<8x1xf32>
    %184 = vector.broadcast %183 : vector<8x1xf32> to vector<8x32xf32>
    %185 = arith.mulf %180, %184 : vector<8x32xf32>
    %186 = vector.broadcast %162 : vector<1x32xf32> to vector<8x32xf32>
    %187 = arith.mulf %185, %186 : vector<8x32xf32>
    %188 = vector.broadcast %163 : vector<1x32xf32> to vector<8x32xf32>
    %189 = arith.addf %187, %188 : vector<8x32xf32>
    %c1_65 = arith.constant 1 : index
    %c0_66 = arith.constant 0 : index
    %c0_67 = arith.constant 0 : index
    %190 = vector.load %arg6[%c1_65, %c0_66, %c0_67] : memref<2x32x96xf32, #tpu.memory_space<vmem>>, vector<1x32x96xf32>
    %191 = vector.shape_cast %190 : vector<1x32x96xf32> to vector<32x96xf32>
    %cst_68 = arith.constant dense<0.000000e+00> : vector<8x96xf32>
    %192 = tpu.matmul %189, %191, %cst_68 {dimension_numbers = #tpu.dot_dimension_numbers<[1], [0], [0], [1], [0, 0, 1, 1], [], []>} : vector<8x32xf32>, vector<32x96xf32>, vector<8x96xf32> -> vector<8x96xf32>
    %c1_69 = arith.constant 1 : index
    %c0_70 = arith.constant 0 : index
    %c0_71 = arith.constant 0 : index
    %193 = vector.load %arg10[%c1_69, %c0_70, %c0_71] : memref<2x1x96xf32, #tpu.memory_space<vmem>>, vector<1x1x96xf32>
    %194 = vector.shape_cast %193 : vector<1x1x96xf32> to vector<1x96xf32>
    %195 = vector.broadcast %194 : vector<1x96xf32> to vector<8x96xf32>
    %196 = arith.addf %192, %195 : vector<8x96xf32>
    %197 = vector.extract_strided_slice %196 {offsets = [0, 0], sizes = [8, 8], strides = [1, 1]} : vector<8x96xf32> to vector<8x8xf32>
    %198 = vector.extract_strided_slice %196 {offsets = [0, 8], sizes = [8, 8], strides = [1, 1]} : vector<8x96xf32> to vector<8x8xf32>
    %199 = vector.extract_strided_slice %196 {offsets = [0, 16], sizes = [8, 8], strides = [1, 1]} : vector<8x96xf32> to vector<8x8xf32>
    %200 = vector.extract_strided_slice %196 {offsets = [0, 24], sizes = [8, 8], strides = [1, 1]} : vector<8x96xf32> to vector<8x8xf32>
    %201 = vector.shape_cast %197 : vector<8x8xf32> to vector<1x8x8xf32>
    %202 = vector.shape_cast %198 : vector<8x8xf32> to vector<1x8x8xf32>
    %203 = vector.shape_cast %199 : vector<8x8xf32> to vector<1x8x8xf32>
    %204 = vector.shape_cast %200 : vector<8x8xf32> to vector<1x8x8xf32>
    %205 = tpu.concatenate %201, %202, %203, %204 in 0 : vector<1x8x8xf32>, vector<1x8x8xf32>, vector<1x8x8xf32>, vector<1x8x8xf32> -> vector<4x8x8xf32>
    %206 = vector.extract_strided_slice %196 {offsets = [0, 32], sizes = [8, 8], strides = [1, 1]} : vector<8x96xf32> to vector<8x8xf32>
    %207 = vector.extract_strided_slice %196 {offsets = [0, 40], sizes = [8, 8], strides = [1, 1]} : vector<8x96xf32> to vector<8x8xf32>
    %208 = vector.extract_strided_slice %196 {offsets = [0, 48], sizes = [8, 8], strides = [1, 1]} : vector<8x96xf32> to vector<8x8xf32>
    %209 = vector.extract_strided_slice %196 {offsets = [0, 56], sizes = [8, 8], strides = [1, 1]} : vector<8x96xf32> to vector<8x8xf32>
    %210 = vector.shape_cast %206 : vector<8x8xf32> to vector<1x8x8xf32>
    %211 = vector.shape_cast %207 : vector<8x8xf32> to vector<1x8x8xf32>
    %212 = vector.shape_cast %208 : vector<8x8xf32> to vector<1x8x8xf32>
    %213 = vector.shape_cast %209 : vector<8x8xf32> to vector<1x8x8xf32>
    %214 = tpu.concatenate %210, %211, %212, %213 in 0 : vector<1x8x8xf32>, vector<1x8x8xf32>, vector<1x8x8xf32>, vector<1x8x8xf32> -> vector<4x8x8xf32>
    %215 = vector.extract_strided_slice %196 {offsets = [0, 64], sizes = [8, 8], strides = [1, 1]} : vector<8x96xf32> to vector<8x8xf32>
    %216 = vector.extract_strided_slice %196 {offsets = [0, 72], sizes = [8, 8], strides = [1, 1]} : vector<8x96xf32> to vector<8x8xf32>
    %217 = vector.extract_strided_slice %196 {offsets = [0, 80], sizes = [8, 8], strides = [1, 1]} : vector<8x96xf32> to vector<8x8xf32>
    %218 = vector.extract_strided_slice %196 {offsets = [0, 88], sizes = [8, 8], strides = [1, 1]} : vector<8x96xf32> to vector<8x8xf32>
    %219 = vector.shape_cast %215 : vector<8x8xf32> to vector<1x8x8xf32>
    %220 = vector.shape_cast %216 : vector<8x8xf32> to vector<1x8x8xf32>
    %221 = vector.shape_cast %217 : vector<8x8xf32> to vector<1x8x8xf32>
    %222 = vector.shape_cast %218 : vector<8x8xf32> to vector<1x8x8xf32>
    %223 = tpu.concatenate %219, %220, %221, %222 in 0 : vector<1x8x8xf32>, vector<1x8x8xf32>, vector<1x8x8xf32>, vector<1x8x8xf32> -> vector<4x8x8xf32>
    "tpu.trace_start"() <{level = 10 : i32, message = "hqd,hkd->hqk"}> : () -> ()
    %cst_72 = arith.constant dense<0.000000e+00> : vector<4x8x8xf32>
    %224 = tpu.matmul %205, %214, %cst_72 {dimension_numbers = #tpu.dot_dimension_numbers<[2], [2], [1], [1], [0, 0, 0, 1, 1, 1], [0], [0]>} : vector<4x8x8xf32>, vector<4x8x8xf32>, vector<4x8x8xf32> -> vector<4x8x8xf32>
    "tpu.trace_stop"() : () -> ()
    %cst_73 = arith.constant 0.353553385 : f32
    %225 = vector.broadcast %cst_73 : f32 to vector<4x8x8xf32>
    %226 = arith.mulf %224, %225 : vector<4x8x8xf32>
    %cst_74 = arith.constant -1.000000e+09 : f32
    %227 = vector.shape_cast %14 : vector<1x1x8xi1> to vector<1x1x8xi1>
    %228 = vector.broadcast %227 : vector<1x1x8xi1> to vector<4x8x8xi1>
    %229 = vector.broadcast %cst_74 : f32 to vector<4x8x8xf32>
    %230 = arith.select %228, %229, %226 : vector<4x8x8xi1>, vector<4x8x8xf32>
    %cst_75 = arith.constant dense<0xFF800000> : vector<8x8xf32>
    %231 = vector.multi_reduction <maximumf>, %230, %cst_75 [0] : vector<4x8x8xf32> to vector<8x8xf32>
    %232 = vector.shape_cast %231 : vector<8x8xf32> to vector<1x8x8xf32>
    %233 = vector.broadcast %232 : vector<1x8x8xf32> to vector<4x8x8xf32>
    %234 = arith.subf %230, %233 : vector<4x8x8xf32>
    %235 = math.exp %234 : vector<4x8x8xf32>
    %cst_76 = arith.constant dense<0.000000e+00> : vector<8x8xf32>
    %236 = vector.multi_reduction <add>, %235, %cst_76 [0] : vector<4x8x8xf32> to vector<8x8xf32>
    %237 = vector.shape_cast %236 : vector<8x8xf32> to vector<1x8x8xf32>
    %238 = tpu.reciprocal %237 {approx = true} : vector<1x8x8xf32> -> vector<1x8x8xf32>
    %239 = vector.broadcast %238 : vector<1x8x8xf32> to vector<4x8x8xf32>
    %240 = arith.mulf %235, %239 : vector<4x8x8xf32>
    "tpu.trace_start"() <{level = 10 : i32, message = "hqk,hkd->hqd"}> : () -> ()
    %cst_77 = arith.constant dense<0.000000e+00> : vector<4x8x8xf32>
    %241 = tpu.matmul %240, %223, %cst_77 {dimension_numbers = #tpu.dot_dimension_numbers<[2], [1], [1], [2], [0, 0, 0, 1, 1, 2], [0], [0]>} : vector<4x8x8xf32>, vector<4x8x8xf32>, vector<4x8x8xf32> -> vector<4x8x8xf32>
    "tpu.trace_stop"() : () -> ()
    %242 = vector.extract_strided_slice %241 {offsets = [0, 0, 0], sizes = [1, 8, 8], strides = [1, 1, 1]} : vector<4x8x8xf32> to vector<1x8x8xf32>
    %243 = vector.shape_cast %242 : vector<1x8x8xf32> to vector<8x8xf32>
    %244 = vector.extract_strided_slice %241 {offsets = [1, 0, 0], sizes = [1, 8, 8], strides = [1, 1, 1]} : vector<4x8x8xf32> to vector<1x8x8xf32>
    %245 = vector.shape_cast %244 : vector<1x8x8xf32> to vector<8x8xf32>
    %246 = vector.extract_strided_slice %241 {offsets = [2, 0, 0], sizes = [1, 8, 8], strides = [1, 1, 1]} : vector<4x8x8xf32> to vector<1x8x8xf32>
    %247 = vector.shape_cast %246 : vector<1x8x8xf32> to vector<8x8xf32>
    %248 = vector.extract_strided_slice %241 {offsets = [3, 0, 0], sizes = [1, 8, 8], strides = [1, 1, 1]} : vector<4x8x8xf32> to vector<1x8x8xf32>
    %249 = vector.shape_cast %248 : vector<1x8x8xf32> to vector<8x8xf32>
    %250 = tpu.concatenate %243, %245, %247, %249 in 1 : vector<8x8xf32>, vector<8x8xf32>, vector<8x8xf32>, vector<8x8xf32> -> vector<8x32xf32>
    %c1_78 = arith.constant 1 : index
    %c0_79 = arith.constant 0 : index
    %c0_80 = arith.constant 0 : index
    %251 = vector.load %arg7[%c1_78, %c0_79, %c0_80] : memref<2x32x32xf32, #tpu.memory_space<vmem>>, vector<1x32x32xf32>
    %252 = vector.shape_cast %251 : vector<1x32x32xf32> to vector<32x32xf32>
    %cst_81 = arith.constant dense<0.000000e+00> : vector<8x32xf32>
    %253 = tpu.matmul %250, %252, %cst_81 {dimension_numbers = #tpu.dot_dimension_numbers<[1], [0], [0], [1], [0, 0, 1, 1], [], []>} : vector<8x32xf32>, vector<32x32xf32>, vector<8x32xf32> -> vector<8x32xf32>
    %254 = vector.broadcast %166 : vector<1x32xf32> to vector<8x32xf32>
    %255 = arith.addf %253, %254 : vector<8x32xf32>
    %256 = arith.addf %159, %255 : vector<8x32xf32>
    %cst_82 = arith.constant dense<0.000000e+00> : vector<8xf32>
    %257 = vector.multi_reduction <add>, %256, %cst_82 [1] : vector<8x32xf32> to vector<8xf32>
    %258 = vector.shape_cast %257 : vector<8xf32> to vector<8x1xf32>
    %cst_83 = arith.constant 3.200000e+01 : f32
    %259 = vector.broadcast %cst_83 : f32 to vector<8x1xf32>
    %260 = arith.divf %258, %259 : vector<8x1xf32>
    %261 = vector.broadcast %260 : vector<8x1xf32> to vector<8x32xf32>
    %262 = arith.subf %256, %261 : vector<8x32xf32>
    %263 = arith.mulf %262, %262 : vector<8x32xf32>
    %cst_84 = arith.constant dense<0.000000e+00> : vector<8xf32>
    %264 = vector.multi_reduction <add>, %263, %cst_84 [1] : vector<8x32xf32> to vector<8xf32>
    %265 = vector.shape_cast %264 : vector<8xf32> to vector<8x1xf32>
    %cst_85 = arith.constant 3.200000e+01 : f32
    %266 = vector.broadcast %cst_85 : f32 to vector<8x1xf32>
    %267 = arith.divf %265, %266 : vector<8x1xf32>
    %268 = vector.broadcast %260 : vector<8x1xf32> to vector<8x32xf32>
    %269 = arith.subf %256, %268 : vector<8x32xf32>
    %cst_86 = arith.constant 9.99999974E-6 : f32
    %270 = vector.broadcast %cst_86 : f32 to vector<8x1xf32>
    %271 = arith.addf %267, %270 : vector<8x1xf32>
    %272 = math.rsqrt %271 : vector<8x1xf32>
    %273 = vector.broadcast %272 : vector<8x1xf32> to vector<8x32xf32>
    %274 = arith.mulf %269, %273 : vector<8x32xf32>
    %275 = vector.broadcast %164 : vector<1x32xf32> to vector<8x32xf32>
    %276 = arith.mulf %274, %275 : vector<8x32xf32>
    %277 = vector.broadcast %165 : vector<1x32xf32> to vector<8x32xf32>
    %278 = arith.addf %276, %277 : vector<8x32xf32>
    %c1_87 = arith.constant 1 : index
    %c0_88 = arith.constant 0 : index
    %c0_89 = arith.constant 0 : index
    %279 = vector.load %arg8[%c1_87, %c0_88, %c0_89] : memref<2x32x128xf32, #tpu.memory_space<vmem>>, vector<1x32x128xf32>
    %280 = vector.shape_cast %279 : vector<1x32x128xf32> to vector<32x128xf32>
    %cst_90 = arith.constant dense<0.000000e+00> : vector<8x128xf32>
    %281 = tpu.matmul %278, %280, %cst_90 {dimension_numbers = #tpu.dot_dimension_numbers<[1], [0], [0], [1], [0, 0, 1, 1], [], []>} : vector<8x32xf32>, vector<32x128xf32>, vector<8x128xf32> -> vector<8x128xf32>
    %c1_91 = arith.constant 1 : index
    %c0_92 = arith.constant 0 : index
    %c0_93 = arith.constant 0 : index
    %282 = vector.load %arg11[%c1_91, %c0_92, %c0_93] : memref<2x1x128xf32, #tpu.memory_space<vmem>>, vector<1x1x128xf32>
    %283 = vector.shape_cast %282 : vector<1x1x128xf32> to vector<1x128xf32>
    %284 = vector.broadcast %283 : vector<1x128xf32> to vector<8x128xf32>
    %285 = arith.addf %281, %284 : vector<8x128xf32>
    %cst_94 = arith.constant 5.000000e-01 : f32
    %286 = vector.broadcast %cst_94 : f32 to vector<8x128xf32>
    %287 = arith.mulf %286, %285 : vector<8x128xf32>
    %cst_95 = arith.constant 4.471500e-02 : f32
    %288 = vector.broadcast %cst_95 : f32 to vector<8x128xf32>
    %289 = arith.mulf %288, %285 : vector<8x128xf32>
    %290 = arith.mulf %289, %285 : vector<8x128xf32>
    %291 = arith.mulf %290, %285 : vector<8x128xf32>
    %292 = arith.addf %285, %291 : vector<8x128xf32>
    %cst_96 = arith.constant 0.797884583 : f32
    %293 = vector.broadcast %cst_96 : f32 to vector<8x128xf32>
    %294 = arith.mulf %293, %292 : vector<8x128xf32>
    %295 = math.tanh %294 : vector<8x128xf32>
    %cst_97 = arith.constant 1.000000e+00 : f32
    %296 = vector.broadcast %cst_97 : f32 to vector<8x128xf32>
    %297 = arith.addf %296, %295 : vector<8x128xf32>
    %298 = arith.mulf %287, %297 : vector<8x128xf32>
    %c1_98 = arith.constant 1 : index
    %c0_99 = arith.constant 0 : index
    %c0_100 = arith.constant 0 : index
    %299 = vector.load %arg9[%c1_98, %c0_99, %c0_100] : memref<2x128x32xf32, #tpu.memory_space<vmem>>, vector<1x128x32xf32>
    %300 = vector.shape_cast %299 : vector<1x128x32xf32> to vector<128x32xf32>
    %cst_101 = arith.constant dense<0.000000e+00> : vector<8x32xf32>
    %301 = tpu.matmul %298, %300, %cst_101 {dimension_numbers = #tpu.dot_dimension_numbers<[1], [0], [0], [1], [0, 0, 1, 1], [], []>} : vector<8x128xf32>, vector<128x32xf32>, vector<8x32xf32> -> vector<8x32xf32>
    %302 = vector.broadcast %167 : vector<1x32xf32> to vector<8x32xf32>
    %303 = arith.addf %301, %302 : vector<8x32xf32>
    %304 = arith.addf %256, %303 : vector<8x32xf32>
    %c0_102 = arith.constant 0 : index
    %c0_103 = arith.constant 0 : index
    %c0_104 = arith.constant 0 : index
    %305 = vector.load %arg13[%c0_102, %c0_103, %c0_104] : memref<1x8x32xf32, #tpu.memory_space<vmem>>, vector<1x8x32xf32>
    %306 = vector.shape_cast %305 : vector<1x8x32xf32> to vector<8x32xf32>
    %307 = vector.shape_cast %304 : vector<8x32xf32> to vector<1x8x32xf32>
    tpu.vector_store %arg13[%c0_102, %c0_103, %c0_104], %307 {strides = array<i32>} : memref<1x8x32xf32, #tpu.memory_space<vmem>>, vector<1x8x32xf32>,
    return
  }
  func.func @transform_0(%arg0: i32) -> (i32, i32, i32) {
    %c0_i32 = arith.constant 0 : i32
    %c0_i32_0 = arith.constant 0 : i32
    %c0_i32_1 = arith.constant 0 : i32
    return %arg0, %c0_i32, %c0_i32_0 : i32, i32, i32
  }
  func.func @transform_1(%arg0: i32) -> (i32, i32, i32) {
    %c0_i32 = arith.constant 0 : i32
    %c0_i32_0 = arith.constant 0 : i32
    %c0_i32_1 = arith.constant 0 : i32
    return %arg0, %c0_i32, %c0_i32_0 : i32, i32, i32
  }
  func.func @transform_2(%arg0: i32) -> (i32, i32, i32) {
    %c0_i32 = arith.constant 0 : i32
    %c0_i32_0 = arith.constant 0 : i32
    %c0_i32_1 = arith.constant 0 : i32
    return %arg0, %c0_i32, %c0_i32_0 : i32, i32, i32
  }
  func.func @transform_3(%arg0: i32) -> (i32, i32) {
    %c0_i32 = arith.constant 0 : i32
    %c0_i32_0 = arith.constant 0 : i32
    %c0_i32_1 = arith.constant 0 : i32
    return %c0_i32, %c0_i32_0 : i32, i32
  }
  func.func @transform_4(%arg0: i32) -> (i32, i32) {
    %c0_i32 = arith.constant 0 : i32
    %c0_i32_0 = arith.constant 0 : i32
    %c0_i32_1 = arith.constant 0 : i32
    return %c0_i32, %c0_i32_0 : i32, i32
  }
  func.func @transform_5(%arg0: i32) -> (i32, i32, i32) {
    %c0_i32 = arith.constant 0 : i32
    %c0_i32_0 = arith.constant 0 : i32
    %c0_i32_1 = arith.constant 0 : i32
    %c0_i32_2 = arith.constant 0 : i32
    return %c0_i32, %c0_i32_0, %c0_i32_1 : i32, i32, i32
  }
  func.func @transform_6(%arg0: i32) -> (i32, i32, i32) {
    %c0_i32 = arith.constant 0 : i32
    %c0_i32_0 = arith.constant 0 : i32
    %c0_i32_1 = arith.constant 0 : i32
    %c0_i32_2 = arith.constant 0 : i32
    return %c0_i32, %c0_i32_0, %c0_i32_1 : i32, i32, i32
  }
  func.func @transform_7(%arg0: i32) -> (i32, i32, i32) {
    %c0_i32 = arith.constant 0 : i32
    %c0_i32_0 = arith.constant 0 : i32
    %c0_i32_1 = arith.constant 0 : i32
    %c0_i32_2 = arith.constant 0 : i32
    return %c0_i32, %c0_i32_0, %c0_i32_1 : i32, i32, i32
  }
  func.func @transform_8(%arg0: i32) -> (i32, i32, i32) {
    %c0_i32 = arith.constant 0 : i32
    %c0_i32_0 = arith.constant 0 : i32
    %c0_i32_1 = arith.constant 0 : i32
    %c0_i32_2 = arith.constant 0 : i32
    return %c0_i32, %c0_i32_0, %c0_i32_1 : i32, i32, i32
  }
  func.func @transform_9(%arg0: i32) -> (i32, i32, i32) {
    %c0_i32 = arith.constant 0 : i32
    %c0_i32_0 = arith.constant 0 : i32
    %c0_i32_1 = arith.constant 0 : i32
    %c0_i32_2 = arith.constant 0 : i32
    return %c0_i32, %c0_i32_0, %c0_i32_1 : i32, i32, i32
  }
  func.func @transform_10(%arg0: i32) -> (i32, i32, i32) {
    %c0_i32 = arith.constant 0 : i32
    %c0_i32_0 = arith.constant 0 : i32
    %c0_i32_1 = arith.constant 0 : i32
    %c0_i32_2 = arith.constant 0 : i32
    return %c0_i32, %c0_i32_0, %c0_i32_1 : i32, i32, i32
  }
  func.func @transform_11(%arg0: i32) -> (i32, i32, i32) {
    %c0_i32 = arith.constant 0 : i32
    %c0_i32_0 = arith.constant 0 : i32
    %c0_i32_1 = arith.constant 0 : i32
    %c0_i32_2 = arith.constant 0 : i32
    return %c0_i32, %c0_i32_0, %c0_i32_1 : i32, i32, i32
  }
  func.func @transform_12(%arg0: i32) -> (i32, i32, i32) {
    %c0_i32 = arith.constant 0 : i32
    %c0_i32_0 = arith.constant 0 : i32
    %c0_i32_1 = arith.constant 0 : i32
    return %arg0, %c0_i32, %c0_i32_0 : i32, i32, i32
  }
}

</mosaic_0001>

<llo_original>
// kernel: tpu_custom_call.1
$region0: #{tpu_custom_call.1}
  #allocation0 [shape = 'u32[]', space=smem, size = 0x4, offset = 0x4, fixed_abs, tag = 'smem constant byte address 0x4 - core index']
  #allocation1 [shape = 'u32[144,128]{1,0:T(1,128)}', space=vmem, size = 0x12000, scoped, tag = 'internal scratch']
  %s0 = inlined_call_operand.vmem [shape: f32[2,8,10], index: 0, kind: input, shape index: {}]
  %s1 = inlined_call_operand.vmem [shape: f32[2,8,16], index: 1, kind: input, shape index: {}]
  %s2 = inlined_call_operand.vmem [shape: f32[2,1,8], index: 2, kind: input, shape index: {}]
  %s3 = inlined_call_operand.vmem [shape: f32[10,16], index: 3, kind: input, shape index: {}]
  %s4 = inlined_call_operand.vmem [shape: f32[1,16], index: 4, kind: input, shape index: {}]
  %s5 = inlined_call_operand.vmem [shape: f32[2,32,96], index: 5, kind: input, shape index: {}]
  %s6 = inlined_call_operand.vmem [shape: f32[2,32,32], index: 6, kind: input, shape index: {}]
  %s7 = inlined_call_operand.vmem [shape: f32[2,32,128], index: 7, kind: input, shape index: {}]
  %s8 = inlined_call_operand.vmem [shape: f32[2,128,32], index: 8, kind: input, shape index: {}]
  %s9 = inlined_call_operand.vmem [shape: f32[2,1,96], index: 9, kind: input, shape index: {}]
  %s10 = inlined_call_operand.vmem [shape: f32[2,1,128], index: 10, kind: input, shape index: {}]
  %s11 = inlined_call_operand.vmem [shape: f32[2,6,32], index: 11, kind: input, shape index: {}]
  %s12 = inlined_call_operand.hbm [shape: f32[2,8,32], index: 12, kind: output, shape index: {}]
  %s13 = sld [smem:[#allocation0]]
  $region81: #{tpu_custom_call.1} parent=0
    _
  %s15 = ssub.s32 1, %s13
  %s16 = scalar_select 0, %s15, %s13
  $region1: #{tpu_custom_call.1} parent=0
    #allocation2 [shape = 'u8[8192]{0}', space=vmem, size = 0x2000, scoped, tag = 'output window, operand 0']
    #allocation3 [shape = 's32[2]{0}', space=sflag, size = 0x8, scoped, tag = 'scoped memory for tpu_custom_call.1']
    %17 = vsyncpa [#allocation3], 0
    %s18 = scalar_lea.sflag [#allocation3], 1
    %19 = vsyncpa %s18, 0
    loop: start=0, step=1, limit=4
    $region2: #{tpu_custom_call.1} parent=1 // loop_pre_header
      _
    $region3: #{tpu_custom_call.1} parent=1 // loop_header
      %s21 = sphi 0, %s25
      %p22 = scmp.ge.s32.totalorder %s21, 4
      %s31 = sphi 0, %s33
      %s34 = sphi 0, %s31
      %s35 = sphi 0, %s34
      %s51 = sphi 0, %s35
      %s57 = sphi 0, %s59
      %s60 = sphi 0, %s57
      %s61 = sphi 0, %s60
      %s77 = sphi 0, %s61
      %s83 = sphi 0, %s85
      %s86 = sphi 0, %s83
      %s87 = sphi 0, %s86
      %s103 = sphi 0, %s87
      %s107 = sphi 0, %s107
      %s109 = sphi 0, %s107
      %s110 = sphi 0, %s109
      %s124 = sphi 0, %s110
      %s128 = sphi 0, %s128
      %s130 = sphi 0, %s128
      %s131 = sphi 0, %s130
      %s145 = sphi 0, %s131
      %s149 = sphi 0, %s149
      %s151 = sphi 0, %s149
      %s152 = sphi 0, %s151
      %s166 = sphi 0, %s152
      %s170 = sphi 0, %s170
      %s172 = sphi 0, %s170
      %s173 = sphi 0, %s172
      %s187 = sphi 0, %s173
      %s191 = sphi 0, %s191
      %s193 = sphi 0, %s191
      %s194 = sphi 0, %s193
      %s208 = sphi 0, %s194
      %s212 = sphi 0, %s212
      %s214 = sphi 0, %s212
      %s215 = sphi 0, %s214
      %s229 = sphi 0, %s215
      %s233 = sphi 0, %s233
      %s235 = sphi 0, %s233
      %s236 = sphi 0, %s235
      %s250 = sphi 0, %s236
      %s254 = sphi 0, %s254
      %s256 = sphi 0, %s254
      %s257 = sphi 0, %s256
      %s271 = sphi 0, %s257
      %s275 = sphi 0, %s275
      %s277 = sphi 0, %s275
      %s278 = sphi 0, %s277
      %s292 = sphi 0, %s278
      %s298 = sphi 0, %s300
      %s301 = sphi 0, %s298
      %s302 = sphi 0, %s301
      %s318 = sphi 0, %s302
    $region4: #{tpu_custom_call.1} parent=1 // loop_header_branch
      %24 = sbr.rel (%p22) target = $region8
    $region5: #{tpu_custom_call.1} parent=1 // loop_body
      %s26 = ssub.s32 %s21, 1
      %s27 = ssub.s32 %s21, 2
      %s28 = sadd.s32 %s21, 1
      %s29 = ssub.s32 %s21, %s28
      %p30 = scmp.eq.s32.totalorder %s29, 0
      %s32 = sadd.s32 %s31, 1
      %s33 = scalar_select %p30, %s31, %s32
      %p36 = pneg %p30
      %p37 = scmp.eq.s32.totalorder %s21, 1
      %p38 = por %p36, %p37
      %p39 = scmp.ne.s32.totalorder %s31, %s34
      %p40 = scmp.eq.s32.totalorder %s21, 0
      %p41 = por %p39, %p40
      %p42 = scmp.ne.s32.totalorder %s31, %s34
      %p43 = scmp.eq.s32.totalorder %s26, 1
      %p44 = por %p42, %p43
      %p45 = scmp.ne.s32.totalorder %s34, %s35
      %p46 = scmp.eq.s32.totalorder %s26, 0
      %p47 = por %p45, %p46
      %p48 = scmp.ne.s32.totalorder %s34, %s35
      %p49 = scmp.eq.s32.totalorder %s27, 1
      %p50 = por %p48, %p49
      %p52 = scmp.ne.s32.totalorder %s35, %s51
      %p53 = scmp.eq.s32.totalorder %s27, 0
      %p54 = por %p52, %p53
      %s55 = ssub.s32 %s21, %s28
      %p56 = scmp.eq.s32.totalorder %s55, 0
      %s58 = sadd.s32 %s57, 1
      %s59 = scalar_select %p56, %s57, %s58
      %p62 = pneg %p56
      %p63 = scmp.eq.s32.totalorder %s21, 1
      %p64 = por %p62, %p63
      %p65 = scmp.ne.s32.totalorder %s57, %s60
      %p66 = scmp.eq.s32.totalorder %s21, 0
      %p67 = por %p65, %p66
      %p68 = scmp.ne.s32.totalorder %s57, %s60
      %p69 = scmp.eq.s32.totalorder %s26, 1
      %p70 = por %p68, %p69
      %p71 = scmp.ne.s32.totalorder %s60, %s61
      %p72 = scmp.eq.s32.totalorder %s26, 0
      %p73 = por %p71, %p72
      %p74 = scmp.ne.s32.totalorder %s60, %s61
      %p75 = scmp.eq.s32.totalorder %s27, 1
      %p76 = por %p74, %p75
      %p78 = scmp.ne.s32.totalorder %s61, %s77
      %p79 = scmp.eq.s32.totalorder %s27, 0
      %p80 = por %p78, %p79
      %s81 = ssub.s32 %s21, %s28
      %p82 = scmp.eq.s32.totalorder %s81, 0
      %s84 = sadd.s32 %s83, 1
      %s85 = scalar_select %p82, %s83, %s84
      %p88 = pneg %p82
      %p89 = scmp.eq.s32.totalorder %s21, 1
      %p90 = por %p88, %p89
      %p91 = scmp.ne.s32.totalorder %s83, %s86
      %p92 = scmp.eq.s32.totalorder %s21, 0
      %p93 = por %p91, %p92
      %p94 = scmp.ne.s32.totalorder %s83, %s86
      %p95 = scmp.eq.s32.totalorder %s26, 1
      %p96 = por %p94, %p95
      %p97 = scmp.ne.s32.totalorder %s86, %s87
      %p98 = scmp.eq.s32.totalorder %s26, 0
      %p99 = por %p97, %p98
      %p100 = scmp.ne.s32.totalorder %s86, %s87
      %p101 = scmp.eq.s32.totalorder %s27, 1
      %p102 = por %p100, %p101
      %p104 = scmp.ne.s32.totalorder %s87, %s103
      %p105 = scmp.eq.s32.totalorder %s27, 0
      %p106 = por %p104, %p105
      %s108 = sadd.s32 %s107, 1
      %p111 = scmp.eq.s32.totalorder %s21, 1
      %p112 = scmp.ne.s32.totalorder %s107, %s109
      %p113 = scmp.eq.s32.totalorder %s21, 0
      %p114 = por %p112, %p113
      %p115 = scmp.ne.s32.totalorder %s107, %s109
      %p116 = scmp.eq.s32.totalorder %s26, 1
      %p117 = por %p115, %p116
      %p118 = scmp.ne.s32.totalorder %s109, %s110
      %p119 = scmp.eq.s32.totalorder %s26, 0
      %p120 = por %p118, %p119
      %p121 = scmp.ne.s32.totalorder %s109, %s110
      %p122 = scmp.eq.s32.totalorder %s27, 1
      %p123 = por %p121, %p122
      %p125 = scmp.ne.s32.totalorder %s110, %s124
      %p126 = scmp.eq.s32.totalorder %s27, 0
      %p127 = por %p125, %p126
      %s129 = sadd.s32 %s128, 1
      %p132 = scmp.eq.s32.totalorder %s21, 1
      %p133 = scmp.ne.s32.totalorder %s128, %s130
      %p134 = scmp.eq.s32.totalorder %s21, 0
      %p135 = por %p133, %p134
      %p136 = scmp.ne.s32.totalorder %s128, %s130
      %p137 = scmp.eq.s32.totalorder %s26, 1
      %p138 = por %p136, %p137
      %p139 = scmp.ne.s32.totalorder %s130, %s131
      %p140 = scmp.eq.s32.totalorder %s26, 0
      %p141 = por %p139, %p140
      %p142 = scmp.ne.s32.totalorder %s130, %s131
      %p143 = scmp.eq.s32.totalorder %s27, 1
      %p144 = por %p142, %p143
      %p146 = scmp.ne.s32.totalorder %s131, %s145
      %p147 = scmp.eq.s32.totalorder %s27, 0
      %p148 = por %p146, %p147
      %s150 = sadd.s32 %s149, 1
      %p153 = scmp.eq.s32.totalorder %s21, 1
      %p154 = scmp.ne.s32.totalorder %s149, %s151
      %p155 = scmp.eq.s32.totalorder %s21, 0
      %p156 = por %p154, %p155
      %p157 = scmp.ne.s32.totalorder %s149, %s151
      %p158 = scmp.eq.s32.totalorder %s26, 1
      %p159 = por %p157, %p158
      %p160 = scmp.ne.s32.totalorder %s151, %s152
      %p161 = scmp.eq.s32.totalorder %s26, 0
      %p162 = por %p160, %p161
      %p163 = scmp.ne.s32.totalorder %s151, %s152
      %p164 = scmp.eq.s32.totalorder %s27, 1
      %p165 = por %p163, %p164
      %p167 = scmp.ne.s32.totalorder %s152, %s166
      %p168 = scmp.eq.s32.totalorder %s27, 0
      %p169 = por %p167, %p168
      %s171 = sadd.s32 %s170, 1
      %p174 = scmp.eq.s32.totalorder %s21, 1
      %p175 = scmp.ne.s32.totalorder %s170, %s172
      %p176 = scmp.eq.s32.totalorder %s21, 0
      %p177 = por %p175, %p176
      %p178 = scmp.ne.s32.totalorder %s170, %s172
      %p179 = scmp.eq.s32.totalorder %s26, 1
      %p180 = por %p178, %p179
      %p181 = scmp.ne.s32.totalorder %s172, %s173
      %p182 = scmp.eq.s32.totalorder %s26, 0
      %p183 = por %p181, %p182
      %p184 = scmp.ne.s32.totalorder %s172, %s173
      %p185 = scmp.eq.s32.totalorder %s27, 1
      %p186 = por %p184, %p185
      %p188 = scmp.ne.s32.totalorder %s173, %s187
      %p189 = scmp.eq.s32.totalorder %s27, 0
      %p190 = por %p188, %p189
      %s192 = sadd.s32 %s191, 1
      %p195 = scmp.eq.s32.totalorder %s21, 1
      %p196 = scmp.ne.s32.totalorder %s191, %s193
      %p197 = scmp.eq.s32.totalorder %s21, 0
      %p198 = por %p196, %p197
      %p199 = scmp.ne.s32.totalorder %s191, %s193
      %p200 = scmp.eq.s32.totalorder %s26, 1
      %p201 = por %p199, %p200
      %p202 = scmp.ne.s32.totalorder %s193, %s194
      %p203 = scmp.eq.s32.totalorder %s26, 0
      %p204 = por %p202, %p203
      %p205 = scmp.ne.s32.totalorder %s193, %s194
      %p206 = scmp.eq.s32.totalorder %s27, 1
      %p207 = por %p205, %p206
      %p209 = scmp.ne.s32.totalorder %s194, %s208
      %p210 = scmp.eq.s32.totalorder %s27, 0
      %p211 = por %p209, %p210
      %s213 = sadd.s32 %s212, 1
      %p216 = scmp.eq.s32.totalorder %s21, 1
      %p217 = scmp.ne.s32.totalorder %s212, %s214
      %p218 = scmp.eq.s32.totalorder %s21, 0
      %p219 = por %p217, %p218
      %p220 = scmp.ne.s32.totalorder %s212, %s214
      %p221 = scmp.eq.s32.totalorder %s26, 1
      %p222 = por %p220, %p221
      %p223 = scmp.ne.s32.totalorder %s214, %s215
      %p224 = scmp.eq.s32.totalorder %s26, 0
      %p225 = por %p223, %p224
      %p226 = scmp.ne.s32.totalorder %s214, %s215
      %p227 = scmp.eq.s32.totalorder %s27, 1
      %p228 = por %p226, %p227
      %p230 = scmp.ne.s32.totalorder %s215, %s229
      %p231 = scmp.eq.s32.totalorder %s27, 0
      %p232 = por %p230, %p231
      %s234 = sadd.s32 %s233, 1
      %p237 = scmp.eq.s32.totalorder %s21, 1
      %p238 = scmp.ne.s32.totalorder %s233, %s235
      %p239 = scmp.eq.s32.totalorder %s21, 0
      %p240 = por %p238, %p239
      %p241 = scmp.ne.s32.totalorder %s233, %s235
      %p242 = scmp.eq.s32.totalorder %s26, 1
      %p243 = por %p241, %p242
      %p244 = scmp.ne.s32.totalorder %s235, %s236
      %p245 = scmp.eq.s32.totalorder %s26, 0
      %p246 = por %p244, %p245
      %p247 = scmp.ne.s32.totalorder %s235, %s236
      %p248 = scmp.eq.s32.totalorder %s27, 1
      %p249 = por %p247, %p248
      %p251 = scmp.ne.s32.totalorder %s236, %s250
      %p252 = scmp.eq.s32.totalorder %s27, 0
      %p253 = por %p251, %p252
      %s255 = sadd.s32 %s254, 1
      %p258 = scmp.eq.s32.totalorder %s21, 1
      %p259 = scmp.ne.s32.totalorder %s254, %s256
      %p260 = scmp.eq.s32.totalorder %s21, 0
      %p261 = por %p259, %p260
      %p262 = scmp.ne.s32.totalorder %s254, %s256
      %p263 = scmp.eq.s32.totalorder %s26, 1
      %p264 = por %p262, %p263
      %p265 = scmp.ne.s32.totalorder %s256, %s257
      %p266 = scmp.eq.s32.totalorder %s26, 0
      %p267 = por %p265, %p266
      %p268 = scmp.ne.s32.totalorder %s256, %s257
      %p269 = scmp.eq.s32.totalorder %s27, 1
      %p270 = por %p268, %p269
      %p272 = scmp.ne.s32.totalorder %s257, %s271
      %p273 = scmp.eq.s32.totalorder %s27, 0
      %p274 = por %p272, %p273
      %s276 = sadd.s32 %s275, 1
      %p279 = scmp.eq.s32.totalorder %s21, 1
      %p280 = scmp.ne.s32.totalorder %s275, %s277
      %p281 = scmp.eq.s32.totalorder %s21, 0
      %p282 = por %p280, %p281
      %p283 = scmp.ne.s32.totalorder %s275, %s277
      %p284 = scmp.eq.s32.totalorder %s26, 1
      %p285 = por %p283, %p284
      %p286 = scmp.ne.s32.totalorder %s277, %s278
      %p287 = scmp.eq.s32.totalorder %s26, 0
      %p288 = por %p286, %p287
      %p289 = scmp.ne.s32.totalorder %s277, %s278
      %p290 = scmp.eq.s32.totalorder %s27, 1
      %p291 = por %p289, %p290
      %p293 = scmp.ne.s32.totalorder %s278, %s292
      %p294 = scmp.eq.s32.totalorder %s27, 0
      %p295 = por %p293, %p294
      %s296 = ssub.s32 %s21, %s28
      %p297 = scmp.eq.s32.totalorder %s296, 0
      %s299 = sadd.s32 %s298, 1
      %s300 = scalar_select %p297, %s298, %s299
      %p303 = pneg %p297
      %p304 = scmp.eq.s32.totalorder %s21, 1
      %p305 = por %p303, %p304
      %p306 = scmp.ne.s32.totalorder %s298, %s301
      %p307 = scmp.eq.s32.totalorder %s21, 0
      %p308 = por %p306, %p307
      %p309 = scmp.ne.s32.totalorder %s298, %s301
      %p310 = scmp.eq.s32.totalorder %s26, 1
      %p311 = por %p309, %p310
      %p312 = scmp.ne.s32.totalorder %s301, %s302
      %p313 = scmp.eq.s32.totalorder %s26, 0
      %p314 = por %p312, %p313
      %p315 = scmp.ne.s32.totalorder %s301, %s302
      %p316 = scmp.eq.s32.totalorder %s27, 1
      %p317 = por %p315, %p316
      %p319 = scmp.ne.s32.totalorder %s302, %s318
      %p320 = scmp.eq.s32.totalorder %s27, 0
      %p321 = por %p319, %p320
      %p322 = scmp.le.s32.totalorder 1, %s21
      %p323 = scmp.lt.s32.totalorder %s21, 3
      %p324 = pnand %p322, %p323
      %p325 = pneg %p324
      // Predicated region
      $region9: #{tpu_custom_call.1} parent=5 // pred_check
        _
      $region10: #{tpu_custom_call.1} parent=5 // pred_check_branch
        %327 = sbr.rel (%p324) target = $region12
      $region11: #{tpu_custom_call.1} parent=5 // pred_region
        %s328 = ssub.s32 %s21, 1
        // Predicated region
        $region13: #{tpu_custom_call.1} parent=11 // pred_check
          %p329 = pneg %p120
        $region14: #{tpu_custom_call.1} parent=11 // pred_check_branch
          %331 = sbr.rel (%p329) target = $region16
        $region15: #{tpu_custom_call.1} parent=11 // pred_region
          _
        $region16: #{tpu_custom_call.1} parent=11 // pred_fallthru
          _
        // Predicated region
        $region17: #{tpu_custom_call.1} parent=11 // pred_check
          %p332 = pneg %p141
        $region18: #{tpu_custom_call.1} parent=11 // pred_check_branch
          %334 = sbr.rel (%p332) target = $region20
        $region19: #{tpu_custom_call.1} parent=11 // pred_region
          _
        $region20: #{tpu_custom_call.1} parent=11 // pred_fallthru
          _
        // Predicated region
        $region21: #{tpu_custom_call.1} parent=11 // pred_check
          %p335 = pneg %p162
        $region22: #{tpu_custom_call.1} parent=11 // pred_check_branch
          %337 = sbr.rel (%p335) target = $region24
        $region23: #{tpu_custom_call.1} parent=11 // pred_region
          _
        $region24: #{tpu_custom_call.1} parent=11 // pred_fallthru
          _
        // Predicated region
        $region25: #{tpu_custom_call.1} parent=11 // pred_check
          %p338 = pneg %p183
        $region26: #{tpu_custom_call.1} parent=11 // pred_check_branch
          %340 = sbr.rel (%p338) target = $region28
        $region27: #{tpu_custom_call.1} parent=11 // pred_region
          _
        $region28: #{tpu_custom_call.1} parent=11 // pred_fallthru
          _
        // Predicated region
        $region29: #{tpu_custom_call.1} parent=11 // pred_check
          %p341 = pneg %p204
        $region30: #{tpu_custom_call.1} parent=11 // pred_check_branch
          %343 = sbr.rel (%p341) target = $region32
        $region31: #{tpu_custom_call.1} parent=11 // pred_region
          _
        $region32: #{tpu_custom_call.1} parent=11 // pred_fallthru
          _
        // Predicated region
        $region33: #{tpu_custom_call.1} parent=11 // pred_check
          %p344 = pneg %p225
        $region34: #{tpu_custom_call.1} parent=11 // pred_check_branch
          %346 = sbr.rel (%p344) target = $region36
        $region35: #{tpu_custom_call.1} parent=11 // pred_region
          _
        $region36: #{tpu_custom_call.1} parent=11 // pred_fallthru
          _
        // Predicated region
        $region37: #{tpu_custom_call.1} parent=11 // pred_check
          %p347 = pneg %p246
        $region38: #{tpu_custom_call.1} parent=11 // pred_check_branch
          %349 = sbr.rel (%p347) target = $region40
        $region39: #{tpu_custom_call.1} parent=11 // pred_region
          _
        $region40: #{tpu_custom_call.1} parent=11 // pred_fallthru
          _
        // Predicated region
        $region41: #{tpu_custom_call.1} parent=11 // pred_check
          %p350 = pneg %p267
        $region42: #{tpu_custom_call.1} parent=11 // pred_check_branch
          %352 = sbr.rel (%p350) target = $region44
        $region43: #{tpu_custom_call.1} parent=11 // pred_region
          _
        $region44: #{tpu_custom_call.1} parent=11 // pred_fallthru
          _
        // Predicated region
        $region45: #{tpu_custom_call.1} parent=11 // pred_check
          %p353 = pneg %p288
        $region46: #{tpu_custom_call.1} parent=11 // pred_check_branch
          %355 = sbr.rel (%p353) target = $region48
        $region47: #{tpu_custom_call.1} parent=11 // pred_region
          _
        $region48: #{tpu_custom_call.1} parent=11 // pred_fallthru
          _
      $region12: #{tpu_custom_call.1} parent=5 // pred_fallthru
        _
      %p356 = scmp.lt.s32.totalorder %s21, 2
      // Predicated region
      $region49: #{tpu_custom_call.1} parent=5 // pred_check
        %p357 = pneg %p356
      $region50: #{tpu_custom_call.1} parent=5 // pred_check_branch
        %359 = sbr.rel (%p357) target = $region52
      $region51: #{tpu_custom_call.1} parent=5 // pred_region
        // Predicated region
        $region53: #{tpu_custom_call.1} parent=51 // pred_check
          %p360 = pneg %p41
        $region54: #{tpu_custom_call.1} parent=51 // pred_check_branch
          %362 = sbr.rel (%p360) target = $region56
        $region55: #{tpu_custom_call.1} parent=51 // pred_region
          %p363 = scmp.lt.s32.totalorder %s21, 1
          %s364 = scalar_select %p363, %s21, 1
          %s365 = smul.addr %s364, 8
          %s366 = scalar_lea.vmem %s0, %s365
        $region56: #{tpu_custom_call.1} parent=51 // pred_fallthru
          _
        // Predicated region
        $region57: #{tpu_custom_call.1} parent=51 // pred_check
          %p367 = pneg %p67
        $region58: #{tpu_custom_call.1} parent=51 // pred_check_branch
          %369 = sbr.rel (%p367) target = $region60
        $region59: #{tpu_custom_call.1} parent=51 // pred_region
          %p370 = scmp.lt.s32.totalorder %s21, 1
          %s371 = scalar_select %p370, %s21, 1
          %s372 = smul.addr %s371, 8
          %s373 = scalar_lea.vmem %s1, %s372
        $region60: #{tpu_custom_call.1} parent=51 // pred_fallthru
          _
        // Predicated region
        $region61: #{tpu_custom_call.1} parent=51 // pred_check
          %p374 = pneg %p93
        $region62: #{tpu_custom_call.1} parent=51 // pred_check_branch
          %376 = sbr.rel (%p374) target = $region64
        $region63: #{tpu_custom_call.1} parent=51 // pred_region
          %p377 = scmp.lt.s32.totalorder %s21, 1
          %s378 = scalar_select %p377, %s21, 1
          %s379 = scalar_lea.vmem %s2, %s378
        $region64: #{tpu_custom_call.1} parent=51 // pred_fallthru
          _
      $region52: #{tpu_custom_call.1} parent=5 // pred_fallthru
        _
      %p380 = scmp.le.s32.totalorder 1, %s21
      %p381 = scmp.lt.s32.totalorder %s21, 3
      %p382 = pnand %p380, %p381
      %p383 = pneg %p382
      // Predicated region
      $region65: #{tpu_custom_call.1} parent=5 // pred_check
        _
      $region66: #{tpu_custom_call.1} parent=5 // pred_check_branch
        %385 = sbr.rel (%p382) target = $region68
      $region67: #{tpu_custom_call.1} parent=5 // pred_region
        %s386 = ssub.s32 %s21, 1
        %p387 = scmp.lt.s32.totalorder %s26, 1
        %s388 = scalar_select %p387, %s26, 1
        %s389 = smul.addr %s388, 8
        %s390 = scalar_lea.vmem %s0, %s389
        %p391 = pneg %p47
        %p392 = pneg %p44
        %p393 = scmp.lt.s32.totalorder %s26, 1
        %s394 = scalar_select %p393, %s26, 1
        %s395 = smul.addr %s394, 8
        %s396 = scalar_lea.vmem %s1, %s395
        %p397 = pneg %p73
        %p398 = pneg %p70
        %p399 = scmp.lt.s32.totalorder %s26, 1
        %s400 = scalar_select %p399, %s26, 1
        %s401 = scalar_lea.vmem %s2, %s400
        %p402 = pneg %p99
        %p403 = pneg %p96
        %p404 = pneg %p120
        %p405 = pneg %p117
        %p406 = pneg %p141
        %p407 = pneg %p138
        %p408 = pneg %p162
        %p409 = pneg %p159
        %p410 = pneg %p183
        %p411 = pneg %p180
        %p412 = pneg %p204
        %p413 = pneg %p201
        %p414 = pneg %p225
        %p415 = pneg %p222
        %p416 = pneg %p246
        %p417 = pneg %p243
        %p418 = pneg %p267
        %p419 = pneg %p264
        %p420 = pneg %p288
        %p421 = pneg %p285
        %p422 = pneg %p314
        %p423 = pneg %p311
        %s424 = sand.u32 %s301, 1
        %s425 = scalar_lea.sflag [#allocation3], %s424
        %s426 = sand.u32 %s301, 1
        %s427 = smul.addr %s426, 8
        %s428 = scalar_lea.vmem [#allocation2], %s427
        %p429 = scmp.lt.s32.totalorder %s26, 1
        %s430 = scalar_select %p429, %s26, 1
        %s431 = smul.addr %s430, 8
        %s432 = scalar_lea.vmem %s0, %s431
        %p433 = scmp.lt.s32.totalorder %s26, 1
        %s434 = scalar_select %p433, %s26, 1
        %s435 = smul.addr %s434, 8
        %s436 = scalar_lea.vmem %s1, %s435
        %p437 = scmp.lt.s32.totalorder %s26, 1
        %s438 = scalar_select %p437, %s26, 1
        %s439 = scalar_lea.vmem %s2, %s438
        %v440 = vld [vmem:[%s432] sm:$0xff]
        %v441 = vld [vmem:[%s3] sm:$0xff]
        %v442 = vld [vmem:[%s3 + $0x8] sm:$0x3]
        %v443 = vld [vmem:[%s4] sm:$0x1]
        %v445 = vlaneseq
        %v446 = vshrl.u32 %v445, 7
        %v447 = vsub.s32 0, %v446
        %v448 = vrot.slane %v443, %v447
        %vm450 = vcmask 80896
        %v452 = vsel %vm450, %v440, 0
        %vm454 = vcmask 1041408
        %v456 = vsel %vm454, %v442, 0
        %458 = vmatprep.subr.mxu0 0.0
        %459 = vmatpush1.msra.mxu0 %v441
        %460 = vmatprep.subr.mxu0 0.0
        %461 = vmatpush1.msra.mxu0 %v456
        %462 = vmatprep.subr.mxu0 0.0
        %463 = vmatpush1.msra.mxu0 0.0
        %464 = vmatprep.subr.mxu0 0.0
        %465 = vmatpush1.msra.mxu0 0.0
        %466 = vmatprep.subr.mxu0 0.0
        %467 = vmatpush1.msra.mxu0 0.0
        %468 = vmatprep.subr.mxu0 0.0
        %469 = vmatpush1.msra.mxu0 0.0
        %470 = vmatprep.subr.mxu0 0.0
        %471 = vmatpush1.msra.mxu0 0.0
        %472 = vmatprep.subr.mxu0 0.0
        %473 = vmatpush1.msra.mxu0 0.0
        %474 = vmatprep.subr.mxu0 0.0
        %475 = vmatpush1.msra.mxu0 0.0
        %476 = vmatprep.subr.mxu0 0.0
        %477 = vmatpush1.msra.mxu0 0.0
        %478 = vmatprep.subr.mxu0 0.0
        %479 = vmatpush1.msra.mxu0 0.0
        %480 = vmatprep.subr.mxu0 0.0
        %481 = vmatpush1.msra.mxu0 0.0
        %482 = vmatprep.subr.mxu0 0.0
        %483 = vmatpush1.msra.mxu0 0.0
        %484 = vmatprep.subr.mxu0 0.0
        %485 = vmatpush1.msra.mxu0 0.0
        %486 = vmatprep.subr.mxu0 0.0
        %487 = vmatpush1.msra.mxu0 0.0
        %488 = vmatprep.subr.mxu0 0.0
        %489 = vmatpush1.msra.mxu0 0.0
        %490 = vmatprep.subr.mxu0 0.0
        %491 = vmatpush1.msra.mxu0 0.0
        %492 = vmatprep.subr.mxu0 0.0
        %493 = vmatpush1.msra.mxu0 0.0
        %494 = vmatprep.subr.mxu0 0.0
        %495 = vmatpush1.msra.mxu0 0.0
        %496 = vmatprep.subr.mxu0 0.0
        %497 = vmatpush1.msra.mxu0 0.0
        %498 = vmatprep.subr.mxu0 0.0
        %499 = vmatpush1.msra.mxu0 0.0
        %500 = vmatprep.subr.mxu0 0.0
        %501 = vmatpush1.msra.mxu0 0.0
        %502 = vmatprep.subr.mxu0 0.0
        %503 = vmatpush1.msra.mxu0 0.0
        %504 = vmatprep.subr.mxu0 0.0
        %505 = vmatpush1.msra.mxu0 0.0
        %506 = vmatprep.subr.mxu0 0.0
        %507 = vmatpush1.msra.mxu0 0.0
        %508 = vmatprep.subr.mxu0 0.0
        %509 = vmatpush1.msra.mxu0 0.0
        %510 = vmatprep.subr.mxu0 0.0
        %511 = vmatpush1.msra.mxu0 0.0
        %512 = vmatprep.subr.mxu0 0.0
        %513 = vmatpush1.msra.mxu0 0.0
        %514 = vmatprep.subr.mxu0 0.0
        %515 = vmatpush1.msra.mxu0 0.0
        %516 = vmatprep.subr.mxu0 0.0
        %517 = vmatpush1.msra.mxu0 0.0
        %518 = vmatprep.subr.mxu0 0.0
        %519 = vmatpush1.msra.mxu0 0.0
        %520 = vmatprep.subr.mxu0 0.0
        %521 = vmatpush1.msra.mxu0 0.0
        %522 = vmatprep.mubr.f32.mxu0 0.0
        %523 = vmatmul.mubr.f32.gmra.mrb[0].mxu0 %v452
        %v524 = vpop.f32.mrb[0].mxu0
        %v525 = vadd.f32 %v448, %v524
        %v526 = vpop.f32.mrb[0].mxu0
        %527 = vdwg.mxu0
        %v528 = vld [vmem:[%s436] sm:$0xff]
        %530 = vrot.lane.b32.xlu0 %v528, 16
        %v531 = vpop.permute.xlu0 %530
        %vm533 = vcmask 130048
        %v534 = vsel %vm533, %v525, %v531
        %v535 = vld [vmem:[%s439] sm:$0x1]
        %vm536 = vcmp.eq.f32.partialorder %v535, 0.0
        %v537 = vld [vmem:[%s11] sm:$0x3f]
        %vm538 = vcmask 261120
        %v539 = vsel %vm538, %v534, 0.0
        %540 = vadd.xlane.f32.xlu0 %v539
        %v541 = vpop.xlane.xlu0 %540
        %v542 = vrcp.pop 32.0
        %v543 = vmul.f32 %v541, %v542
        %v544 = vsub.f32 %v534, %v543
        %v545 = vmul.f32 %v544, %v544
        %v546 = vsel %vm538, %v545, 0.0
        %547 = vadd.xlane.f32.xlu0 %v546
        %v548 = vpop.xlane.xlu0 %547
        %v549 = vmul.f32 %v548, %v542
        %v550 = vadd.f32 %v549, 1e-05
        %v551 = vrsqrt.pop %v550
        %v552 = vmul.f32 %v544, %v551
        %v553 = vlaneseq
        %v554 = vshrl.u32 %v553, 7
        %v555 = vsub.s32 0, %v554
        %v556 = vrot.slane %v537, %v555
        %v557 = vmul.f32 %v552, %v556
        %v558 = vlaneseq
        %v559 = vshrl.u32 %v558, 7
        %v560 = vsub.s32 1, %v559
        %v561 = vrot.slane %v537, %v560
        %v562 = vadd.f32 %v557, %v561
        %v563 = vld [vmem:[%s5] sm:$0xff]
        %v564 = vld [vmem:[%s5 + $0x8] sm:$0xff]
        %v565 = vld [vmem:[%s5 + $0x10] sm:$0xff]
        %v566 = vld [vmem:[%s5 + $0x18] sm:$0xff]
        %v567 = vld [vmem:[%s9] sm:$0x1]
        %v569 = vlaneseq
        %v570 = vshrl.u32 %v569, 7
        %v571 = vsub.s32 0, %v570
        %v572 = vrot.slane %v567, %v571
        %v575 = vsel %vm538, %v562, 0
        %577 = vmatprep.subr.mxu0 0.0
        %578 = vmatpush1.msra.mxu0 %v563
        %579 = vmatprep.subr.mxu0 0.0
        %580 = vmatpush1.msra.mxu0 %v564
        %581 = vmatprep.subr.mxu0 0.0
        %582 = vmatpush1.msra.mxu0 %v565
        %583 = vmatprep.subr.mxu0 0.0
        %584 = vmatpush1.msra.mxu0 %v566
        %585 = vmatprep.subr.mxu0 0.0
        %586 = vmatpush1.msra.mxu0 0.0
        %587 = vmatprep.subr.mxu0 0.0
        %588 = vmatpush1.msra.mxu0 0.0
        %589 = vmatprep.subr.mxu0 0.0
        %590 = vmatpush1.msra.mxu0 0.0
        %591 = vmatprep.subr.mxu0 0.0
        %592 = vmatpush1.msra.mxu0 0.0
        %593 = vmatprep.subr.mxu0 0.0
        %594 = vmatpush1.msra.mxu0 0.0
        %595 = vmatprep.subr.mxu0 0.0
        %596 = vmatpush1.msra.mxu0 0.0
        %597 = vmatprep.subr.mxu0 0.0
        %598 = vmatpush1.msra.mxu0 0.0
        %599 = vmatprep.subr.mxu0 0.0
        %600 = vmatpush1.msra.mxu0 0.0
        %601 = vmatprep.subr.mxu0 0.0
        %602 = vmatpush1.msra.mxu0 0.0
        %603 = vmatprep.subr.mxu0 0.0
        %604 = vmatpush1.msra.mxu0 0.0
        %605 = vmatprep.subr.mxu0 0.0
        %606 = vmatpush1.msra.mxu0 0.0
        %607 = vmatprep.subr.mxu0 0.0
        %608 = vmatpush1.msra.mxu0 0.0
        %609 = vmatprep.subr.mxu0 0.0
        %610 = vmatpush1.msra.mxu0 0.0
        %611 = vmatprep.subr.mxu0 0.0
        %612 = vmatpush1.msra.mxu0 0.0
        %613 = vmatprep.subr.mxu0 0.0
        %614 = vmatpush1.msra.mxu0 0.0
        %615 = vmatprep.subr.mxu0 0.0
        %616 = vmatpush1.msra.mxu0 0.0
        %617 = vmatprep.subr.mxu0 0.0
        %618 = vmatpush1.msra.mxu0 0.0
        %619 = vmatprep.subr.mxu0 0.0
        %620 = vmatpush1.msra.mxu0 0.0
        %621 = vmatprep.subr.mxu0 0.0
        %622 = vmatpush1.msra.mxu0 0.0
        %623 = vmatprep.subr.mxu0 0.0
        %624 = vmatpush1.msra.mxu0 0.0
        %625 = vmatprep.subr.mxu0 0.0
        %626 = vmatpush1.msra.mxu0 0.0
        %627 = vmatprep.subr.mxu0 0.0
        %628 = vmatpush1.msra.mxu0 0.0
        %629 = vmatprep.subr.mxu0 0.0
        %630 = vmatpush1.msra.mxu0 0.0
        %631 = vmatprep.subr.mxu0 0.0
        %632 = vmatpush1.msra.mxu0 0.0
        %633 = vmatprep.subr.mxu0 0.0
        %634 = vmatpush1.msra.mxu0 0.0
        %635 = vmatprep.subr.mxu0 0.0
        %636 = vmatpush1.msra.mxu0 0.0
        %637 = vmatprep.subr.mxu0 0.0
        %638 = vmatpush1.msra.mxu0 0.0
        %639 = vmatprep.subr.mxu0 0.0
        %640 = vmatpush1.msra.mxu0 0.0
        %641 = vmatprep.mubr.f32.mxu0 0.0
        %642 = vmatmul.mubr.f32.gmra.mrb[0].mxu0 %v575
        %v643 = vpop.f32.mrb[0].mxu0
        %v644 = vadd.f32 %v572, %v643
        %v645 = vpop.f32.mrb[0].mxu0
        %646 = vdwg.mxu0
        %648 = vrot.lane.b32.xlu0 %v644, 120
        %v649 = vpop.permute.xlu0 %648
        %650 = vrot.lane.b32.xlu0 %v644, 112
        %v651 = vpop.permute.xlu0 %650
        %652 = vrot.lane.b32.xlu0 %v644, 104
        %v653 = vpop.permute.xlu0 %652
        %654 = vrot.lane.b32.xlu0 %v644, 96
        %v655 = vpop.permute.xlu0 %654
        %vm656 = vcmask 64512
        %v657 = vsel %vm656, %v644, 0
        %v659 = vsel %vm656, %v655, 0
        %661 = vmatprep.subr.mxu0 0.0
        %662 = vmatpush1.xpose.msra.mxu0 %v659
        %663 = vmatprep.subr.mxu0 0.0
        %664 = vmatpush1.xpose.msra.mxu0 0.0
        %665 = vmatprep.subr.mxu0 0.0
        %666 = vmatpush1.xpose.msra.mxu0 0.0
        %667 = vmatprep.subr.mxu0 0.0
        %668 = vmatpush1.xpose.msra.mxu0 0.0
        %669 = vmatprep.subr.mxu0 0.0
        %670 = vmatpush1.xpose.msra.mxu0 0.0
        %671 = vmatprep.subr.mxu0 0.0
        %672 = vmatpush1.xpose.msra.mxu0 0.0
        %673 = vmatprep.subr.mxu0 0.0
        %674 = vmatpush1.xpose.msra.mxu0 0.0
        %675 = vmatprep.subr.mxu0 0.0
        %676 = vmatpush1.xpose.msra.mxu0 0.0
        %677 = vmatprep.subr.mxu0 0.0
        %678 = vmatpush1.xpose.msra.mxu0 0.0
        %679 = vmatprep.subr.mxu0 0.0
        %680 = vmatpush1.xpose.msra.mxu0 0.0
        %681 = vmatprep.subr.mxu0 0.0
        %682 = vmatpush1.xpose.msra.mxu0 0.0
        %683 = vmatprep.subr.mxu0 0.0
        %684 = vmatpush1.xpose.msra.mxu0 0.0
        %685 = vmatprep.subr.mxu0 0.0
        %686 = vmatpush1.xpose.msra.mxu0 0.0
        %687 = vmatprep.subr.mxu0 0.0
        %688 = vmatpush1.xpose.msra.mxu0 0.0
        %689 = vmatprep.subr.mxu0 0.0
        %690 = vmatpush1.xpose.msra.mxu0 0.0
        %691 = vmatprep.subr.mxu0 0.0
        %692 = vmatpush1.xpose.msra.mxu0 0.0
        %693 = vmatprep.subr.mxu0 0.0
        %694 = vmatpush1.xpose.msra.mxu0 0.0
        %695 = vmatprep.subr.mxu0 0.0
        %696 = vmatpush1.xpose.msra.mxu0 0.0
        %697 = vmatprep.subr.mxu0 0.0
        %698 = vmatpush1.xpose.msra.mxu0 0.0
        %699 = vmatprep.subr.mxu0 0.0
        %700 = vmatpush1.xpose.msra.mxu0 0.0
        %701 = vmatprep.subr.mxu0 0.0
        %702 = vmatpush1.xpose.msra.mxu0 0.0
        %703 = vmatprep.subr.mxu0 0.0
        %704 = vmatpush1.xpose.msra.mxu0 0.0
        %705 = vmatprep.subr.mxu0 0.0
        %706 = vmatpush1.xpose.msra.mxu0 0.0
        %707 = vmatprep.subr.mxu0 0.0
        %708 = vmatpush1.xpose.msra.mxu0 0.0
        %709 = vmatprep.subr.mxu0 0.0
        %710 = vmatpush1.xpose.msra.mxu0 0.0
        %711 = vmatprep.subr.mxu0 0.0
        %712 = vmatpush1.xpose.msra.mxu0 0.0
        %713 = vmatprep.subr.mxu0 0.0
        %714 = vmatpush1.xpose.msra.mxu0 0.0
        %715 = vmatprep.subr.mxu0 0.0
        %716 = vmatpush1.xpose.msra.mxu0 0.0
        %717 = vmatprep.subr.mxu0 0.0
        %718 = vmatpush1.xpose.msra.mxu0 0.0
        %719 = vmatprep.subr.mxu0 0.0
        %720 = vmatpush1.xpose.msra.mxu0 0.0
        %721 = vmatprep.subr.mxu0 0.0
        %722 = vmatpush1.xpose.msra.mxu0 0.0
        %723 = vmatprep.subr.mxu0 0.0
        %724 = vmatpush1.xpose.msra.mxu0 0.0
        %725 = vmatprep.mubr.f32.mxu0 0.0
        %726 = vmatmul.mubr.f32.gmra.mrb[0].mxu0 %v657
        %v727 = vpop.f32.mrb[0].mxu0
        %v728 = vadd.f32 0.0, %v727
        %v729 = vpop.f32.mrb[0].mxu0
        %730 = vdwg.mxu0
        %731 = vrot.lane.b32.xlu0 %v649, 96
        %v732 = vpop.permute.xlu0 %731
        %v733 = vsel %vm656, %v649, 0
        %v735 = vsel %vm656, %v732, 0
        %737 = vmatprep.subr.mxu0 0.0
        %738 = vmatpush1.xpose.msra.mxu0 %v735
        %739 = vmatprep.subr.mxu0 0.0
        %740 = vmatpush1.xpose.msra.mxu0 0.0
        %741 = vmatprep.subr.mxu0 0.0
        %742 = vmatpush1.xpose.msra.mxu0 0.0
        %743 = vmatprep.subr.mxu0 0.0
        %744 = vmatpush1.xpose.msra.mxu0 0.0
        %745 = vmatprep.subr.mxu0 0.0
        %746 = vmatpush1.xpose.msra.mxu0 0.0
        %747 = vmatprep.subr.mxu0 0.0
        %748 = vmatpush1.xpose.msra.mxu0 0.0
        %749 = vmatprep.subr.mxu0 0.0
        %750 = vmatpush1.xpose.msra.mxu0 0.0
        %751 = vmatprep.subr.mxu0 0.0
        %752 = vmatpush1.xpose.msra.mxu0 0.0
        %753 = vmatprep.subr.mxu0 0.0
        %754 = vmatpush1.xpose.msra.mxu0 0.0
        %755 = vmatprep.subr.mxu0 0.0
        %756 = vmatpush1.xpose.msra.mxu0 0.0
        %757 = vmatprep.subr.mxu0 0.0
        %758 = vmatpush1.xpose.msra.mxu0 0.0
        %759 = vmatprep.subr.mxu0 0.0
        %760 = vmatpush1.xpose.msra.mxu0 0.0
        %761 = vmatprep.subr.mxu0 0.0
        %762 = vmatpush1.xpose.msra.mxu0 0.0
        %763 = vmatprep.subr.mxu0 0.0
        %764 = vmatpush1.xpose.msra.mxu0 0.0
        %765 = vmatprep.subr.mxu0 0.0
        %766 = vmatpush1.xpose.msra.mxu0 0.0
        %767 = vmatprep.subr.mxu0 0.0
        %768 = vmatpush1.xpose.msra.mxu0 0.0
        %769 = vmatprep.subr.mxu0 0.0
        %770 = vmatpush1.xpose.msra.mxu0 0.0
        %771 = vmatprep.subr.mxu0 0.0
        %772 = vmatpush1.xpose.msra.mxu0 0.0
        %773 = vmatprep.subr.mxu0 0.0
        %774 = vmatpush1.xpose.msra.mxu0 0.0
        %775 = vmatprep.subr.mxu0 0.0
        %776 = vmatpush1.xpose.msra.mxu0 0.0
        %777 = vmatprep.subr.mxu0 0.0
        %778 = vmatpush1.xpose.msra.mxu0 0.0
        %779 = vmatprep.subr.mxu0 0.0
        %780 = vmatpush1.xpose.msra.mxu0 0.0
        %781 = vmatprep.subr.mxu0 0.0
        %782 = vmatpush1.xpose.msra.mxu0 0.0
        %783 = vmatprep.subr.mxu0 0.0
        %784 = vmatpush1.xpose.msra.mxu0 0.0
        %785 = vmatprep.subr.mxu0 0.0
        %786 = vmatpush1.xpose.msra.mxu0 0.0
        %787 = vmatprep.subr.mxu0 0.0
        %788 = vmatpush1.xpose.msra.mxu0 0.0
        %789 = vmatprep.subr.mxu0 0.0
        %790 = vmatpush1.xpose.msra.mxu0 0.0
        %791 = vmatprep.subr.mxu0 0.0
        %792 = vmatpush1.xpose.msra.mxu0 0.0
        %793 = vmatprep.subr.mxu0 0.0
        %794 = vmatpush1.xpose.msra.mxu0 0.0
        %795 = vmatprep.subr.mxu0 0.0
        %796 = vmatpush1.xpose.msra.mxu0 0.0
        %797 = vmatprep.subr.mxu0 0.0
        %798 = vmatpush1.xpose.msra.mxu0 0.0
        %799 = vmatprep.subr.mxu0 0.0
        %800 = vmatpush1.xpose.msra.mxu0 0.0
        %801 = vmatprep.mubr.f32.mxu0 0.0
        %802 = vmatmul.mubr.f32.gmra.mrb[0].mxu0 %v733
        %v803 = vpop.f32.mrb[0].mxu0
        %v804 = vadd.f32 0.0, %v803
        %v805 = vpop.f32.mrb[0].mxu0
        %806 = vdwg.mxu0
        %807 = vrot.lane.b32.xlu0 %v651, 96
        %v808 = vpop.permute.xlu0 %807
        %v809 = vsel %vm656, %v651, 0
        %v811 = vsel %vm656, %v808, 0
        %813 = vmatprep.subr.mxu0 0.0
        %814 = vmatpush1.xpose.msra.mxu0 %v811
        %815 = vmatprep.subr.mxu0 0.0
        %816 = vmatpush1.xpose.msra.mxu0 0.0
        %817 = vmatprep.subr.mxu0 0.0
        %818 = vmatpush1.xpose.msra.mxu0 0.0
        %819 = vmatprep.subr.mxu0 0.0
        %820 = vmatpush1.xpose.msra.mxu0 0.0
        %821 = vmatprep.subr.mxu0 0.0
        %822 = vmatpush1.xpose.msra.mxu0 0.0
        %823 = vmatprep.subr.mxu0 0.0
        %824 = vmatpush1.xpose.msra.mxu0 0.0
        %825 = vmatprep.subr.mxu0 0.0
        %826 = vmatpush1.xpose.msra.mxu0 0.0
        %827 = vmatprep.subr.mxu0 0.0
        %828 = vmatpush1.xpose.msra.mxu0 0.0
        %829 = vmatprep.subr.mxu0 0.0
        %830 = vmatpush1.xpose.msra.mxu0 0.0
        %831 = vmatprep.subr.mxu0 0.0
        %832 = vmatpush1.xpose.msra.mxu0 0.0
        %833 = vmatprep.subr.mxu0 0.0
        %834 = vmatpush1.xpose.msra.mxu0 0.0
        %835 = vmatprep.subr.mxu0 0.0
        %836 = vmatpush1.xpose.msra.mxu0 0.0
        %837 = vmatprep.subr.mxu0 0.0
        %838 = vmatpush1.xpose.msra.mxu0 0.0
        %839 = vmatprep.subr.mxu0 0.0
        %840 = vmatpush1.xpose.msra.mxu0 0.0
        %841 = vmatprep.subr.mxu0 0.0
        %842 = vmatpush1.xpose.msra.mxu0 0.0
        %843 = vmatprep.subr.mxu0 0.0
        %844 = vmatpush1.xpose.msra.mxu0 0.0
        %845 = vmatprep.subr.mxu0 0.0
        %846 = vmatpush1.xpose.msra.mxu0 0.0
        %847 = vmatprep.subr.mxu0 0.0
        %848 = vmatpush1.xpose.msra.mxu0 0.0
        %849 = vmatprep.subr.mxu0 0.0
        %850 = vmatpush1.xpose.msra.mxu0 0.0
        %851 = vmatprep.subr.mxu0 0.0
        %852 = vmatpush1.xpose.msra.mxu0 0.0
        %853 = vmatprep.subr.mxu0 0.0
        %854 = vmatpush1.xpose.msra.mxu0 0.0
        %855 = vmatprep.subr.mxu0 0.0
        %856 = vmatpush1.xpose.msra.mxu0 0.0
        %857 = vmatprep.subr.mxu0 0.0
        %858 = vmatpush1.xpose.msra.mxu0 0.0
        %859 = vmatprep.subr.mxu0 0.0
        %860 = vmatpush1.xpose.msra.mxu0 0.0
        %861 = vmatprep.subr.mxu0 0.0
        %862 = vmatpush1.xpose.msra.mxu0 0.0
        %863 = vmatprep.subr.mxu0 0.0
        %864 = vmatpush1.xpose.msra.mxu0 0.0
        %865 = vmatprep.subr.mxu0 0.0
        %866 = vmatpush1.xpose.msra.mxu0 0.0
        %867 = vmatprep.subr.mxu0 0.0
        %868 = vmatpush1.xpose.msra.mxu0 0.0
        %869 = vmatprep.subr.mxu0 0.0
        %870 = vmatpush1.xpose.msra.mxu0 0.0
        %871 = vmatprep.subr.mxu0 0.0
        %872 = vmatpush1.xpose.msra.mxu0 0.0
        %873 = vmatprep.subr.mxu0 0.0
        %874 = vmatpush1.xpose.msra.mxu0 0.0
        %875 = vmatprep.subr.mxu0 0.0
        %876 = vmatpush1.xpose.msra.mxu0 0.0
        %877 = vmatprep.mubr.f32.mxu0 0.0
        %878 = vmatmul.mubr.f32.gmra.mrb[0].mxu0 %v809
        %v879 = vpop.f32.mrb[0].mxu0
        %v880 = vadd.f32 0.0, %v879
        %v881 = vpop.f32.mrb[0].mxu0
        %882 = vdwg.mxu0
        %883 = vrot.lane.b32.xlu0 %v653, 96
        %v884 = vpop.permute.xlu0 %883
        %v885 = vsel %vm656, %v653, 0
        %v887 = vsel %vm656, %v884, 0
        %889 = vmatprep.subr.mxu0 0.0
        %890 = vmatpush1.xpose.msra.mxu0 %v887
        %891 = vmatprep.subr.mxu0 0.0
        %892 = vmatpush1.xpose.msra.mxu0 0.0
        %893 = vmatprep.subr.mxu0 0.0
        %894 = vmatpush1.xpose.msra.mxu0 0.0
        %895 = vmatprep.subr.mxu0 0.0
        %896 = vmatpush1.xpose.msra.mxu0 0.0
        %897 = vmatprep.subr.mxu0 0.0
        %898 = vmatpush1.xpose.msra.mxu0 0.0
        %899 = vmatprep.subr.mxu0 0.0
        %900 = vmatpush1.xpose.msra.mxu0 0.0
        %901 = vmatprep.subr.mxu0 0.0
        %902 = vmatpush1.xpose.msra.mxu0 0.0
        %903 = vmatprep.subr.mxu0 0.0
        %904 = vmatpush1.xpose.msra.mxu0 0.0
        %905 = vmatprep.subr.mxu0 0.0
        %906 = vmatpush1.xpose.msra.mxu0 0.0
        %907 = vmatprep.subr.mxu0 0.0
        %908 = vmatpush1.xpose.msra.mxu0 0.0
        %909 = vmatprep.subr.mxu0 0.0
        %910 = vmatpush1.xpose.msra.mxu0 0.0
        %911 = vmatprep.subr.mxu0 0.0
        %912 = vmatpush1.xpose.msra.mxu0 0.0
        %913 = vmatprep.subr.mxu0 0.0
        %914 = vmatpush1.xpose.msra.mxu0 0.0
        %915 = vmatprep.subr.mxu0 0.0
        %916 = vmatpush1.xpose.msra.mxu0 0.0
        %917 = vmatprep.subr.mxu0 0.0
        %918 = vmatpush1.xpose.msra.mxu0 0.0
        %919 = vmatprep.subr.mxu0 0.0
        %920 = vmatpush1.xpose.msra.mxu0 0.0
        %921 = vmatprep.subr.mxu0 0.0
        %922 = vmatpush1.xpose.msra.mxu0 0.0
        %923 = vmatprep.subr.mxu0 0.0
        %924 = vmatpush1.xpose.msra.mxu0 0.0
        %925 = vmatprep.subr.mxu0 0.0
        %926 = vmatpush1.xpose.msra.mxu0 0.0
        %927 = vmatprep.subr.mxu0 0.0
        %928 = vmatpush1.xpose.msra.mxu0 0.0
        %929 = vmatprep.subr.mxu0 0.0
        %930 = vmatpush1.xpose.msra.mxu0 0.0
        %931 = vmatprep.subr.mxu0 0.0
        %932 = vmatpush1.xpose.msra.mxu0 0.0
        %933 = vmatprep.subr.mxu0 0.0
        %934 = vmatpush1.xpose.msra.mxu0 0.0
        %935 = vmatprep.subr.mxu0 0.0
        %936 = vmatpush1.xpose.msra.mxu0 0.0
        %937 = vmatprep.subr.mxu0 0.0
        %938 = vmatpush1.xpose.msra.mxu0 0.0
        %939 = vmatprep.subr.mxu0 0.0
        %940 = vmatpush1.xpose.msra.mxu0 0.0
        %941 = vmatprep.subr.mxu0 0.0
        %942 = vmatpush1.xpose.msra.mxu0 0.0
        %943 = vmatprep.subr.mxu0 0.0
        %944 = vmatpush1.xpose.msra.mxu0 0.0
        %945 = vmatprep.subr.mxu0 0.0
        %946 = vmatpush1.xpose.msra.mxu0 0.0
        %947 = vmatprep.subr.mxu0 0.0
        %948 = vmatpush1.xpose.msra.mxu0 0.0
        %949 = vmatprep.subr.mxu0 0.0
        %950 = vmatpush1.xpose.msra.mxu0 0.0
        %951 = vmatprep.subr.mxu0 0.0
        %952 = vmatpush1.xpose.msra.mxu0 0.0
        %953 = vmatprep.mubr.f32.mxu0 0.0
        %954 = vmatmul.mubr.f32.gmra.mrb[0].mxu0 %v885
        %v955 = vpop.f32.mrb[0].mxu0
        %v956 = vadd.f32 0.0, %v955
        %v957 = vpop.f32.mrb[0].mxu0
        %958 = vdwg.mxu0
        %v959 = vmul.f32 %v728, 0.35355338
        %v960 = vmul.f32 %v804, 0.35355338
        %v961 = vmul.f32 %v880, 0.35355338
        %v962 = vmul.f32 %v956, 0.35355338
        %v963 = vsel %vm536, 1, 0
        %v964 = vlaneseq
        %v965 = vshrl.u32 %v964, 7
        %v966 = vsub.s32 0, %v965
        %v967 = vrot.slane %v963, %v966
        %vm968 = vcmp.eq.s32.totalorder %v967, 1
        %v969 = vsel %vm968, -1e+09, %v959
        %v970 = vsel %vm968, -1e+09, %v960
        %v971 = vsel %vm968, -1e+09, %v961
        %v972 = vsel %vm968, -1e+09, %v962
        %v973 = vsel %vm656, %v969, -inf
        %v974 = vsel %vm656, %v970, -inf
        %v975 = vsel %vm656, %v971, -inf
        %v976 = vsel %vm656, %v972, -inf
        %v977 = vmax.f32 %v973, %v974
        %v978 = vmax.f32 %v975, %v976
        %v979 = vmax.f32 %v977, %v978
        %v980 = vsub.f32 %v969, %v979
        %v981 = vsub.f32 %v970, %v979
        %v982 = vsub.f32 %v971, %v979
        %v983 = vsub.f32 %v972, %v979
        %v984 = vmul.f32 %v980, 1.442695
        %v985 = vpow.pop %v984
        %v986 = vmul.f32 %v981, 1.442695
        %v987 = vpow.pop %v986
        %v988 = vmul.f32 %v982, 1.442695
        %v989 = vpow.pop %v988
        %v990 = vmul.f32 %v983, 1.442695
        %v991 = vpow.pop %v990
        %v992 = vsel %vm656, %v985, 0.0
        %v993 = vsel %vm656, %v987, 0.0
        %v994 = vadd.f32 %v992, %v993
        %v995 = vsel %vm656, %v989, 0.0
        %v996 = vadd.f32 %v994, %v995
        %v997 = vsel %vm656, %v991, 0.0
        %v998 = vadd.f32 %v996, %v997
        %v999 = vrcp.pop %v998
        %v1000 = vmul.f32 %v985, %v999
        %v1001 = vmul.f32 %v987, %v999
        %v1002 = vmul.f32 %v989, %v999
        %v1003 = vmul.f32 %v991, %v999
        %1004 = vrot.lane.b32.xlu0 %v644, 64
        %v1005 = vpop.permute.xlu0 %1004
        %v1008 = vsel %vm656, %v1000, 0
        %1010 = vmatprep.subr.mxu0 0.0
        %1011 = vmatpush1.msra.mxu0 %v1005
        %1012 = vmatprep.subr.mxu0 0.0
        %1013 = vmatpush1.msra.mxu0 0.0
        %1014 = vmatprep.subr.mxu0 0.0
        %1015 = vmatpush1.msra.mxu0 0.0
        %1016 = vmatprep.subr.mxu0 0.0
        %1017 = vmatpush1.msra.mxu0 0.0
        %1018 = vmatprep.subr.mxu0 0.0
        %1019 = vmatpush1.msra.mxu0 0.0
        %1020 = vmatprep.subr.mxu0 0.0
        %1021 = vmatpush1.msra.mxu0 0.0
        %1022 = vmatprep.subr.mxu0 0.0
        %1023 = vmatpush1.msra.mxu0 0.0
        %1024 = vmatprep.subr.mxu0 0.0
        %1025 = vmatpush1.msra.mxu0 0.0
        %1026 = vmatprep.subr.mxu0 0.0
        %1027 = vmatpush1.msra.mxu0 0.0
        %1028 = vmatprep.subr.mxu0 0.0
        %1029 = vmatpush1.msra.mxu0 0.0
        %1030 = vmatprep.subr.mxu0 0.0
        %1031 = vmatpush1.msra.mxu0 0.0
        %1032 = vmatprep.subr.mxu0 0.0
        %1033 = vmatpush1.msra.mxu0 0.0
        %1034 = vmatprep.subr.mxu0 0.0
        %1035 = vmatpush1.msra.mxu0 0.0
        %1036 = vmatprep.subr.mxu0 0.0
        %1037 = vmatpush1.msra.mxu0 0.0
        %1038 = vmatprep.subr.mxu0 0.0
        %1039 = vmatpush1.msra.mxu0 0.0
        %1040 = vmatprep.subr.mxu0 0.0
        %1041 = vmatpush1.msra.mxu0 0.0
        %1042 = vmatprep.subr.mxu0 0.0
        %1043 = vmatpush1.msra.mxu0 0.0
        %1044 = vmatprep.subr.mxu0 0.0
        %1045 = vmatpush1.msra.mxu0 0.0
        %1046 = vmatprep.subr.mxu0 0.0
        %1047 = vmatpush1.msra.mxu0 0.0
        %1048 = vmatprep.subr.mxu0 0.0
        %1049 = vmatpush1.msra.mxu0 0.0
        %1050 = vmatprep.subr.mxu0 0.0
        %1051 = vmatpush1.msra.mxu0 0.0
        %1052 = vmatprep.subr.mxu0 0.0
        %1053 = vmatpush1.msra.mxu0 0.0
        %1054 = vmatprep.subr.mxu0 0.0
        %1055 = vmatpush1.msra.mxu0 0.0
        %1056 = vmatprep.subr.mxu0 0.0
        %1057 = vmatpush1.msra.mxu0 0.0
        %1058 = vmatprep.subr.mxu0 0.0
        %1059 = vmatpush1.msra.mxu0 0.0
        %1060 = vmatprep.subr.mxu0 0.0
        %1061 = vmatpush1.msra.mxu0 0.0
        %1062 = vmatprep.subr.mxu0 0.0
        %1063 = vmatpush1.msra.mxu0 0.0
        %1064 = vmatprep.subr.mxu0 0.0
        %1065 = vmatpush1.msra.mxu0 0.0
        %1066 = vmatprep.subr.mxu0 0.0
        %1067 = vmatpush1.msra.mxu0 0.0
        %1068 = vmatprep.subr.mxu0 0.0
        %1069 = vmatpush1.msra.mxu0 0.0
        %1070 = vmatprep.subr.mxu0 0.0
        %1071 = vmatpush1.msra.mxu0 0.0
        %1072 = vmatprep.subr.mxu0 0.0
        %1073 = vmatpush1.msra.mxu0 0.0
        %1074 = vmatprep.mubr.f32.mxu0 0.0
        %1075 = vmatmul.mubr.f32.gmra.mrb[0].mxu0 %v1008
        %v1076 = vpop.f32.mrb[0].mxu0
        %v1077 = vadd.f32 0.0, %v1076
        %v1078 = vpop.f32.mrb[0].mxu0
        %1079 = vdwg.mxu0
        %1080 = vrot.lane.b32.xlu0 %v649, 64
        %v1081 = vpop.permute.xlu0 %1080
        %v1084 = vsel %vm656, %v1001, 0
        %1086 = vmatprep.subr.mxu0 0.0
        %1087 = vmatpush1.msra.mxu0 %v1081
        %1088 = vmatprep.subr.mxu0 0.0
        %1089 = vmatpush1.msra.mxu0 0.0
        %1090 = vmatprep.subr.mxu0 0.0
        %1091 = vmatpush1.msra.mxu0 0.0
        %1092 = vmatprep.subr.mxu0 0.0
        %1093 = vmatpush1.msra.mxu0 0.0
        %1094 = vmatprep.subr.mxu0 0.0
        %1095 = vmatpush1.msra.mxu0 0.0
        %1096 = vmatprep.subr.mxu0 0.0
        %1097 = vmatpush1.msra.mxu0 0.0
        %1098 = vmatprep.subr.mxu0 0.0
        %1099 = vmatpush1.msra.mxu0 0.0
        %1100 = vmatprep.subr.mxu0 0.0
        %1101 = vmatpush1.msra.mxu0 0.0
        %1102 = vmatprep.subr.mxu0 0.0
        %1103 = vmatpush1.msra.mxu0 0.0
        %1104 = vmatprep.subr.mxu0 0.0
        %1105 = vmatpush1.msra.mxu0 0.0
        %1106 = vmatprep.subr.mxu0 0.0
        %1107 = vmatpush1.msra.mxu0 0.0
        %1108 = vmatprep.subr.mxu0 0.0
        %1109 = vmatpush1.msra.mxu0 0.0
        %1110 = vmatprep.subr.mxu0 0.0
        %1111 = vmatpush1.msra.mxu0 0.0
        %1112 = vmatprep.subr.mxu0 0.0
        %1113 = vmatpush1.msra.mxu0 0.0
        %1114 = vmatprep.subr.mxu0 0.0
        %1115 = vmatpush1.msra.mxu0 0.0
        %1116 = vmatprep.subr.mxu0 0.0
        %1117 = vmatpush1.msra.mxu0 0.0
        %1118 = vmatprep.subr.mxu0 0.0
        %1119 = vmatpush1.msra.mxu0 0.0
        %1120 = vmatprep.subr.mxu0 0.0
        %1121 = vmatpush1.msra.mxu0 0.0
        %1122 = vmatprep.subr.mxu0 0.0
        %1123 = vmatpush1.msra.mxu0 0.0
        %1124 = vmatprep.subr.mxu0 0.0
        %1125 = vmatpush1.msra.mxu0 0.0
        %1126 = vmatprep.subr.mxu0 0.0
        %1127 = vmatpush1.msra.mxu0 0.0
        %1128 = vmatprep.subr.mxu0 0.0
        %1129 = vmatpush1.msra.mxu0 0.0
        %1130 = vmatprep.subr.mxu0 0.0
        %1131 = vmatpush1.msra.mxu0 0.0
        %1132 = vmatprep.subr.mxu0 0.0
        %1133 = vmatpush1.msra.mxu0 0.0
        %1134 = vmatprep.subr.mxu0 0.0
        %1135 = vmatpush1.msra.mxu0 0.0
        %1136 = vmatprep.subr.mxu0 0.0
        %1137 = vmatpush1.msra.mxu0 0.0
        %1138 = vmatprep.subr.mxu0 0.0
        %1139 = vmatpush1.msra.mxu0 0.0
        %1140 = vmatprep.subr.mxu0 0.0
        %1141 = vmatpush1.msra.mxu0 0.0
        %1142 = vmatprep.subr.mxu0 0.0
        %1143 = vmatpush1.msra.mxu0 0.0
        %1144 = vmatprep.subr.mxu0 0.0
        %1145 = vmatpush1.msra.mxu0 0.0
        %1146 = vmatprep.subr.mxu0 0.0
        %1147 = vmatpush1.msra.mxu0 0.0
        %1148 = vmatprep.subr.mxu0 0.0
        %1149 = vmatpush1.msra.mxu0 0.0
        %1150 = vmatprep.mubr.f32.mxu0 0.0
        %1151 = vmatmul.mubr.f32.gmra.mrb[0].mxu0 %v1084
        %v1152 = vpop.f32.mrb[0].mxu0
        %v1153 = vadd.f32 0.0, %v1152
        %v1154 = vpop.f32.mrb[0].mxu0
        %1155 = vdwg.mxu0
        %1156 = vrot.lane.b32.xlu0 %v651, 64
        %v1157 = vpop.permute.xlu0 %1156
        %v1160 = vsel %vm656, %v1002, 0
        %1162 = vmatprep.subr.mxu0 0.0
        %1163 = vmatpush1.msra.mxu0 %v1157
        %1164 = vmatprep.subr.mxu0 0.0
        %1165 = vmatpush1.msra.mxu0 0.0
        %1166 = vmatprep.subr.mxu0 0.0
        %1167 = vmatpush1.msra.mxu0 0.0
        %1168 = vmatprep.subr.mxu0 0.0
        %1169 = vmatpush1.msra.mxu0 0.0
        %1170 = vmatprep.subr.mxu0 0.0
        %1171 = vmatpush1.msra.mxu0 0.0
        %1172 = vmatprep.subr.mxu0 0.0
        %1173 = vmatpush1.msra.mxu0 0.0
        %1174 = vmatprep.subr.mxu0 0.0
        %1175 = vmatpush1.msra.mxu0 0.0
        %1176 = vmatprep.subr.mxu0 0.0
        %1177 = vmatpush1.msra.mxu0 0.0
        %1178 = vmatprep.subr.mxu0 0.0
        %1179 = vmatpush1.msra.mxu0 0.0
        %1180 = vmatprep.subr.mxu0 0.0
        %1181 = vmatpush1.msra.mxu0 0.0
        %1182 = vmatprep.subr.mxu0 0.0
        %1183 = vmatpush1.msra.mxu0 0.0
        %1184 = vmatprep.subr.mxu0 0.0
        %1185 = vmatpush1.msra.mxu0 0.0
        %1186 = vmatprep.subr.mxu0 0.0
        %1187 = vmatpush1.msra.mxu0 0.0
        %1188 = vmatprep.subr.mxu0 0.0
        %1189 = vmatpush1.msra.mxu0 0.0
        %1190 = vmatprep.subr.mxu0 0.0
        %1191 = vmatpush1.msra.mxu0 0.0
        %1192 = vmatprep.subr.mxu0 0.0
        %1193 = vmatpush1.msra.mxu0 0.0
        %1194 = vmatprep.subr.mxu0 0.0
        %1195 = vmatpush1.msra.mxu0 0.0
        %1196 = vmatprep.subr.mxu0 0.0
        %1197 = vmatpush1.msra.mxu0 0.0
        %1198 = vmatprep.subr.mxu0 0.0
        %1199 = vmatpush1.msra.mxu0 0.0
        %1200 = vmatprep.subr.mxu0 0.0
        %1201 = vmatpush1.msra.mxu0 0.0
        %1202 = vmatprep.subr.mxu0 0.0
        %1203 = vmatpush1.msra.mxu0 0.0
        %1204 = vmatprep.subr.mxu0 0.0
        %1205 = vmatpush1.msra.mxu0 0.0
        %1206 = vmatprep.subr.mxu0 0.0
        %1207 = vmatpush1.msra.mxu0 0.0
        %1208 = vmatprep.subr.mxu0 0.0
        %1209 = vmatpush1.msra.mxu0 0.0
        %1210 = vmatprep.subr.mxu0 0.0
        %1211 = vmatpush1.msra.mxu0 0.0
        %1212 = vmatprep.subr.mxu0 0.0
        %1213 = vmatpush1.msra.mxu0 0.0
        %1214 = vmatprep.subr.mxu0 0.0
        %1215 = vmatpush1.msra.mxu0 0.0
        %1216 = vmatprep.subr.mxu0 0.0
        %1217 = vmatpush1.msra.mxu0 0.0
        %1218 = vmatprep.subr.mxu0 0.0
        %1219 = vmatpush1.msra.mxu0 0.0
        %1220 = vmatprep.subr.mxu0 0.0
        %1221 = vmatpush1.msra.mxu0 0.0
        %1222 = vmatprep.subr.mxu0 0.0
        %1223 = vmatpush1.msra.mxu0 0.0
        %1224 = vmatprep.subr.mxu0 0.0
        %1225 = vmatpush1.msra.mxu0 0.0
        %1226 = vmatprep.mubr.f32.mxu0 0.0
        %1227 = vmatmul.mubr.f32.gmra.mrb[0].mxu0 %v1160
        %v1228 = vpop.f32.mrb[0].mxu0
        %v1229 = vadd.f32 0.0, %v1228
        %v1230 = vpop.f32.mrb[0].mxu0
        %1231 = vdwg.mxu0
        %1232 = vrot.lane.b32.xlu0 %v653, 64
        %v1233 = vpop.permute.xlu0 %1232
        %v1236 = vsel %vm656, %v1003, 0
        %1238 = vmatprep.subr.mxu0 0.0
        %1239 = vmatpush1.msra.mxu0 %v1233
        %1240 = vmatprep.subr.mxu0 0.0
        %1241 = vmatpush1.msra.mxu0 0.0
        %1242 = vmatprep.subr.mxu0 0.0
        %1243 = vmatpush1.msra.mxu0 0.0
        %1244 = vmatprep.subr.mxu0 0.0
        %1245 = vmatpush1.msra.mxu0 0.0
        %1246 = vmatprep.subr.mxu0 0.0
        %1247 = vmatpush1.msra.mxu0 0.0
        %1248 = vmatprep.subr.mxu0 0.0
        %1249 = vmatpush1.msra.mxu0 0.0
        %1250 = vmatprep.subr.mxu0 0.0
        %1251 = vmatpush1.msra.mxu0 0.0
        %1252 = vmatprep.subr.mxu0 0.0
        %1253 = vmatpush1.msra.mxu0 0.0
        %1254 = vmatprep.subr.mxu0 0.0
        %1255 = vmatpush1.msra.mxu0 0.0
        %1256 = vmatprep.subr.mxu0 0.0
        %1257 = vmatpush1.msra.mxu0 0.0
        %1258 = vmatprep.subr.mxu0 0.0
        %1259 = vmatpush1.msra.mxu0 0.0
        %1260 = vmatprep.subr.mxu0 0.0
        %1261 = vmatpush1.msra.mxu0 0.0
        %1262 = vmatprep.subr.mxu0 0.0
        %1263 = vmatpush1.msra.mxu0 0.0
        %1264 = vmatprep.subr.mxu0 0.0
        %1265 = vmatpush1.msra.mxu0 0.0
        %1266 = vmatprep.subr.mxu0 0.0
        %1267 = vmatpush1.msra.mxu0 0.0
        %1268 = vmatprep.subr.mxu0 0.0
        %1269 = vmatpush1.msra.mxu0 0.0
        %1270 = vmatprep.subr.mxu0 0.0
        %1271 = vmatpush1.msra.mxu0 0.0
        %1272 = vmatprep.subr.mxu0 0.0
        %1273 = vmatpush1.msra.mxu0 0.0
        %1274 = vmatprep.subr.mxu0 0.0
        %1275 = vmatpush1.msra.mxu0 0.0
        %1276 = vmatprep.subr.mxu0 0.0
        %1277 = vmatpush1.msra.mxu0 0.0
        %1278 = vmatprep.subr.mxu0 0.0
        %1279 = vmatpush1.msra.mxu0 0.0
        %1280 = vmatprep.subr.mxu0 0.0
        %1281 = vmatpush1.msra.mxu0 0.0
        %1282 = vmatprep.subr.mxu0 0.0
        %1283 = vmatpush1.msra.mxu0 0.0
        %1284 = vmatprep.subr.mxu0 0.0
        %1285 = vmatpush1.msra.mxu0 0.0
        %1286 = vmatprep.subr.mxu0 0.0
        %1287 = vmatpush1.msra.mxu0 0.0
        %1288 = vmatprep.subr.mxu0 0.0
        %1289 = vmatpush1.msra.mxu0 0.0
        %1290 = vmatprep.subr.mxu0 0.0
        %1291 = vmatpush1.msra.mxu0 0.0
        %1292 = vmatprep.subr.mxu0 0.0
        %1293 = vmatpush1.msra.mxu0 0.0
        %1294 = vmatprep.subr.mxu0 0.0
        %1295 = vmatpush1.msra.mxu0 0.0
        %1296 = vmatprep.subr.mxu0 0.0
        %1297 = vmatpush1.msra.mxu0 0.0
        %1298 = vmatprep.subr.mxu0 0.0
        %1299 = vmatpush1.msra.mxu0 0.0
        %1300 = vmatprep.subr.mxu0 0.0
        %1301 = vmatpush1.msra.mxu0 0.0
        %1302 = vmatprep.mubr.f32.mxu0 0.0
        %1303 = vmatmul.mubr.f32.gmra.mrb[0].mxu0 %v1236
        %v1304 = vpop.f32.mrb[0].mxu0
        %v1305 = vadd.f32 0.0, %v1304
        %v1306 = vpop.f32.mrb[0].mxu0
        %1307 = vdwg.mxu0
        %1309 = vrot.lane.b32.xlu0 %v1153, 8
        %v1310 = vpop.permute.xlu0 %1309
        %1313 = vrot.lane.b32.xlu0 %v1229, 16
        %v1314 = vpop.permute.xlu0 %1313
        %1317 = vrot.lane.b32.xlu0 %v1305, 24
        %v1318 = vpop.permute.xlu0 %1317
        %v1320 = vsel %vm656, %v1077, %v1310
        %v1321 = vsel %vm533, %v1320, %v1314
        %vm1322 = vcmask 195584
        %v1323 = vsel %vm1322, %v1321, %v1318
        %v1324 = vld [vmem:[%s6] sm:$0xff]
        %v1325 = vld [vmem:[%s6 + $0x8] sm:$0xff]
        %v1326 = vld [vmem:[%s6 + $0x10] sm:$0xff]
        %v1327 = vld [vmem:[%s6 + $0x18] sm:$0xff]
        %v1328 = vlaneseq
        %v1329 = vshrl.u32 %v1328, 7
        %v1330 = vsub.s32 4, %v1329
        %v1331 = vrot.slane %v537, %v1330
        %v1333 = vsel %vm538, %v1323, 0
        %1335 = vmatprep.subr.mxu0 0.0
        %1336 = vmatpush1.msra.mxu0 %v1324
        %1337 = vmatprep.subr.mxu0 0.0
        %1338 = vmatpush1.msra.mxu0 %v1325
        %1339 = vmatprep.subr.mxu0 0.0
        %1340 = vmatpush1.msra.mxu0 %v1326
        %1341 = vmatprep.subr.mxu0 0.0
        %1342 = vmatpush1.msra.mxu0 %v1327
        %1343 = vmatprep.subr.mxu0 0.0
        %1344 = vmatpush1.msra.mxu0 0.0
        %1345 = vmatprep.subr.mxu0 0.0
        %1346 = vmatpush1.msra.mxu0 0.0
        %1347 = vmatprep.subr.mxu0 0.0
        %1348 = vmatpush1.msra.mxu0 0.0
        %1349 = vmatprep.subr.mxu0 0.0
        %1350 = vmatpush1.msra.mxu0 0.0
        %1351 = vmatprep.subr.mxu0 0.0
        %1352 = vmatpush1.msra.mxu0 0.0
        %1353 = vmatprep.subr.mxu0 0.0
        %1354 = vmatpush1.msra.mxu0 0.0
        %1355 = vmatprep.subr.mxu0 0.0
        %1356 = vmatpush1.msra.mxu0 0.0
        %1357 = vmatprep.subr.mxu0 0.0
        %1358 = vmatpush1.msra.mxu0 0.0
        %1359 = vmatprep.subr.mxu0 0.0
        %1360 = vmatpush1.msra.mxu0 0.0
        %1361 = vmatprep.subr.mxu0 0.0
        %1362 = vmatpush1.msra.mxu0 0.0
        %1363 = vmatprep.subr.mxu0 0.0
        %1364 = vmatpush1.msra.mxu0 0.0
        %1365 = vmatprep.subr.mxu0 0.0
        %1366 = vmatpush1.msra.mxu0 0.0
        %1367 = vmatprep.subr.mxu0 0.0
        %1368 = vmatpush1.msra.mxu0 0.0
        %1369 = vmatprep.subr.mxu0 0.0
        %1370 = vmatpush1.msra.mxu0 0.0
        %1371 = vmatprep.subr.mxu0 0.0
        %1372 = vmatpush1.msra.mxu0 0.0
        %1373 = vmatprep.subr.mxu0 0.0
        %1374 = vmatpush1.msra.mxu0 0.0
        %1375 = vmatprep.subr.mxu0 0.0
        %1376 = vmatpush1.msra.mxu0 0.0
        %1377 = vmatprep.subr.mxu0 0.0
        %1378 = vmatpush1.msra.mxu0 0.0
        %1379 = vmatprep.subr.mxu0 0.0
        %1380 = vmatpush1.msra.mxu0 0.0
        %1381 = vmatprep.subr.mxu0 0.0
        %1382 = vmatpush1.msra.mxu0 0.0
        %1383 = vmatprep.subr.mxu0 0.0
        %1384 = vmatpush1.msra.mxu0 0.0
        %1385 = vmatprep.subr.mxu0 0.0
        %1386 = vmatpush1.msra.mxu0 0.0
        %1387 = vmatprep.subr.mxu0 0.0
        %1388 = vmatpush1.msra.mxu0 0.0
        %1389 = vmatprep.subr.mxu0 0.0
        %1390 = vmatpush1.msra.mxu0 0.0
        %1391 = vmatprep.subr.mxu0 0.0
        %1392 = vmatpush1.msra.mxu0 0.0
        %1393 = vmatprep.subr.mxu0 0.0
        %1394 = vmatpush1.msra.mxu0 0.0
        %1395 = vmatprep.subr.mxu0 0.0
        %1396 = vmatpush1.msra.mxu0 0.0
        %1397 = vmatprep.subr.mxu0 0.0
        %1398 = vmatpush1.msra.mxu0 0.0
        %1399 = vmatprep.mubr.f32.mxu0 0.0
        %1400 = vmatmul.mubr.f32.gmra.mrb[0].mxu0 %v1333
        %v1401 = vpop.f32.mrb[0].mxu0
        %v1402 = vadd.f32 %v1331, %v1401
        %v1403 = vpop.f32.mrb[0].mxu0
        %1404 = vdwg.mxu0
        %v1405 = vadd.f32 %v534, %v1402
        %v1406 = vsel %vm538, %v1405, 0.0
        %1407 = vadd.xlane.f32.xlu0 %v1406
        %v1408 = vpop.xlane.xlu0 %1407
        %v1409 = vmul.f32 %v1408, %v542
        %v1410 = vsub.f32 %v1405, %v1409
        %v1411 = vmul.f32 %v1410, %v1410
        %v1412 = vsel %vm538, %v1411, 0.0
        %1413 = vadd.xlane.f32.xlu0 %v1412
        %v1414 = vpop.xlane.xlu0 %1413
        %v1415 = vmul.f32 %v1414, %v542
        %v1416 = vadd.f32 %v1415, 1e-05
        %v1417 = vrsqrt.pop %v1416
        %v1418 = vmul.f32 %v1410, %v1417
        %v1419 = vlaneseq
        %v1420 = vshrl.u32 %v1419, 7
        %v1421 = vsub.s32 2, %v1420
        %v1422 = vrot.slane %v537, %v1421
        %v1423 = vmul.f32 %v1418, %v1422
        %v1424 = vlaneseq
        %v1425 = vshrl.u32 %v1424, 7
        %v1426 = vsub.s32 3, %v1425
        %v1427 = vrot.slane %v537, %v1426
        %v1428 = vadd.f32 %v1423, %v1427
        %v1429 = vld [vmem:[%s7] sm:$0xff]
        %v1430 = vld [vmem:[%s7 + $0x8] sm:$0xff]
        %v1431 = vld [vmem:[%s7 + $0x10] sm:$0xff]
        %v1432 = vld [vmem:[%s7 + $0x18] sm:$0xff]
        %v1433 = vld [vmem:[%s10] sm:$0x1]
        %v1435 = vlaneseq
        %v1436 = vshrl.u32 %v1435, 7
        %v1437 = vsub.s32 0, %v1436
        %v1438 = vrot.slane %v1433, %v1437
        %v1441 = vsel %vm538, %v1428, 0
        %1443 = vmatprep.subr.mxu0 0.0
        %1444 = vmatpush1.msra.mxu0 %v1429
        %1445 = vmatprep.subr.mxu0 0.0
        %1446 = vmatpush1.msra.mxu0 %v1430
        %1447 = vmatprep.subr.mxu0 0.0
        %1448 = vmatpush1.msra.mxu0 %v1431
        %1449 = vmatprep.subr.mxu0 0.0
        %1450 = vmatpush1.msra.mxu0 %v1432
        %1451 = vmatprep.subr.mxu0 0.0
        %1452 = vmatpush1.msra.mxu0 0.0
        %1453 = vmatprep.subr.mxu0 0.0
        %1454 = vmatpush1.msra.mxu0 0.0
        %1455 = vmatprep.subr.mxu0 0.0
        %1456 = vmatpush1.msra.mxu0 0.0
        %1457 = vmatprep.subr.mxu0 0.0
        %1458 = vmatpush1.msra.mxu0 0.0
        %1459 = vmatprep.subr.mxu0 0.0
        %1460 = vmatpush1.msra.mxu0 0.0
        %1461 = vmatprep.subr.mxu0 0.0
        %1462 = vmatpush1.msra.mxu0 0.0
        %1463 = vmatprep.subr.mxu0 0.0
        %1464 = vmatpush1.msra.mxu0 0.0
        %1465 = vmatprep.subr.mxu0 0.0
        %1466 = vmatpush1.msra.mxu0 0.0
        %1467 = vmatprep.subr.mxu0 0.0
        %1468 = vmatpush1.msra.mxu0 0.0
        %1469 = vmatprep.subr.mxu0 0.0
        %1470 = vmatpush1.msra.mxu0 0.0
        %1471 = vmatprep.subr.mxu0 0.0
        %1472 = vmatpush1.msra.mxu0 0.0
        %1473 = vmatprep.subr.mxu0 0.0
        %1474 = vmatpush1.msra.mxu0 0.0
        %1475 = vmatprep.subr.mxu0 0.0
        %1476 = vmatpush1.msra.mxu0 0.0
        %1477 = vmatprep.subr.mxu0 0.0
        %1478 = vmatpush1.msra.mxu0 0.0
        %1479 = vmatprep.subr.mxu0 0.0
        %1480 = vmatpush1.msra.mxu0 0.0
        %1481 = vmatprep.subr.mxu0 0.0
        %1482 = vmatpush1.msra.mxu0 0.0
        %1483 = vmatprep.subr.mxu0 0.0
        %1484 = vmatpush1.msra.mxu0 0.0
        %1485 = vmatprep.subr.mxu0 0.0
        %1486 = vmatpush1.msra.mxu0 0.0
        %1487 = vmatprep.subr.mxu0 0.0
        %1488 = vmatpush1.msra.mxu0 0.0
        %1489 = vmatprep.subr.mxu0 0.0
        %1490 = vmatpush1.msra.mxu0 0.0
        %1491 = vmatprep.subr.mxu0 0.0
        %1492 = vmatpush1.msra.mxu0 0.0
        %1493 = vmatprep.subr.mxu0 0.0
        %1494 = vmatpush1.msra.mxu0 0.0
        %1495 = vmatprep.subr.mxu0 0.0
        %1496 = vmatpush1.msra.mxu0 0.0
        %1497 = vmatprep.subr.mxu0 0.0
        %1498 = vmatpush1.msra.mxu0 0.0
        %1499 = vmatprep.subr.mxu0 0.0
        %1500 = vmatpush1.msra.mxu0 0.0
        %1501 = vmatprep.subr.mxu0 0.0
        %1502 = vmatpush1.msra.mxu0 0.0
        %1503 = vmatprep.subr.mxu0 0.0
        %1504 = vmatpush1.msra.mxu0 0.0
        %1505 = vmatprep.subr.mxu0 0.0
        %1506 = vmatpush1.msra.mxu0 0.0
        %1507 = vmatprep.mubr.f32.mxu0 0.0
        %1508 = vmatmul.mubr.f32.gmra.mrb[0].mxu0 %v1441
        %v1509 = vpop.f32.mrb[0].mxu0
        %v1510 = vadd.f32 %v1438, %v1509
        %v1511 = vpop.f32.mrb[0].mxu0
        %1512 = vdwg.mxu0
        %v1513 = vmul.f32 %v1510, 0.5
        %v1514 = vmul.f32 %v1510, 0.044715
        %v1515 = vmul.f32 %v1514, %v1510
        %v1516 = vmul.f32 %v1515, %v1510
        %v1517 = vadd.f32 %v1510, %v1516
        %v1518 = vmul.f32 %v1517, 0.7978846
        %v1519 = vtanh.pop %v1518
        %v1520 = vadd.f32 %v1519, 1.0
        %v1521 = vmul.f32 %v1513, %v1520
        %v1522 = vld [vmem:[%s8] sm:$0xff]
        %v1523 = vld [vmem:[%s8 + $0x8] sm:$0xff]
        %v1524 = vld [vmem:[%s8 + $0x10] sm:$0xff]
        %v1525 = vld [vmem:[%s8 + $0x18] sm:$0xff]
        %v1526 = vld [vmem:[%s8 + $0x20] sm:$0xff]
        %v1527 = vld [vmem:[%s8 + $0x28] sm:$0xff]
        %v1528 = vld [vmem:[%s8 + $0x30] sm:$0xff]
        %v1529 = vld [vmem:[%s8 + $0x38] sm:$0xff]
        %v1530 = vld [vmem:[%s8 + $0x40] sm:$0xff]
        %v1531 = vld [vmem:[%s8 + $0x48] sm:$0xff]
        %v1532 = vld [vmem:[%s8 + $0x50] sm:$0xff]
        %v1533 = vld [vmem:[%s8 + $0x58] sm:$0xff]
        %v1534 = vld [vmem:[%s8 + $0x60] sm:$0xff]
        %v1535 = vld [vmem:[%s8 + $0x68] sm:$0xff]
        %v1536 = vld [vmem:[%s8 + $0x70] sm:$0xff]
        %v1537 = vld [vmem:[%s8 + $0x78] sm:$0xff]
        %v1538 = vlaneseq
        %v1539 = vshrl.u32 %v1538, 7
        %v1540 = vsub.s32 5, %v1539
        %v1541 = vrot.slane %v537, %v1540
        %1542 = vmatprep.subr.mxu0 0.0
        %1543 = vmatpush1.msra.mxu0 %v1522
        %1544 = vmatprep.subr.mxu0 0.0
        %1545 = vmatpush1.msra.mxu0 %v1523
        %1546 = vmatprep.subr.mxu0 0.0
        %1547 = vmatpush1.msra.mxu0 %v1524
        %1548 = vmatprep.subr.mxu0 0.0
        %1549 = vmatpush1.msra.mxu0 %v1525
        %1550 = vmatprep.subr.mxu0 0.0
        %1551 = vmatpush1.msra.mxu0 %v1526
        %1552 = vmatprep.subr.mxu0 0.0
        %1553 = vmatpush1.msra.mxu0 %v1527
        %1554 = vmatprep.subr.mxu0 0.0
        %1555 = vmatpush1.msra.mxu0 %v1528
        %1556 = vmatprep.subr.mxu0 0.0
        %1557 = vmatpush1.msra.mxu0 %v1529
        %1558 = vmatprep.subr.mxu0 0.0
        %1559 = vmatpush1.msra.mxu0 %v1530
        %1560 = vmatprep.subr.mxu0 0.0
        %1561 = vmatpush1.msra.mxu0 %v1531
        %1562 = vmatprep.subr.mxu0 0.0
        %1563 = vmatpush1.msra.mxu0 %v1532
        %1564 = vmatprep.subr.mxu0 0.0
        %1565 = vmatpush1.msra.mxu0 %v1533
        %1566 = vmatprep.subr.mxu0 0.0
        %1567 = vmatpush1.msra.mxu0 %v1534
        %1568 = vmatprep.subr.mxu0 0.0
        %1569 = vmatpush1.msra.mxu0 %v1535
        %1570 = vmatprep.subr.mxu0 0.0
        %1571 = vmatpush1.msra.mxu0 %v1536
        %1572 = vmatprep.subr.mxu0 0.0
        %1573 = vmatpush1.msra.mxu0 %v1537
        %1574 = vmatprep.subr.mxu0 0.0
        %1575 = vmatpush1.msra.mxu0 0.0
        %1576 = vmatprep.subr.mxu0 0.0
        %1577 = vmatpush1.msra.mxu0 0.0
        %1578 = vmatprep.subr.mxu0 0.0
        %1579 = vmatpush1.msra.mxu0 0.0
        %1580 = vmatprep.subr.mxu0 0.0
        %1581 = vmatpush1.msra.mxu0 0.0
        %1582 = vmatprep.subr.mxu0 0.0
        %1583 = vmatpush1.msra.mxu0 0.0
        %1584 = vmatprep.subr.mxu0 0.0
        %1585 = vmatpush1.msra.mxu0 0.0
        %1586 = vmatprep.subr.mxu0 0.0
        %1587 = vmatpush1.msra.mxu0 0.0
        %1588 = vmatprep.subr.mxu0 0.0
        %1589 = vmatpush1.msra.mxu0 0.0
        %1590 = vmatprep.subr.mxu0 0.0
        %1591 = vmatpush1.msra.mxu0 0.0
        %1592 = vmatprep.subr.mxu0 0.0
        %1593 = vmatpush1.msra.mxu0 0.0
        %1594 = vmatprep.subr.mxu0 0.0
        %1595 = vmatpush1.msra.mxu0 0.0
        %1596 = vmatprep.subr.mxu0 0.0
        %1597 = vmatpush1.msra.mxu0 0.0
        %1598 = vmatprep.subr.mxu0 0.0
        %1599 = vmatpush1.msra.mxu0 0.0
        %1600 = vmatprep.subr.mxu0 0.0
        %1601 = vmatpush1.msra.mxu0 0.0
        %1602 = vmatprep.subr.mxu0 0.0
        %1603 = vmatpush1.msra.mxu0 0.0
        %1604 = vmatprep.subr.mxu0 0.0
        %1605 = vmatpush1.msra.mxu0 0.0
        %1606 = vmatprep.mubr.f32.mxu0 0.0
        %1607 = vmatmul.mubr.f32.gmra.mrb[0].mxu0 %v1521
        %v1608 = vpop.f32.mrb[0].mxu0
        %v1609 = vadd.f32 %v1541, %v1608
        %v1610 = vpop.f32.mrb[0].mxu0
        %1611 = vdwg.mxu0
        %v1612 = vadd.f32 %v1405, %v1609
        %s1613 = scalar_lea.vmem %s11, 8
        %v1614 = vld [vmem:[%s1613] sm:$0x3f]
        %v1615 = vsel %vm538, %v1612, 0.0
        %1616 = vadd.xlane.f32.xlu0 %v1615
        %v1617 = vpop.xlane.xlu0 %1616
        %v1618 = vmul.f32 %v1617, %v542
        %v1619 = vsub.f32 %v1612, %v1618
        %v1620 = vmul.f32 %v1619, %v1619
        %v1621 = vsel %vm538, %v1620, 0.0
        %1622 = vadd.xlane.f32.xlu0 %v1621
        %v1623 = vpop.xlane.xlu0 %1622
        %v1624 = vmul.f32 %v1623, %v542
        %v1625 = vadd.f32 %v1624, 1e-05
        %v1626 = vrsqrt.pop %v1625
        %v1627 = vmul.f32 %v1619, %v1626
        %v1628 = vlaneseq
        %v1629 = vshrl.u32 %v1628, 7
        %v1630 = vsub.s32 0, %v1629
        %v1631 = vrot.slane %v1614, %v1630
        %v1632 = vmul.f32 %v1627, %v1631
        %v1633 = vlaneseq
        %v1634 = vshrl.u32 %v1633, 7
        %v1635 = vsub.s32 1, %v1634
        %v1636 = vrot.slane %v1614, %v1635
        %v1637 = vadd.f32 %v1632, %v1636
        %s1638 = scalar_lea.vmem %s5, 32
        %v1639 = vld [vmem:[%s1638] sm:$0xff]
        %v1640 = vld [vmem:[%s1638 + $0x8] sm:$0xff]
        %v1641 = vld [vmem:[%s1638 + $0x10] sm:$0xff]
        %v1642 = vld [vmem:[%s1638 + $0x18] sm:$0xff]
        %s1643 = scalar_lea.vmem %s9, 1
        %v1644 = vld [vmem:[%s1643] sm:$0x1]
        %v1646 = vlaneseq
        %v1647 = vshrl.u32 %v1646, 7
        %v1648 = vsub.s32 0, %v1647
        %v1649 = vrot.slane %v1644, %v1648
        %v1652 = vsel %vm538, %v1637, 0
        %1654 = vmatprep.subr.mxu0 0.0
        %1655 = vmatpush1.msra.mxu0 %v1639
        %1656 = vmatprep.subr.mxu0 0.0
        %1657 = vmatpush1.msra.mxu0 %v1640
        %1658 = vmatprep.subr.mxu0 0.0
        %1659 = vmatpush1.msra.mxu0 %v1641
        %1660 = vmatprep.subr.mxu0 0.0
        %1661 = vmatpush1.msra.mxu0 %v1642
        %1662 = vmatprep.subr.mxu0 0.0
        %1663 = vmatpush1.msra.mxu0 0.0
        %1664 = vmatprep.subr.mxu0 0.0
        %1665 = vmatpush1.msra.mxu0 0.0
        %1666 = vmatprep.subr.mxu0 0.0
        %1667 = vmatpush1.msra.mxu0 0.0
        %1668 = vmatprep.subr.mxu0 0.0
        %1669 = vmatpush1.msra.mxu0 0.0
        %1670 = vmatprep.subr.mxu0 0.0
        %1671 = vmatpush1.msra.mxu0 0.0
        %1672 = vmatprep.subr.mxu0 0.0
        %1673 = vmatpush1.msra.mxu0 0.0
        %1674 = vmatprep.subr.mxu0 0.0
        %1675 = vmatpush1.msra.mxu0 0.0
        %1676 = vmatprep.subr.mxu0 0.0
        %1677 = vmatpush1.msra.mxu0 0.0
        %1678 = vmatprep.subr.mxu0 0.0
        %1679 = vmatpush1.msra.mxu0 0.0
        %1680 = vmatprep.subr.mxu0 0.0
        %1681 = vmatpush1.msra.mxu0 0.0
        %1682 = vmatprep.subr.mxu0 0.0
        %1683 = vmatpush1.msra.mxu0 0.0
        %1684 = vmatprep.subr.mxu0 0.0
        %1685 = vmatpush1.msra.mxu0 0.0
        %1686 = vmatprep.subr.mxu0 0.0
        %1687 = vmatpush1.msra.mxu0 0.0
        %1688 = vmatprep.subr.mxu0 0.0
        %1689 = vmatpush1.msra.mxu0 0.0
        %1690 = vmatprep.subr.mxu0 0.0
        %1691 = vmatpush1.msra.mxu0 0.0
        %1692 = vmatprep.subr.mxu0 0.0
        %1693 = vmatpush1.msra.mxu0 0.0
        %1694 = vmatprep.subr.mxu0 0.0
        %1695 = vmatpush1.msra.mxu0 0.0
        %1696 = vmatprep.subr.mxu0 0.0
        %1697 = vmatpush1.msra.mxu0 0.0
        %1698 = vmatprep.subr.mxu0 0.0
        %1699 = vmatpush1.msra.mxu0 0.0
        %1700 = vmatprep.subr.mxu0 0.0
        %1701 = vmatpush1.msra.mxu0 0.0
        %1702 = vmatprep.subr.mxu0 0.0
        %1703 = vmatpush1.msra.mxu0 0.0
        %1704 = vmatprep.subr.mxu0 0.0
        %1705 = vmatpush1.msra.mxu0 0.0
        %1706 = vmatprep.subr.mxu0 0.0
        %1707 = vmatpush1.msra.mxu0 0.0
        %1708 = vmatprep.subr.mxu0 0.0
        %1709 = vmatpush1.msra.mxu0 0.0
        %1710 = vmatprep.subr.mxu0 0.0
        %1711 = vmatpush1.msra.mxu0 0.0
        %1712 = vmatprep.subr.mxu0 0.0
        %1713 = vmatpush1.msra.mxu0 0.0
        %1714 = vmatprep.subr.mxu0 0.0
        %1715 = vmatpush1.msra.mxu0 0.0
        %1716 = vmatprep.subr.mxu0 0.0
        %1717 = vmatpush1.msra.mxu0 0.0
        %1718 = vmatprep.mubr.f32.mxu0 0.0
        %1719 = vmatmul.mubr.f32.gmra.mrb[0].mxu0 %v1652
        %v1720 = vpop.f32.mrb[0].mxu0
        %v1721 = vadd.f32 %v1649, %v1720
        %v1722 = vpop.f32.mrb[0].mxu0
        %1723 = vdwg.mxu0
        %1725 = vrot.lane.b32.xlu0 %v1721, 120
        %v1726 = vpop.permute.xlu0 %1725
        %1727 = vrot.lane.b32.xlu0 %v1721, 112
        %v1728 = vpop.permute.xlu0 %1727
        %1729 = vrot.lane.b32.xlu0 %v1721, 104
        %v1730 = vpop.permute.xlu0 %1729
        %1731 = vrot.lane.b32.xlu0 %v1721, 96
        %v1732 = vpop.permute.xlu0 %1731
        %v1733 = vsel %vm656, %v1721, 0
        %v1735 = vsel %vm656, %v1732, 0
        %1737 = vmatprep.subr.mxu0 0.0
        %1738 = vmatpush1.xpose.msra.mxu0 %v1735
        %1739 = vmatprep.subr.mxu0 0.0
        %1740 = vmatpush1.xpose.msra.mxu0 0.0
        %1741 = vmatprep.subr.mxu0 0.0
        %1742 = vmatpush1.xpose.msra.mxu0 0.0
        %1743 = vmatprep.subr.mxu0 0.0
        %1744 = vmatpush1.xpose.msra.mxu0 0.0
        %1745 = vmatprep.subr.mxu0 0.0
        %1746 = vmatpush1.xpose.msra.mxu0 0.0
        %1747 = vmatprep.subr.mxu0 0.0
        %1748 = vmatpush1.xpose.msra.mxu0 0.0
        %1749 = vmatprep.subr.mxu0 0.0
        %1750 = vmatpush1.xpose.msra.mxu0 0.0
        %1751 = vmatprep.subr.mxu0 0.0
        %1752 = vmatpush1.xpose.msra.mxu0 0.0
        %1753 = vmatprep.subr.mxu0 0.0
        %1754 = vmatpush1.xpose.msra.mxu0 0.0
        %1755 = vmatprep.subr.mxu0 0.0
        %1756 = vmatpush1.xpose.msra.mxu0 0.0
        %1757 = vmatprep.subr.mxu0 0.0
        %1758 = vmatpush1.xpose.msra.mxu0 0.0
        %1759 = vmatprep.subr.mxu0 0.0
        %1760 = vmatpush1.xpose.msra.mxu0 0.0
        %1761 = vmatprep.subr.mxu0 0.0
        %1762 = vmatpush1.xpose.msra.mxu0 0.0
        %1763 = vmatprep.subr.mxu0 0.0
        %1764 = vmatpush1.xpose.msra.mxu0 0.0
        %1765 = vmatprep.subr.mxu0 0.0
        %1766 = vmatpush1.xpose.msra.mxu0 0.0
        %1767 = vmatprep.subr.mxu0 0.0
        %1768 = vmatpush1.xpose.msra.mxu0 0.0
        %1769 = vmatprep.subr.mxu0 0.0
        %1770 = vmatpush1.xpose.msra.mxu0 0.0
        %1771 = vmatprep.subr.mxu0 0.0
        %1772 = vmatpush1.xpose.msra.mxu0 0.0
        %1773 = vmatprep.subr.mxu0 0.0
        %1774 = vmatpush1.xpose.msra.mxu0 0.0
        %1775 = vmatprep.subr.mxu0 0.0
        %1776 = vmatpush1.xpose.msra.mxu0 0.0
        %1777 = vmatprep.subr.mxu0 0.0
        %1778 = vmatpush1.xpose.msra.mxu0 0.0
        %1779 = vmatprep.subr.mxu0 0.0
        %1780 = vmatpush1.xpose.msra.mxu0 0.0
        %1781 = vmatprep.subr.mxu0 0.0
        %1782 = vmatpush1.xpose.msra.mxu0 0.0
        %1783 = vmatprep.subr.mxu0 0.0
        %1784 = vmatpush1.xpose.msra.mxu0 0.0
        %1785 = vmatprep.subr.mxu0 0.0
        %1786 = vmatpush1.xpose.msra.mxu0 0.0
        %1787 = vmatprep.subr.mxu0 0.0
        %1788 = vmatpush1.xpose.msra.mxu0 0.0
        %1789 = vmatprep.subr.mxu0 0.0
        %1790 = vmatpush1.xpose.msra.mxu0 0.0
        %1791 = vmatprep.subr.mxu0 0.0
        %1792 = vmatpush1.xpose.msra.mxu0 0.0
        %1793 = vmatprep.subr.mxu0 0.0
        %1794 = vmatpush1.xpose.msra.mxu0 0.0
        %1795 = vmatprep.subr.mxu0 0.0
        %1796 = vmatpush1.xpose.msra.mxu0 0.0
        %1797 = vmatprep.subr.mxu0 0.0
        %1798 = vmatpush1.xpose.msra.mxu0 0.0
        %1799 = vmatprep.subr.mxu0 0.0
        %1800 = vmatpush1.xpose.msra.mxu0 0.0
        %1801 = vmatprep.mubr.f32.mxu0 0.0
        %1802 = vmatmul.mubr.f32.gmra.mrb[0].mxu0 %v1733
        %v1803 = vpop.f32.mrb[0].mxu0
        %v1804 = vadd.f32 0.0, %v1803
        %v1805 = vpop.f32.mrb[0].mxu0
        %1806 = vdwg.mxu0
        %1807 = vrot.lane.b32.xlu0 %v1726, 96
        %v1808 = vpop.permute.xlu0 %1807
        %v1809 = vsel %vm656, %v1726, 0
        %v1811 = vsel %vm656, %v1808, 0
        %1813 = vmatprep.subr.mxu0 0.0
        %1814 = vmatpush1.xpose.msra.mxu0 %v1811
        %1815 = vmatprep.subr.mxu0 0.0
        %1816 = vmatpush1.xpose.msra.mxu0 0.0
        %1817 = vmatprep.subr.mxu0 0.0
        %1818 = vmatpush1.xpose.msra.mxu0 0.0
        %1819 = vmatprep.subr.mxu0 0.0
        %1820 = vmatpush1.xpose.msra.mxu0 0.0
        %1821 = vmatprep.subr.mxu0 0.0
        %1822 = vmatpush1.xpose.msra.mxu0 0.0
        %1823 = vmatprep.subr.mxu0 0.0
        %1824 = vmatpush1.xpose.msra.mxu0 0.0
        %1825 = vmatprep.subr.mxu0 0.0
        %1826 = vmatpush1.xpose.msra.mxu0 0.0
        %1827 = vmatprep.subr.mxu0 0.0
        %1828 = vmatpush1.xpose.msra.mxu0 0.0
        %1829 = vmatprep.subr.mxu0 0.0
        %1830 = vmatpush1.xpose.msra.mxu0 0.0
        %1831 = vmatprep.subr.mxu0 0.0
        %1832 = vmatpush1.xpose.msra.mxu0 0.0
        %1833 = vmatprep.subr.mxu0 0.0
        %1834 = vmatpush1.xpose.msra.mxu0 0.0
        %1835 = vmatprep.subr.mxu0 0.0
        %1836 = vmatpush1.xpose.msra.mxu0 0.0
        %1837 = vmatprep.subr.mxu0 0.0
        %1838 = vmatpush1.xpose.msra.mxu0 0.0
        %1839 = vmatprep.subr.mxu0 0.0
        %1840 = vmatpush1.xpose.msra.mxu0 0.0
        %1841 = vmatprep.subr.mxu0 0.0
        %1842 = vmatpush1.xpose.msra.mxu0 0.0
        %1843 = vmatprep.subr.mxu0 0.0
        %1844 = vmatpush1.xpose.msra.mxu0 0.0
        %1845 = vmatprep.subr.mxu0 0.0
        %1846 = vmatpush1.xpose.msra.mxu0 0.0
        %1847 = vmatprep.subr.mxu0 0.0
        %1848 = vmatpush1.xpose.msra.mxu0 0.0
        %1849 = vmatprep.subr.mxu0 0.0
        %1850 = vmatpush1.xpose.msra.mxu0 0.0
        %1851 = vmatprep.subr.mxu0 0.0
        %1852 = vmatpush1.xpose.msra.mxu0 0.0
        %1853 = vmatprep.subr.mxu0 0.0
        %1854 = vmatpush1.xpose.msra.mxu0 0.0
        %1855 = vmatprep.subr.mxu0 0.0
        %1856 = vmatpush1.xpose.msra.mxu0 0.0
        %1857 = vmatprep.subr.mxu0 0.0
        %1858 = vmatpush1.xpose.msra.mxu0 0.0
        %1859 = vmatprep.subr.mxu0 0.0
        %1860 = vmatpush1.xpose.msra.mxu0 0.0
        %1861 = vmatprep.subr.mxu0 0.0
        %1862 = vmatpush1.xpose.msra.mxu0 0.0
        %1863 = vmatprep.subr.mxu0 0.0
        %1864 = vmatpush1.xpose.msra.mxu0 0.0
        %1865 = vmatprep.subr.mxu0 0.0
        %1866 = vmatpush1.xpose.msra.mxu0 0.0
        %1867 = vmatprep.subr.mxu0 0.0
        %1868 = vmatpush1.xpose.msra.mxu0 0.0
        %1869 = vmatprep.subr.mxu0 0.0
        %1870 = vmatpush1.xpose.msra.mxu0 0.0
        %1871 = vmatprep.subr.mxu0 0.0
        %1872 = vmatpush1.xpose.msra.mxu0 0.0
        %1873 = vmatprep.subr.mxu0 0.0
        %1874 = vmatpush1.xpose.msra.mxu0 0.0
        %1875 = vmatprep.subr.mxu0 0.0
        %1876 = vmatpush1.xpose.msra.mxu0 0.0
        %1877 = vmatprep.mubr.f32.mxu0 0.0
        %1878 = vmatmul.mubr.f32.gmra.mrb[0].mxu0 %v1809
        %v1879 = vpop.f32.mrb[0].mxu0
        %v1880 = vadd.f32 0.0, %v1879
        %v1881 = vpop.f32.mrb[0].mxu0
        %1882 = vdwg.mxu0
        %1883 = vrot.lane.b32.xlu0 %v1728, 96
        %v1884 = vpop.permute.xlu0 %1883
        %v1885 = vsel %vm656, %v1728, 0
        %v1887 = vsel %vm656, %v1884, 0
        %1889 = vmatprep.subr.mxu0 0.0
        %1890 = vmatpush1.xpose.msra.mxu0 %v1887
        %1891 = vmatprep.subr.mxu0 0.0
        %1892 = vmatpush1.xpose.msra.mxu0 0.0
        %1893 = vmatprep.subr.mxu0 0.0
        %1894 = vmatpush1.xpose.msra.mxu0 0.0
        %1895 = vmatprep.subr.mxu0 0.0
        %1896 = vmatpush1.xpose.msra.mxu0 0.0
        %1897 = vmatprep.subr.mxu0 0.0
        %1898 = vmatpush1.xpose.msra.mxu0 0.0
        %1899 = vmatprep.subr.mxu0 0.0
        %1900 = vmatpush1.xpose.msra.mxu0 0.0
        %1901 = vmatprep.subr.mxu0 0.0
        %1902 = vmatpush1.xpose.msra.mxu0 0.0
        %1903 = vmatprep.subr.mxu0 0.0
        %1904 = vmatpush1.xpose.msra.mxu0 0.0
        %1905 = vmatprep.subr.mxu0 0.0
        %1906 = vmatpush1.xpose.msra.mxu0 0.0
        %1907 = vmatprep.subr.mxu0 0.0
        %1908 = vmatpush1.xpose.msra.mxu0 0.0
        %1909 = vmatprep.subr.mxu0 0.0
        %1910 = vmatpush1.xpose.msra.mxu0 0.0
        %1911 = vmatprep.subr.mxu0 0.0
        %1912 = vmatpush1.xpose.msra.mxu0 0.0
        %1913 = vmatprep.subr.mxu0 0.0
        %1914 = vmatpush1.xpose.msra.mxu0 0.0
        %1915 = vmatprep.subr.mxu0 0.0
        %1916 = vmatpush1.xpose.msra.mxu0 0.0
        %1917 = vmatprep.subr.mxu0 0.0
        %1918 = vmatpush1.xpose.msra.mxu0 0.0
        %1919 = vmatprep.subr.mxu0 0.0
        %1920 = vmatpush1.xpose.msra.mxu0 0.0
        %1921 = vmatprep.subr.mxu0 0.0
        %1922 = vmatpush1.xpose.msra.mxu0 0.0
        %1923 = vmatprep.subr.mxu0 0.0
        %1924 = vmatpush1.xpose.msra.mxu0 0.0
        %1925 = vmatprep.subr.mxu0 0.0
        %1926 = vmatpush1.xpose.msra.mxu0 0.0
        %1927 = vmatprep.subr.mxu0 0.0
        %1928 = vmatpush1.xpose.msra.mxu0 0.0
        %1929 = vmatprep.subr.mxu0 0.0
        %1930 = vmatpush1.xpose.msra.mxu0 0.0
        %1931 = vmatprep.subr.mxu0 0.0
        %1932 = vmatpush1.xpose.msra.mxu0 0.0
        %1933 = vmatprep.subr.mxu0 0.0
        %1934 = vmatpush1.xpose.msra.mxu0 0.0
        %1935 = vmatprep.subr.mxu0 0.0
        %1936 = vmatpush1.xpose.msra.mxu0 0.0
        %1937 = vmatprep.subr.mxu0 0.0
        %1938 = vmatpush1.xpose.msra.mxu0 0.0
        %1939 = vmatprep.subr.mxu0 0.0
        %1940 = vmatpush1.xpose.msra.mxu0 0.0
        %1941 = vmatprep.subr.mxu0 0.0
        %1942 = vmatpush1.xpose.msra.mxu0 0.0
        %1943 = vmatprep.subr.mxu0 0.0
        %1944 = vmatpush1.xpose.msra.mxu0 0.0
        %1945 = vmatprep.subr.mxu0 0.0
        %1946 = vmatpush1.xpose.msra.mxu0 0.0
        %1947 = vmatprep.subr.mxu0 0.0
        %1948 = vmatpush1.xpose.msra.mxu0 0.0
        %1949 = vmatprep.subr.mxu0 0.0
        %1950 = vmatpush1.xpose.msra.mxu0 0.0
        %1951 = vmatprep.subr.mxu0 0.0
        %1952 = vmatpush1.xpose.msra.mxu0 0.0
        %1953 = vmatprep.mubr.f32.mxu0 0.0
        %1954 = vmatmul.mubr.f32.gmra.mrb[0].mxu0 %v1885
        %v1955 = vpop.f32.mrb[0].mxu0
        %v1956 = vadd.f32 0.0, %v1955
        %v1957 = vpop.f32.mrb[0].mxu0
        %1958 = vdwg.mxu0
        %1959 = vrot.lane.b32.xlu0 %v1730, 96
        %v1960 = vpop.permute.xlu0 %1959
        %v1961 = vsel %vm656, %v1730, 0
        %v1963 = vsel %vm656, %v1960, 0
        %1965 = vmatprep.subr.mxu0 0.0
        %1966 = vmatpush1.xpose.msra.mxu0 %v1963
        %1967 = vmatprep.subr.mxu0 0.0
        %1968 = vmatpush1.xpose.msra.mxu0 0.0
        %1969 = vmatprep.subr.mxu0 0.0
        %1970 = vmatpush1.xpose.msra.mxu0 0.0
        %1971 = vmatprep.subr.mxu0 0.0
        %1972 = vmatpush1.xpose.msra.mxu0 0.0
        %1973 = vmatprep.subr.mxu0 0.0
        %1974 = vmatpush1.xpose.msra.mxu0 0.0
        %1975 = vmatprep.subr.mxu0 0.0
        %1976 = vmatpush1.xpose.msra.mxu0 0.0
        %1977 = vmatprep.subr.mxu0 0.0
        %1978 = vmatpush1.xpose.msra.mxu0 0.0
        %1979 = vmatprep.subr.mxu0 0.0
        %1980 = vmatpush1.xpose.msra.mxu0 0.0
        %1981 = vmatprep.subr.mxu0 0.0
        %1982 = vmatpush1.xpose.msra.mxu0 0.0
        %1983 = vmatprep.subr.mxu0 0.0
        %1984 = vmatpush1.xpose.msra.mxu0 0.0
        %1985 = vmatprep.subr.mxu0 0.0
        %1986 = vmatpush1.xpose.msra.mxu0 0.0
        %1987 = vmatprep.subr.mxu0 0.0
        %1988 = vmatpush1.xpose.msra.mxu0 0.0
        %1989 = vmatprep.subr.mxu0 0.0
        %1990 = vmatpush1.xpose.msra.mxu0 0.0
        %1991 = vmatprep.subr.mxu0 0.0
        %1992 = vmatpush1.xpose.msra.mxu0 0.0
        %1993 = vmatprep.subr.mxu0 0.0
        %1994 = vmatpush1.xpose.msra.mxu0 0.0
        %1995 = vmatprep.subr.mxu0 0.0
        %1996 = vmatpush1.xpose.msra.mxu0 0.0
        %1997 = vmatprep.subr.mxu0 0.0
        %1998 = vmatpush1.xpose.msra.mxu0 0.0
        %1999 = vmatprep.subr.mxu0 0.0
        %2000 = vmatpush1.xpose.msra.mxu0 0.0
        %2001 = vmatprep.subr.mxu0 0.0
        %2002 = vmatpush1.xpose.msra.mxu0 0.0
        %2003 = vmatprep.subr.mxu0 0.0
        %2004 = vmatpush1.xpose.msra.mxu0 0.0
        %2005 = vmatprep.subr.mxu0 0.0
        %2006 = vmatpush1.xpose.msra.mxu0 0.0
        %2007 = vmatprep.subr.mxu0 0.0
        %2008 = vmatpush1.xpose.msra.mxu0 0.0
        %2009 = vmatprep.subr.mxu0 0.0
        %2010 = vmatpush1.xpose.msra.mxu0 0.0
        %2011 = vmatprep.subr.mxu0 0.0
        %2012 = vmatpush1.xpose.msra.mxu0 0.0
        %2013 = vmatprep.subr.mxu0 0.0
        %2014 = vmatpush1.xpose.msra.mxu0 0.0
        %2015 = vmatprep.subr.mxu0 0.0
        %2016 = vmatpush1.xpose.msra.mxu0 0.0
        %2017 = vmatprep.subr.mxu0 0.0
        %2018 = vmatpush1.xpose.msra.mxu0 0.0
        %2019 = vmatprep.subr.mxu0 0.0
        %2020 = vmatpush1.xpose.msra.mxu0 0.0
        %2021 = vmatprep.subr.mxu0 0.0
        %2022 = vmatpush1.xpose.msra.mxu0 0.0
        %2023 = vmatprep.subr.mxu0 0.0
        %2024 = vmatpush1.xpose.msra.mxu0 0.0
        %2025 = vmatprep.subr.mxu0 0.0
        %2026 = vmatpush1.xpose.msra.mxu0 0.0
        %2027 = vmatprep.subr.mxu0 0.0
        %2028 = vmatpush1.xpose.msra.mxu0 0.0
        %2029 = vmatprep.mubr.f32.mxu0 0.0
        %2030 = vmatmul.mubr.f32.gmra.mrb[0].mxu0 %v1961
        %v2031 = vpop.f32.mrb[0].mxu0
        %v2032 = vadd.f32 0.0, %v2031
        %v2033 = vpop.f32.mrb[0].mxu0
        %2034 = vdwg.mxu0
        %v2035 = vmul.f32 %v1804, 0.35355338
        %v2036 = vmul.f32 %v1880, 0.35355338
        %v2037 = vmul.f32 %v1956, 0.35355338
        %v2038 = vmul.f32 %v2032, 0.35355338
        %v2039 = vsel %vm968, -1e+09, %v2035
        %v2040 = vsel %vm968, -1e+09, %v2036
        %v2041 = vsel %vm968, -1e+09, %v2037
        %v2042 = vsel %vm968, -1e+09, %v2038
        %v2043 = vsel %vm656, %v2039, -inf
        %v2044 = vsel %vm656, %v2040, -inf
        %v2045 = vsel %vm656, %v2041, -inf
        %v2046 = vsel %vm656, %v2042, -inf
        %v2047 = vmax.f32 %v2043, %v2044
        %v2048 = vmax.f32 %v2045, %v2046
        %v2049 = vmax.f32 %v2047, %v2048
        %v2050 = vsub.f32 %v2039, %v2049
        %v2051 = vsub.f32 %v2040, %v2049
        %v2052 = vsub.f32 %v2041, %v2049
        %v2053 = vsub.f32 %v2042, %v2049
        %v2054 = vmul.f32 %v2050, 1.442695
        %v2055 = vpow.pop %v2054
        %v2056 = vmul.f32 %v2051, 1.442695
        %v2057 = vpow.pop %v2056
        %v2058 = vmul.f32 %v2052, 1.442695
        %v2059 = vpow.pop %v2058
        %v2060 = vmul.f32 %v2053, 1.442695
        %v2061 = vpow.pop %v2060
        %v2062 = vsel %vm656, %v2055, 0.0
        %v2063 = vsel %vm656, %v2057, 0.0
        %v2064 = vadd.f32 %v2062, %v2063
        %v2065 = vsel %vm656, %v2059, 0.0
        %v2066 = vadd.f32 %v2064, %v2065
        %v2067 = vsel %vm656, %v2061, 0.0
        %v2068 = vadd.f32 %v2066, %v2067
        %v2069 = vrcp.pop %v2068
        %v2070 = vmul.f32 %v2055, %v2069
        %v2071 = vmul.f32 %v2057, %v2069
        %v2072 = vmul.f32 %v2059, %v2069
        %v2073 = vmul.f32 %v2061, %v2069
        %2074 = vrot.lane.b32.xlu0 %v1721, 64
        %v2075 = vpop.permute.xlu0 %2074
        %v2078 = vsel %vm656, %v2070, 0
        %2080 = vmatprep.subr.mxu0 0.0
        %2081 = vmatpush1.msra.mxu0 %v2075
        %2082 = vmatprep.subr.mxu0 0.0
        %2083 = vmatpush1.msra.mxu0 0.0
        %2084 = vmatprep.subr.mxu0 0.0
        %2085 = vmatpush1.msra.mxu0 0.0
        %2086 = vmatprep.subr.mxu0 0.0
        %2087 = vmatpush1.msra.mxu0 0.0
        %2088 = vmatprep.subr.mxu0 0.0
        %2089 = vmatpush1.msra.mxu0 0.0
        %2090 = vmatprep.subr.mxu0 0.0
        %2091 = vmatpush1.msra.mxu0 0.0
        %2092 = vmatprep.subr.mxu0 0.0
        %2093 = vmatpush1.msra.mxu0 0.0
        %2094 = vmatprep.subr.mxu0 0.0
        %2095 = vmatpush1.msra.mxu0 0.0
        %2096 = vmatprep.subr.mxu0 0.0
        %2097 = vmatpush1.msra.mxu0 0.0
        %2098 = vmatprep.subr.mxu0 0.0
        %2099 = vmatpush1.msra.mxu0 0.0
        %2100 = vmatprep.subr.mxu0 0.0
        %2101 = vmatpush1.msra.mxu0 0.0
        %2102 = vmatprep.subr.mxu0 0.0
        %2103 = vmatpush1.msra.mxu0 0.0
        %2104 = vmatprep.subr.mxu0 0.0
        %2105 = vmatpush1.msra.mxu0 0.0
        %2106 = vmatprep.subr.mxu0 0.0
        %2107 = vmatpush1.msra.mxu0 0.0
        %2108 = vmatprep.subr.mxu0 0.0
        %2109 = vmatpush1.msra.mxu0 0.0
        %2110 = vmatprep.subr.mxu0 0.0
        %2111 = vmatpush1.msra.mxu0 0.0
        %2112 = vmatprep.subr.mxu0 0.0
        %2113 = vmatpush1.msra.mxu0 0.0
        %2114 = vmatprep.subr.mxu0 0.0
        %2115 = vmatpush1.msra.mxu0 0.0
        %2116 = vmatprep.subr.mxu0 0.0
        %2117 = vmatpush1.msra.mxu0 0.0
        %2118 = vmatprep.subr.mxu0 0.0
        %2119 = vmatpush1.msra.mxu0 0.0
        %2120 = vmatprep.subr.mxu0 0.0
        %2121 = vmatpush1.msra.mxu0 0.0
        %2122 = vmatprep.subr.mxu0 0.0
        %2123 = vmatpush1.msra.mxu0 0.0
        %2124 = vmatprep.subr.mxu0 0.0
        %2125 = vmatpush1.msra.mxu0 0.0
        %2126 = vmatprep.subr.mxu0 0.0
        %2127 = vmatpush1.msra.mxu0 0.0
        %2128 = vmatprep.subr.mxu0 0.0
        %2129 = vmatpush1.msra.mxu0 0.0
        %2130 = vmatprep.subr.mxu0 0.0
        %2131 = vmatpush1.msra.mxu0 0.0
        %2132 = vmatprep.subr.mxu0 0.0
        %2133 = vmatpush1.msra.mxu0 0.0
        %2134 = vmatprep.subr.mxu0 0.0
        %2135 = vmatpush1.msra.mxu0 0.0
        %2136 = vmatprep.subr.mxu0 0.0
        %2137 = vmatpush1.msra.mxu0 0.0
        %2138 = vmatprep.subr.mxu0 0.0
        %2139 = vmatpush1.msra.mxu0 0.0
        %2140 = vmatprep.subr.mxu0 0.0
        %2141 = vmatpush1.msra.mxu0 0.0
        %2142 = vmatprep.subr.mxu0 0.0
        %2143 = vmatpush1.msra.mxu0 0.0
        %2144 = vmatprep.mubr.f32.mxu0 0.0
        %2145 = vmatmul.mubr.f32.gmra.mrb[0].mxu0 %v2078
        %v2146 = vpop.f32.mrb[0].mxu0
        %v2147 = vadd.f32 0.0, %v2146
        %v2148 = vpop.f32.mrb[0].mxu0
        %2149 = vdwg.mxu0
        %2150 = vrot.lane.b32.xlu0 %v1726, 64
        %v2151 = vpop.permute.xlu0 %2150
        %v2154 = vsel %vm656, %v2071, 0
        %2156 = vmatprep.subr.mxu0 0.0
        %2157 = vmatpush1.msra.mxu0 %v2151
        %2158 = vmatprep.subr.mxu0 0.0
        %2159 = vmatpush1.msra.mxu0 0.0
        %2160 = vmatprep.subr.mxu0 0.0
        %2161 = vmatpush1.msra.mxu0 0.0
        %2162 = vmatprep.subr.mxu0 0.0
        %2163 = vmatpush1.msra.mxu0 0.0
        %2164 = vmatprep.subr.mxu0 0.0
        %2165 = vmatpush1.msra.mxu0 0.0
        %2166 = vmatprep.subr.mxu0 0.0
        %2167 = vmatpush1.msra.mxu0 0.0
        %2168 = vmatprep.subr.mxu0 0.0
        %2169 = vmatpush1.msra.mxu0 0.0
        %2170 = vmatprep.subr.mxu0 0.0
        %2171 = vmatpush1.msra.mxu0 0.0
        %2172 = vmatprep.subr.mxu0 0.0
        %2173 = vmatpush1.msra.mxu0 0.0
        %2174 = vmatprep.subr.mxu0 0.0
        %2175 = vmatpush1.msra.mxu0 0.0
        %2176 = vmatprep.subr.mxu0 0.0
        %2177 = vmatpush1.msra.mxu0 0.0
        %2178 = vmatprep.subr.mxu0 0.0
        %2179 = vmatpush1.msra.mxu0 0.0
        %2180 = vmatprep.subr.mxu0 0.0
        %2181 = vmatpush1.msra.mxu0 0.0
        %2182 = vmatprep.subr.mxu0 0.0
        %2183 = vmatpush1.msra.mxu0 0.0
        %2184 = vmatprep.subr.mxu0 0.0
        %2185 = vmatpush1.msra.mxu0 0.0
        %2186 = vmatprep.subr.mxu0 0.0
        %2187 = vmatpush1.msra.mxu0 0.0
        %2188 = vmatprep.subr.mxu0 0.0
        %2189 = vmatpush1.msra.mxu0 0.0
        %2190 = vmatprep.subr.mxu0 0.0
        %2191 = vmatpush1.msra.mxu0 0.0
        %2192 = vmatprep.subr.mxu0 0.0
        %2193 = vmatpush1.msra.mxu0 0.0
        %2194 = vmatprep.subr.mxu0 0.0
        %2195 = vmatpush1.msra.mxu0 0.0
        %2196 = vmatprep.subr.mxu0 0.0
        %2197 = vmatpush1.msra.mxu0 0.0
        %2198 = vmatprep.subr.mxu0 0.0
        %2199 = vmatpush1.msra.mxu0 0.0
        %2200 = vmatprep.subr.mxu0 0.0
        %2201 = vmatpush1.msra.mxu0 0.0
        %2202 = vmatprep.subr.mxu0 0.0
        %2203 = vmatpush1.msra.mxu0 0.0
        %2204 = vmatprep.subr.mxu0 0.0
        %2205 = vmatpush1.msra.mxu0 0.0
        %2206 = vmatprep.subr.mxu0 0.0
        %2207 = vmatpush1.msra.mxu0 0.0
        %2208 = vmatprep.subr.mxu0 0.0
        %2209 = vmatpush1.msra.mxu0 0.0
        %2210 = vmatprep.subr.mxu0 0.0
        %2211 = vmatpush1.msra.mxu0 0.0
        %2212 = vmatprep.subr.mxu0 0.0
        %2213 = vmatpush1.msra.mxu0 0.0
        %2214 = vmatprep.subr.mxu0 0.0
        %2215 = vmatpush1.msra.mxu0 0.0
        %2216 = vmatprep.subr.mxu0 0.0
        %2217 = vmatpush1.msra.mxu0 0.0
        %2218 = vmatprep.subr.mxu0 0.0
        %2219 = vmatpush1.msra.mxu0 0.0
        %2220 = vmatprep.mubr.f32.mxu0 0.0
        %2221 = vmatmul.mubr.f32.gmra.mrb[0].mxu0 %v2154
        %v2222 = vpop.f32.mrb[0].mxu0
        %v2223 = vadd.f32 0.0, %v2222
        %v2224 = vpop.f32.mrb[0].mxu0
        %2225 = vdwg.mxu0
        %2226 = vrot.lane.b32.xlu0 %v1728, 64
        %v2227 = vpop.permute.xlu0 %2226
        %v2230 = vsel %vm656, %v2072, 0
        %2232 = vmatprep.subr.mxu0 0.0
        %2233 = vmatpush1.msra.mxu0 %v2227
        %2234 = vmatprep.subr.mxu0 0.0
        %2235 = vmatpush1.msra.mxu0 0.0
        %2236 = vmatprep.subr.mxu0 0.0
        %2237 = vmatpush1.msra.mxu0 0.0
        %2238 = vmatprep.subr.mxu0 0.0
        %2239 = vmatpush1.msra.mxu0 0.0
        %2240 = vmatprep.subr.mxu0 0.0
        %2241 = vmatpush1.msra.mxu0 0.0
        %2242 = vmatprep.subr.mxu0 0.0
        %2243 = vmatpush1.msra.mxu0 0.0
        %2244 = vmatprep.subr.mxu0 0.0
        %2245 = vmatpush1.msra.mxu0 0.0
        %2246 = vmatprep.subr.mxu0 0.0
        %2247 = vmatpush1.msra.mxu0 0.0
        %2248 = vmatprep.subr.mxu0 0.0
        %2249 = vmatpush1.msra.mxu0 0.0
        %2250 = vmatprep.subr.mxu0 0.0
        %2251 = vmatpush1.msra.mxu0 0.0
        %2252 = vmatprep.subr.mxu0 0.0
        %2253 = vmatpush1.msra.mxu0 0.0
        %2254 = vmatprep.subr.mxu0 0.0
        %2255 = vmatpush1.msra.mxu0 0.0
        %2256 = vmatprep.subr.mxu0 0.0
        %2257 = vmatpush1.msra.mxu0 0.0
        %2258 = vmatprep.subr.mxu0 0.0
        %2259 = vmatpush1.msra.mxu0 0.0
        %2260 = vmatprep.subr.mxu0 0.0
        %2261 = vmatpush1.msra.mxu0 0.0
        %2262 = vmatprep.subr.mxu0 0.0
        %2263 = vmatpush1.msra.mxu0 0.0
        %2264 = vmatprep.subr.mxu0 0.0
        %2265 = vmatpush1.msra.mxu0 0.0
        %2266 = vmatprep.subr.mxu0 0.0
        %2267 = vmatpush1.msra.mxu0 0.0
        %2268 = vmatprep.subr.mxu0 0.0
        %2269 = vmatpush1.msra.mxu0 0.0
        %2270 = vmatprep.subr.mxu0 0.0
        %2271 = vmatpush1.msra.mxu0 0.0
        %2272 = vmatprep.subr.mxu0 0.0
        %2273 = vmatpush1.msra.mxu0 0.0
        %2274 = vmatprep.subr.mxu0 0.0
        %2275 = vmatpush1.msra.mxu0 0.0
        %2276 = vmatprep.subr.mxu0 0.0
        %2277 = vmatpush1.msra.mxu0 0.0
        %2278 = vmatprep.subr.mxu0 0.0
        %2279 = vmatpush1.msra.mxu0 0.0
        %2280 = vmatprep.subr.mxu0 0.0
        %2281 = vmatpush1.msra.mxu0 0.0
        %2282 = vmatprep.subr.mxu0 0.0
        %2283 = vmatpush1.msra.mxu0 0.0
        %2284 = vmatprep.subr.mxu0 0.0
        %2285 = vmatpush1.msra.mxu0 0.0
        %2286 = vmatprep.subr.mxu0 0.0
        %2287 = vmatpush1.msra.mxu0 0.0
        %2288 = vmatprep.subr.mxu0 0.0
        %2289 = vmatpush1.msra.mxu0 0.0
        %2290 = vmatprep.subr.mxu0 0.0
        %2291 = vmatpush1.msra.mxu0 0.0
        %2292 = vmatprep.subr.mxu0 0.0
        %2293 = vmatpush1.msra.mxu0 0.0
        %2294 = vmatprep.subr.mxu0 0.0
        %2295 = vmatpush1.msra.mxu0 0.0
        %2296 = vmatprep.mubr.f32.mxu0 0.0
        %2297 = vmatmul.mubr.f32.gmra.mrb[0].mxu0 %v2230
        %v2298 = vpop.f32.mrb[0].mxu0
        %v2299 = vadd.f32 0.0, %v2298
        %v2300 = vpop.f32.mrb[0].mxu0
        %2301 = vdwg.mxu0
        %2302 = vrot.lane.b32.xlu0 %v1730, 64
        %v2303 = vpop.permute.xlu0 %2302
        %v2306 = vsel %vm656, %v2073, 0
        %2308 = vmatprep.subr.mxu0 0.0
        %2309 = vmatpush1.msra.mxu0 %v2303
        %2310 = vmatprep.subr.mxu0 0.0
        %2311 = vmatpush1.msra.mxu0 0.0
        %2312 = vmatprep.subr.mxu0 0.0
        %2313 = vmatpush1.msra.mxu0 0.0
        %2314 = vmatprep.subr.mxu0 0.0
        %2315 = vmatpush1.msra.mxu0 0.0
        %2316 = vmatprep.subr.mxu0 0.0
        %2317 = vmatpush1.msra.mxu0 0.0
        %2318 = vmatprep.subr.mxu0 0.0
        %2319 = vmatpush1.msra.mxu0 0.0
        %2320 = vmatprep.subr.mxu0 0.0
        %2321 = vmatpush1.msra.mxu0 0.0
        %2322 = vmatprep.subr.mxu0 0.0
        %2323 = vmatpush1.msra.mxu0 0.0
        %2324 = vmatprep.subr.mxu0 0.0
        %2325 = vmatpush1.msra.mxu0 0.0
        %2326 = vmatprep.subr.mxu0 0.0
        %2327 = vmatpush1.msra.mxu0 0.0
        %2328 = vmatprep.subr.mxu0 0.0
        %2329 = vmatpush1.msra.mxu0 0.0
        %2330 = vmatprep.subr.mxu0 0.0
        %2331 = vmatpush1.msra.mxu0 0.0
        %2332 = vmatprep.subr.mxu0 0.0
        %2333 = vmatpush1.msra.mxu0 0.0
        %2334 = vmatprep.subr.mxu0 0.0
        %2335 = vmatpush1.msra.mxu0 0.0
        %2336 = vmatprep.subr.mxu0 0.0
        %2337 = vmatpush1.msra.mxu0 0.0
        %2338 = vmatprep.subr.mxu0 0.0
        %2339 = vmatpush1.msra.mxu0 0.0
        %2340 = vmatprep.subr.mxu0 0.0
        %2341 = vmatpush1.msra.mxu0 0.0
        %2342 = vmatprep.subr.mxu0 0.0
        %2343 = vmatpush1.msra.mxu0 0.0
        %2344 = vmatprep.subr.mxu0 0.0
        %2345 = vmatpush1.msra.mxu0 0.0
        %2346 = vmatprep.subr.mxu0 0.0
        %2347 = vmatpush1.msra.mxu0 0.0
        %2348 = vmatprep.subr.mxu0 0.0
        %2349 = vmatpush1.msra.mxu0 0.0
        %2350 = vmatprep.subr.mxu0 0.0
        %2351 = vmatpush1.msra.mxu0 0.0
        %2352 = vmatprep.subr.mxu0 0.0
        %2353 = vmatpush1.msra.mxu0 0.0
        %2354 = vmatprep.subr.mxu0 0.0
        %2355 = vmatpush1.msra.mxu0 0.0
        %2356 = vmatprep.subr.mxu0 0.0
        %2357 = vmatpush1.msra.mxu0 0.0
        %2358 = vmatprep.subr.mxu0 0.0
        %2359 = vmatpush1.msra.mxu0 0.0
        %2360 = vmatprep.subr.mxu0 0.0
        %2361 = vmatpush1.msra.mxu0 0.0
        %2362 = vmatprep.subr.mxu0 0.0
        %2363 = vmatpush1.msra.mxu0 0.0
        %2364 = vmatprep.subr.mxu0 0.0
        %2365 = vmatpush1.msra.mxu0 0.0
        %2366 = vmatprep.subr.mxu0 0.0
        %2367 = vmatpush1.msra.mxu0 0.0
        %2368 = vmatprep.subr.mxu0 0.0
        %2369 = vmatpush1.msra.mxu0 0.0
        %2370 = vmatprep.subr.mxu0 0.0
        %2371 = vmatpush1.msra.mxu0 0.0
        %2372 = vmatprep.mubr.f32.mxu0 0.0
        %2373 = vmatmul.mubr.f32.gmra.mrb[0].mxu0 %v2306
        %v2374 = vpop.f32.mrb[0].mxu0
        %v2375 = vadd.f32 0.0, %v2374
        %v2376 = vpop.f32.mrb[0].mxu0
        %2377 = vdwg.mxu0
        %2379 = vrot.lane.b32.xlu0 %v2223, 8
        %v2380 = vpop.permute.xlu0 %2379
        %2383 = vrot.lane.b32.xlu0 %v2299, 16
        %v2384 = vpop.permute.xlu0 %2383
        %2387 = vrot.lane.b32.xlu0 %v2375, 24
        %v2388 = vpop.permute.xlu0 %2387
        %v2390 = vsel %vm656, %v2147, %v2380
        %v2391 = vsel %vm533, %v2390, %v2384
        %v2392 = vsel %vm1322, %v2391, %v2388
        %s2393 = scalar_lea.vmem %s6, 32
        %v2394 = vld [vmem:[%s2393] sm:$0xff]
        %v2395 = vld [vmem:[%s2393 + $0x8] sm:$0xff]
        %v2396 = vld [vmem:[%s2393 + $0x10] sm:$0xff]
        %v2397 = vld [vmem:[%s2393 + $0x18] sm:$0xff]
        %v2398 = vlaneseq
        %v2399 = vshrl.u32 %v2398, 7
        %v2400 = vsub.s32 4, %v2399
        %v2401 = vrot.slane %v1614, %v2400
        %v2403 = vsel %vm538, %v2392, 0
        %2405 = vmatprep.subr.mxu0 0.0
        %2406 = vmatpush1.msra.mxu0 %v2394
        %2407 = vmatprep.subr.mxu0 0.0
        %2408 = vmatpush1.msra.mxu0 %v2395
        %2409 = vmatprep.subr.mxu0 0.0
        %2410 = vmatpush1.msra.mxu0 %v2396
        %2411 = vmatprep.subr.mxu0 0.0
        %2412 = vmatpush1.msra.mxu0 %v2397
        %2413 = vmatprep.subr.mxu0 0.0
        %2414 = vmatpush1.msra.mxu0 0.0
        %2415 = vmatprep.subr.mxu0 0.0
        %2416 = vmatpush1.msra.mxu0 0.0
        %2417 = vmatprep.subr.mxu0 0.0
        %2418 = vmatpush1.msra.mxu0 0.0
        %2419 = vmatprep.subr.mxu0 0.0
        %2420 = vmatpush1.msra.mxu0 0.0
        %2421 = vmatprep.subr.mxu0 0.0
        %2422 = vmatpush1.msra.mxu0 0.0
        %2423 = vmatprep.subr.mxu0 0.0
        %2424 = vmatpush1.msra.mxu0 0.0
        %2425 = vmatprep.subr.mxu0 0.0
        %2426 = vmatpush1.msra.mxu0 0.0
        %2427 = vmatprep.subr.mxu0 0.0
        %2428 = vmatpush1.msra.mxu0 0.0
        %2429 = vmatprep.subr.mxu0 0.0
        %2430 = vmatpush1.msra.mxu0 0.0
        %2431 = vmatprep.subr.mxu0 0.0
        %2432 = vmatpush1.msra.mxu0 0.0
        %2433 = vmatprep.subr.mxu0 0.0
        %2434 = vmatpush1.msra.mxu0 0.0
        %2435 = vmatprep.subr.mxu0 0.0
        %2436 = vmatpush1.msra.mxu0 0.0
        %2437 = vmatprep.subr.mxu0 0.0
        %2438 = vmatpush1.msra.mxu0 0.0
        %2439 = vmatprep.subr.mxu0 0.0
        %2440 = vmatpush1.msra.mxu0 0.0
        %2441 = vmatprep.subr.mxu0 0.0
        %2442 = vmatpush1.msra.mxu0 0.0
        %2443 = vmatprep.subr.mxu0 0.0
        %2444 = vmatpush1.msra.mxu0 0.0
        %2445 = vmatprep.subr.mxu0 0.0
        %2446 = vmatpush1.msra.mxu0 0.0
        %2447 = vmatprep.subr.mxu0 0.0
        %2448 = vmatpush1.msra.mxu0 0.0
        %2449 = vmatprep.subr.mxu0 0.0
        %2450 = vmatpush1.msra.mxu0 0.0
        %2451 = vmatprep.subr.mxu0 0.0
        %2452 = vmatpush1.msra.mxu0 0.0
        %2453 = vmatprep.subr.mxu0 0.0
        %2454 = vmatpush1.msra.mxu0 0.0
        %2455 = vmatprep.subr.mxu0 0.0
        %2456 = vmatpush1.msra.mxu0 0.0
        %2457 = vmatprep.subr.mxu0 0.0
        %2458 = vmatpush1.msra.mxu0 0.0
        %2459 = vmatprep.subr.mxu0 0.0
        %2460 = vmatpush1.msra.mxu0 0.0
        %2461 = vmatprep.subr.mxu0 0.0
        %2462 = vmatpush1.msra.mxu0 0.0
        %2463 = vmatprep.subr.mxu0 0.0
        %2464 = vmatpush1.msra.mxu0 0.0
        %2465 = vmatprep.subr.mxu0 0.0
        %2466 = vmatpush1.msra.mxu0 0.0
        %2467 = vmatprep.subr.mxu0 0.0
        %2468 = vmatpush1.msra.mxu0 0.0
        %2469 = vmatprep.mubr.f32.mxu0 0.0
        %2470 = vmatmul.mubr.f32.gmra.mrb[0].mxu0 %v2403
        %v2471 = vpop.f32.mrb[0].mxu0
        %v2472 = vadd.f32 %v2401, %v2471
        %v2473 = vpop.f32.mrb[0].mxu0
        %2474 = vdwg.mxu0
        %v2475 = vadd.f32 %v1612, %v2472
        %v2476 = vsel %vm538, %v2475, 0.0
        %2477 = vadd.xlane.f32.xlu0 %v2476
        %v2478 = vpop.xlane.xlu0 %2477
        %v2479 = vmul.f32 %v2478, %v542
        %v2480 = vsub.f32 %v2475, %v2479
        %v2481 = vmul.f32 %v2480, %v2480
        %v2482 = vsel %vm538, %v2481, 0.0
        %2483 = vadd.xlane.f32.xlu0 %v2482
        %v2484 = vpop.xlane.xlu0 %2483
        %v2485 = vmul.f32 %v2484, %v542
        %v2486 = vadd.f32 %v2485, 1e-05
        %v2487 = vrsqrt.pop %v2486
        %v2488 = vmul.f32 %v2480, %v2487
        %v2489 = vlaneseq
        %v2490 = vshrl.u32 %v2489, 7
        %v2491 = vsub.s32 2, %v2490
        %v2492 = vrot.slane %v1614, %v2491
        %v2493 = vmul.f32 %v2488, %v2492
        %v2494 = vlaneseq
        %v2495 = vshrl.u32 %v2494, 7
        %v2496 = vsub.s32 3, %v2495
        %v2497 = vrot.slane %v1614, %v2496
        %v2498 = vadd.f32 %v2493, %v2497
        %s2499 = scalar_lea.vmem %s7, 32
        %v2500 = vld [vmem:[%s2499] sm:$0xff]
        %v2501 = vld [vmem:[%s2499 + $0x8] sm:$0xff]
        %v2502 = vld [vmem:[%s2499 + $0x10] sm:$0xff]
        %v2503 = vld [vmem:[%s2499 + $0x18] sm:$0xff]
        %s2504 = scalar_lea.vmem %s10, 1
        %v2505 = vld [vmem:[%s2504] sm:$0x1]
        %v2507 = vlaneseq
        %v2508 = vshrl.u32 %v2507, 7
        %v2509 = vsub.s32 0, %v2508
        %v2510 = vrot.slane %v2505, %v2509
        %v2513 = vsel %vm538, %v2498, 0
        %2515 = vmatprep.subr.mxu0 0.0
        %2516 = vmatpush1.msra.mxu0 %v2500
        %2517 = vmatprep.subr.mxu0 0.0
        %2518 = vmatpush1.msra.mxu0 %v2501
        %2519 = vmatprep.subr.mxu0 0.0
        %2520 = vmatpush1.msra.mxu0 %v2502
        %2521 = vmatprep.subr.mxu0 0.0
        %2522 = vmatpush1.msra.mxu0 %v2503
        %2523 = vmatprep.subr.mxu0 0.0
        %2524 = vmatpush1.msra.mxu0 0.0
        %2525 = vmatprep.subr.mxu0 0.0
        %2526 = vmatpush1.msra.mxu0 0.0
        %2527 = vmatprep.subr.mxu0 0.0
        %2528 = vmatpush1.msra.mxu0 0.0
        %2529 = vmatprep.subr.mxu0 0.0
        %2530 = vmatpush1.msra.mxu0 0.0
        %2531 = vmatprep.subr.mxu0 0.0
        %2532 = vmatpush1.msra.mxu0 0.0
        %2533 = vmatprep.subr.mxu0 0.0
        %2534 = vmatpush1.msra.mxu0 0.0
        %2535 = vmatprep.subr.mxu0 0.0
        %2536 = vmatpush1.msra.mxu0 0.0
        %2537 = vmatprep.subr.mxu0 0.0
        %2538 = vmatpush1.msra.mxu0 0.0
        %2539 = vmatprep.subr.mxu0 0.0
        %2540 = vmatpush1.msra.mxu0 0.0
        %2541 = vmatprep.subr.mxu0 0.0
        %2542 = vmatpush1.msra.mxu0 0.0
        %2543 = vmatprep.subr.mxu0 0.0
        %2544 = vmatpush1.msra.mxu0 0.0
        %2545 = vmatprep.subr.mxu0 0.0
        %2546 = vmatpush1.msra.mxu0 0.0
        %2547 = vmatprep.subr.mxu0 0.0
        %2548 = vmatpush1.msra.mxu0 0.0
        %2549 = vmatprep.subr.mxu0 0.0
        %2550 = vmatpush1.msra.mxu0 0.0
        %2551 = vmatprep.subr.mxu0 0.0
        %2552 = vmatpush1.msra.mxu0 0.0
        %2553 = vmatprep.subr.mxu0 0.0
        %2554 = vmatpush1.msra.mxu0 0.0
        %2555 = vmatprep.subr.mxu0 0.0
        %2556 = vmatpush1.msra.mxu0 0.0
        %2557 = vmatprep.subr.mxu0 0.0
        %2558 = vmatpush1.msra.mxu0 0.0
        %2559 = vmatprep.subr.mxu0 0.0
        %2560 = vmatpush1.msra.mxu0 0.0
        %2561 = vmatprep.subr.mxu0 0.0
        %2562 = vmatpush1.msra.mxu0 0.0
        %2563 = vmatprep.subr.mxu0 0.0
        %2564 = vmatpush1.msra.mxu0 0.0
        %2565 = vmatprep.subr.mxu0 0.0
        %2566 = vmatpush1.msra.mxu0 0.0
        %2567 = vmatprep.subr.mxu0 0.0
        %2568 = vmatpush1.msra.mxu0 0.0
        %2569 = vmatprep.subr.mxu0 0.0
        %2570 = vmatpush1.msra.mxu0 0.0
        %2571 = vmatprep.subr.mxu0 0.0
        %2572 = vmatpush1.msra.mxu0 0.0
        %2573 = vmatprep.subr.mxu0 0.0
        %2574 = vmatpush1.msra.mxu0 0.0
        %2575 = vmatprep.subr.mxu0 0.0
        %2576 = vmatpush1.msra.mxu0 0.0
        %2577 = vmatprep.subr.mxu0 0.0
        %2578 = vmatpush1.msra.mxu0 0.0
        %2579 = vmatprep.mubr.f32.mxu0 0.0
        %2580 = vmatmul.mubr.f32.gmra.mrb[0].mxu0 %v2513
        %v2581 = vpop.f32.mrb[0].mxu0
        %v2582 = vadd.f32 %v2510, %v2581
        %v2583 = vpop.f32.mrb[0].mxu0
        %2584 = vdwg.mxu0
        %v2585 = vmul.f32 %v2582, 0.5
        %v2586 = vmul.f32 %v2582, 0.044715
        %v2587 = vmul.f32 %v2586, %v2582
        %v2588 = vmul.f32 %v2587, %v2582
        %v2589 = vadd.f32 %v2582, %v2588
        %v2590 = vmul.f32 %v2589, 0.7978846
        %v2591 = vtanh.pop %v2590
        %v2592 = vadd.f32 %v2591, 1.0
        %v2593 = vmul.f32 %v2585, %v2592
        %s2594 = scalar_lea.vmem %s8, 128
        %v2595 = vld [vmem:[%s2594] sm:$0xff]
        %v2596 = vld [vmem:[%s2594 + $0x8] sm:$0xff]
        %v2597 = vld [vmem:[%s2594 + $0x10] sm:$0xff]
        %v2598 = vld [vmem:[%s2594 + $0x18] sm:$0xff]
        %v2599 = vld [vmem:[%s2594 + $0x20] sm:$0xff]
        %v2600 = vld [vmem:[%s2594 + $0x28] sm:$0xff]
        %v2601 = vld [vmem:[%s2594 + $0x30] sm:$0xff]
        %v2602 = vld [vmem:[%s2594 + $0x38] sm:$0xff]
        %v2603 = vld [vmem:[%s2594 + $0x40] sm:$0xff]
        %v2604 = vld [vmem:[%s2594 + $0x48] sm:$0xff]
        %v2605 = vld [vmem:[%s2594 + $0x50] sm:$0xff]
        %v2606 = vld [vmem:[%s2594 + $0x58] sm:$0xff]
        %v2607 = vld [vmem:[%s2594 + $0x60] sm:$0xff]
        %v2608 = vld [vmem:[%s2594 + $0x68] sm:$0xff]
        %v2609 = vld [vmem:[%s2594 + $0x70] sm:$0xff]
        %v2610 = vld [vmem:[%s2594 + $0x78] sm:$0xff]
        %v2611 = vlaneseq
        %v2612 = vshrl.u32 %v2611, 7
        %v2613 = vsub.s32 5, %v2612
        %v2614 = vrot.slane %v1614, %v2613
        %2615 = vmatprep.subr.mxu0 0.0
        %2616 = vmatpush1.msra.mxu0 %v2595
        %2617 = vmatprep.subr.mxu0 0.0
        %2618 = vmatpush1.msra.mxu0 %v2596
        %2619 = vmatprep.subr.mxu0 0.0
        %2620 = vmatpush1.msra.mxu0 %v2597
        %2621 = vmatprep.subr.mxu0 0.0
        %2622 = vmatpush1.msra.mxu0 %v2598
        %2623 = vmatprep.subr.mxu0 0.0
        %2624 = vmatpush1.msra.mxu0 %v2599
        %2625 = vmatprep.subr.mxu0 0.0
        %2626 = vmatpush1.msra.mxu0 %v2600
        %2627 = vmatprep.subr.mxu0 0.0
        %2628 = vmatpush1.msra.mxu0 %v2601
        %2629 = vmatprep.subr.mxu0 0.0
        %2630 = vmatpush1.msra.mxu0 %v2602
        %2631 = vmatprep.subr.mxu0 0.0
        %2632 = vmatpush1.msra.mxu0 %v2603
        %2633 = vmatprep.subr.mxu0 0.0
        %2634 = vmatpush1.msra.mxu0 %v2604
        %2635 = vmatprep.subr.mxu0 0.0
        %2636 = vmatpush1.msra.mxu0 %v2605
        %2637 = vmatprep.subr.mxu0 0.0
        %2638 = vmatpush1.msra.mxu0 %v2606
        %2639 = vmatprep.subr.mxu0 0.0
        %2640 = vmatpush1.msra.mxu0 %v2607
        %2641 = vmatprep.subr.mxu0 0.0
        %2642 = vmatpush1.msra.mxu0 %v2608
        %2643 = vmatprep.subr.mxu0 0.0
        %2644 = vmatpush1.msra.mxu0 %v2609
        %2645 = vmatprep.subr.mxu0 0.0
        %2646 = vmatpush1.msra.mxu0 %v2610
        %2647 = vmatprep.subr.mxu0 0.0
        %2648 = vmatpush1.msra.mxu0 0.0
        %2649 = vmatprep.subr.mxu0 0.0
        %2650 = vmatpush1.msra.mxu0 0.0
        %2651 = vmatprep.subr.mxu0 0.0
        %2652 = vmatpush1.msra.mxu0 0.0
        %2653 = vmatprep.subr.mxu0 0.0
        %2654 = vmatpush1.msra.mxu0 0.0
        %2655 = vmatprep.subr.mxu0 0.0
        %2656 = vmatpush1.msra.mxu0 0.0
        %2657 = vmatprep.subr.mxu0 0.0
        %2658 = vmatpush1.msra.mxu0 0.0
        %2659 = vmatprep.subr.mxu0 0.0
        %2660 = vmatpush1.msra.mxu0 0.0
        %2661 = vmatprep.subr.mxu0 0.0
        %2662 = vmatpush1.msra.mxu0 0.0
        %2663 = vmatprep.subr.mxu0 0.0
        %2664 = vmatpush1.msra.mxu0 0.0
        %2665 = vmatprep.subr.mxu0 0.0
        %2666 = vmatpush1.msra.mxu0 0.0
        %2667 = vmatprep.subr.mxu0 0.0
        %2668 = vmatpush1.msra.mxu0 0.0
        %2669 = vmatprep.subr.mxu0 0.0
        %2670 = vmatpush1.msra.mxu0 0.0
        %2671 = vmatprep.subr.mxu0 0.0
        %2672 = vmatpush1.msra.mxu0 0.0
        %2673 = vmatprep.subr.mxu0 0.0
        %2674 = vmatpush1.msra.mxu0 0.0
        %2675 = vmatprep.subr.mxu0 0.0
        %2676 = vmatpush1.msra.mxu0 0.0
        %2677 = vmatprep.subr.mxu0 0.0
        %2678 = vmatpush1.msra.mxu0 0.0
        %2679 = vmatprep.mubr.f32.mxu0 0.0
        %2680 = vmatmul.mubr.f32.gmra.mrb[0].mxu0 %v2593
        %v2681 = vpop.f32.mrb[0].mxu0
        %v2682 = vadd.f32 %v2614, %v2681
        %v2683 = vpop.f32.mrb[0].mxu0
        %2684 = vdwg.mxu0
        %v2685 = vadd.f32 %v2475, %v2682
        %2686 = vst.msk [vmem:[%s428] sm:$0xff] %vm538, %v2685
        %s2687 = sand.u32 %s301, 1
        %s2688 = scalar_lea.sflag [#allocation3], %s2687
        %s2689 = sand.u32 %s301, 1
        %s2690 = smul.addr %s2689, 8
        %s2691 = scalar_lea.vmem [#allocation2], %s2690
        // Predicated region
        $region69: #{tpu_custom_call.1} parent=67 // pred_check
          %p2692 = pneg %p311
        $region70: #{tpu_custom_call.1} parent=67 // pred_check_branch
          %2694 = sbr.rel (%p2692) target = $region72
        $region71: #{tpu_custom_call.1} parent=67 // pred_region
          %s2696 = ssub.s32 128, 128
          %2697 = vsyncadd %s2688, %s2696
          %s2698 = smul.addr %s26, 128
          %s2699 = scalar_lea.hbm %s12, %s2698
          %s2701 = sshll.u32 %s2691, 4
          %s2702 = int_to_ptr.vmem [resolvable:$true] %s2701
          %2704 = dma.vmem_to_hbm [thread:$0]  %s2702, 128, %s2699, %s2688
        $region72: #{tpu_custom_call.1} parent=67 // pred_fallthru
          _
      $region68: #{tpu_custom_call.1} parent=5 // pred_fallthru
        _
      %p2705 = scmp.le.s32.totalorder 2, %s21
      // Predicated region
      $region73: #{tpu_custom_call.1} parent=5 // pred_check
        %p2706 = pneg %p2705
      $region74: #{tpu_custom_call.1} parent=5 // pred_check_branch
        %2708 = sbr.rel (%p2706) target = $region76
      $region75: #{tpu_custom_call.1} parent=5 // pred_region
        %s2709 = ssub.s32 %s21, 2
        // Predicated region
        $region77: #{tpu_custom_call.1} parent=75 // pred_check
          %p2710 = pneg %p317
        $region78: #{tpu_custom_call.1} parent=75 // pred_check_branch
          %2712 = sbr.rel (%p2710) target = $region80
        $region79: #{tpu_custom_call.1} parent=75 // pred_region
          %s2713 = sand.u32 %s302, 1
          %s2714 = scalar_lea.sflag [#allocation3], %s2713
          %s2715 = sand.u32 %s302, 1
          %s2716 = smul.addr %s2715, 8
          %s2717 = scalar_lea.vmem [#allocation2], %s2716
          %2718 = dma.done %s2714, 128
        $region80: #{tpu_custom_call.1} parent=75 // pred_fallthru
          _
      $region76: #{tpu_custom_call.1} parent=5 // pred_fallthru
        _
    $region6: #{tpu_custom_call.1} parent=1 // loop_footer
      %s25 = sadd.s32 1, %s21
    $region7: #{tpu_custom_call.1} parent=1 // loop_footer_branch
      %20 = sbr.rel target = $region3
    $region8: #{tpu_custom_call.1} parent=1 // loop_exit
      _
    %2719 = vsyncpa [#allocation3], 1
    %s2720 = scalar_lea.sflag [#allocation3], 1
    %2721 = vsyncpa %s2720, 1

</llo_original>
